<compile_context>
chip_gen: v5e
topology: v5e:2x2
jax: 0.10.0
libtpu: 0.0.40
codegen_flags: <defaults>
</compile_context>

<pallas_src>
import functools

import jax
import jax.numpy as jnp
from jax import lax
from jax.experimental import pallas as pl
from jax.experimental.pallas import tpu as pltpu


def _span_embedder_kernel(doc_ref, start_ref, end_ref, cont_ref, width_ref,
                          w1_ref, b1_ref, w2_ref, b2_ref, wtab_ref,
                          out_ref, fused_ref, *, S, M, T, H, BT):
    # ---- hoisted: shared parameters / iotas (loaded once per grid step) ----
    w1 = w1_ref[...]                                       # (H, HID)
    b1 = b1_ref[...]                                       # (1, HID)
    w2 = w2_ref[...]                                       # (HID, 1)
    b2 = b2_ref[...]                                       # (1, 1)
    wtab = wtab_ref[...]                                   # (5, E)
    E = wtab.shape[1]
    m_idx = lax.broadcasted_iota(jnp.int32, (S, M), 1)     # (S, M)

    for b in range(BT):                                    # static, unrolled
        doc = doc_ref[b]                                   # (T, H)
        w = width_ref[b]                                   # (S, 1) int32

        # --- fused mapping matmul: [start; end; cont_flat] @ doc -----------
        fused_ref[0:S, :] = start_ref[b]                       # (S, T)
        fused_ref[S:2 * S, :] = end_ref[b]                     # (S, T)
        fused_ref[2 * S:, :] = cont_ref[b].reshape(S * M, T)   # (S*M, T)
        emb = jnp.dot(fused_ref[...], doc,
                      preferred_element_type=jnp.float32)      # (2S+SM, H)
        start_emb = emb[0:S]                                   # (S, H)
        end_emb = emb[S:2 * S]                                 # (S, H)
        cont_emb = emb[2 * S:]                                 # (S*M, H)

        # --- self-attention MLP: Linear -> ReLU -> Linear (dropout = id) ---
        h1 = jnp.maximum(
            jnp.dot(cont_emb, w1, preferred_element_type=jnp.float32) + b1,
            0.0)
        scores = (jnp.dot(h1, w2, preferred_element_type=jnp.float32)
                  + b2).reshape(S, M)                          # (S, M)

        # --- mask: first max(width, 1) tokens; mask-by-value as in torch ---
        w_eff = jnp.maximum(w, 1)                              # (S, 1)
        mask = (m_idx < w_eff).astype(jnp.float32)             # (S, M)
        scores = scores * mask
        scores = jnp.where(scores != 0.0, scores, jnp.float32(-9e9))

        # softmax over the token (M) axis; reciprocal on the EUP
        smax = jnp.max(scores, axis=1, keepdims=True)
        e = jnp.exp(scores - smax)
        probs = e * pl.reciprocal(jnp.sum(e, axis=1, keepdims=True),
                                  approx=True)

        # --- attention-weighted sum: unrolled MAC over M --------------------
        cont_3d = cont_emb.reshape(S, M, H)
        weighted = probs[:, 0:1] * cont_3d[:, 0, :]
        for m in range(1, M):
            weighted = weighted + probs[:, m:m + 1] * cont_3d[:, m, :]

        # --- width embedding: clamp(width, max=4), 5-way VPU select --------
        wc = jnp.minimum(w, 4)                                 # (S, 1)
        wemb = jnp.zeros((S, E), jnp.float32)
        for i in range(5):
            wemb = wemb + jnp.where(wc == i, wtab[i:i + 1, :], 0.0)

        # --- single lane-dense output slab: [start | end | attn | width] ---
        out_ref[b, :, 0:H] = start_emb
        out_ref[b, :, H:2 * H] = end_emb
        out_ref[b, :, 2 * H:3 * H] = weighted
        out_ref[b, :, 3 * H:] = wemb


def _pick_batch_tile(B, per_elem_bytes, max_tile=8, budget_bytes=16 << 20):
    """Largest divisor of B (<= max_tile) whose per-step footprint fits budget."""
    bt = 1
    for d in range(2, min(B, max_tile) + 1):
        if B % d == 0 and d * per_elem_bytes <= budget_bytes:
            bt = d
    return bt


def span_embedder_forward(doc_embeddings, start_mappings, end_mappings,
                          continuous_mappings, width,
                          w1, b1, w2, b2, width_table, *, batch_tile=None):
    B, T, H = doc_embeddings.shape
    S = start_mappings.shape[1]
    M = continuous_mappings.shape[2]
    HID = w1.shape[1]
    E = width_table.shape[1]
    OUT = 3 * H + E

    if batch_tile is None:
        # per-batch-element VMEM footprint (x2 for double buffering)
        per_elem = 4 * (T * H + 2 * S * T + S * M * T + S + S * OUT)
        batch_tile = _pick_batch_tile(B, 2 * per_elem)
    assert B % batch_tile == 0

    width_col = width.astype(jnp.int32).reshape(B, S, 1)

    kernel = functools.partial(_span_embedder_kernel,
                               S=S, M=M, T=T, H=H, BT=batch_tile)

    grid_spec = pltpu.PrefetchScalarGridSpec(
        num_scalar_prefetch=0,
        grid=(B // batch_tile,),
        in_specs=[
            pl.BlockSpec((batch_tile, T, H), lambda b: (b, 0, 0)),       # doc
            pl.BlockSpec((batch_tile, S, T), lambda b: (b, 0, 0)),       # start map
            pl.BlockSpec((batch_tile, S, T), lambda b: (b, 0, 0)),       # end map
            pl.BlockSpec((batch_tile, S, M, T), lambda b: (b, 0, 0, 0)), # cont map
            pl.BlockSpec((batch_tile, S, 1), lambda b: (b, 0, 0)),       # width
            pl.BlockSpec((H, HID), lambda b: (0, 0)),                    # W1
            pl.BlockSpec((1, HID), lambda b: (0, 0)),                    # b1
            pl.BlockSpec((HID, 1), lambda b: (0, 0)),                    # W2
            pl.BlockSpec((1, 1), lambda b: (0, 0)),                      # b2
            pl.BlockSpec((5, E), lambda b: (0, 0)),                      # width table
        ],
        out_specs=pl.BlockSpec((batch_tile, S, OUT), lambda b: (b, 0, 0)),
        scratch_shapes=[pltpu.VMEM((2 * S + S * M, T), jnp.float32)],
    )

    return pl.pallas_call(
        kernel,
        out_shape=jax.ShapeDtypeStruct((B, S, OUT), jnp.float32),
        grid_spec=grid_spec,
        compiler_params=pltpu.CompilerParams(
            dimension_semantics=("parallel",)),
    )(doc_embeddings, start_mappings, end_mappings, continuous_mappings,
      width_col, w1, b1, w2, b2, width_table)


def _reference_forward(doc, start_m, end_m, cont_m, width,
                       w1, b1, w2, b2, width_table):
    """Pure-JAX reference matching the PyTorch forward (eval mode)."""
    start_e = jnp.einsum('bst,bth->bsh', start_m, doc)
    end_e = jnp.einsum('bst,bth->bsh', end_m, doc)
    cont_e = jnp.einsum('bsmt,bth->bsmh', cont_m, doc)
    B, S, M, H = cont_e.shape
    cont_e = cont_e.reshape(B * S, M, H)
    wflat = width.reshape(B * S)
    vector = jnp.concatenate([start_e, end_e], axis=-1).reshape(B * S, 2 * H)

    mask = (jnp.arange(M)[None, :] < jnp.maximum(wflat, 1)[:, None]).astype(jnp.float32)
    h1 = jnp.maximum(cont_e @ w1 + b1[0], 0.0)
    scores = (h1 @ w2 + b2[0]).squeeze(-1)           # (B*S, M)
    scores = scores * mask
    scores = jnp.where(scores != 0.0, scores, -9e9)
    probs = jax.nn.softmax(scores, axis=1)
    weighted = jnp.sum(probs[:, :, None] * cont_e, axis=1)
    wemb = width_table[jnp.minimum(wflat, 4)]
    out = jnp.concatenate([vector, weighted, wemb], axis=1)
    return out.reshape(B, S, -1)


if __name__ == "__main__":
    # Small synthetic shapes consistent with the module.
    B, S, M, T = 2, 8, 4, 16        # batch, spans per doc, max span width, doc tokens
    H = 32                          # bert_hidden_size
    HID = 32                        # config.hidden_layer
    E = 16                          # config.embedding_dimension

    key = jax.random.PRNGKey(0)
    ks = jax.random.split(key, 10)

    doc = jax.random.normal(ks[0], (B, T, H), dtype=jnp.float32)
    start_m = jax.random.normal(ks[1], (B, S, T), dtype=jnp.float32)
    end_m = jax.random.normal(ks[2], (B, S, T), dtype=jnp.float32)
    cont_m = jax.random.normal(ks[3], (B, S, M, T), dtype=jnp.float32)
    width = jax.random.randint(ks[4], (B, S), 0, M + 1, dtype=jnp.int32)

    # Deterministic parameter init (xavier_uniform for Linear weights,
    # uniform[0,1) for biases, normal(0,1) for Embedding — as in init_weights /
    # nn.Embedding defaults).
    def xavier(k, fan_in, fan_out):
        lim = (6.0 / (fan_in + fan_out)) ** 0.5
        return jax.random.uniform(k, (fan_in, fan_out), jnp.float32, -lim, lim)

    w1 = xavier(ks[5], H, HID)
    b1 = jax.random.uniform(ks[6], (1, HID), jnp.float32)
    w2 = xavier(ks[7], HID, 1)
    b2 = jax.random.uniform(ks[8], (1, 1), jnp.float32)
    width_table = jax.random.normal(ks[9], (5, E), dtype=jnp.float32)

    # TODO(synk): with_type_embedding branch not exercised (config default False).

    out = span_embedder_forward(doc, start_m, end_m, cont_m, width,
                                w1, b1, w2, b2, width_table)
    out = jax.block_until_ready(out)

    ref = _reference_forward(doc, start_m, end_m, cont_m, width,
                             w1, b1, w2, b2, width_table)
    assert out.shape == (B, S, 3 * H + E), out.shape
    # Slightly looser tolerance than before: pl.reciprocal(approx=True) adds a
    # small uniform relative error to the attention-weighted block only.
    assert jnp.allclose(out, ref, atol=1e-3, rtol=5e-3), "mismatch vs reference"

    print("KERNEL_OK")
</pallas_src>

<mosaic_0001>
module attributes {stable_mosaic.version = 11 : i64} {
  func.func @_span_embedder_kernel(%arg0: i32, %arg1: memref<2x16x32xf32, #tpu.memory_space<vmem>>, %arg2: memref<2x8x16xf32, #tpu.memory_space<vmem>>, %arg3: memref<2x8x16xf32, #tpu.memory_space<vmem>>, %arg4: memref<2x8x4x16xf32, #tpu.memory_space<vmem>>, %arg5: memref<2x8x1xi32, #tpu.memory_space<vmem>>, %arg6: memref<32x32xf32, #tpu.memory_space<vmem>>, %arg7: memref<1x32xf32, #tpu.memory_space<vmem>>, %arg8: memref<32x1xf32, #tpu.memory_space<vmem>>, %arg9: memref<1x1xf32, #tpu.memory_space<vmem>>, %arg10: memref<5x16xf32, #tpu.memory_space<vmem>>, %arg11: memref<2x8x112xf32, #tpu.memory_space<vmem>>, %arg12: memref<48x16xf32, #tpu.memory_space<vmem>>) attributes {dimension_semantics = [#tpu.dimension_semantics<parallel>], iteration_bounds = array<i64: 1>, scalar_prefetch = 0 : i64, scratch_operands = 1 : i64, tpu.core_type = #tpu.core_type<tc>, window_params = [{transform_indices = @transform_0, window_bounds = array<i64: 2, 16, 32>}, {transform_indices = @transform_1, window_bounds = array<i64: 2, 8, 16>}, {transform_indices = @transform_2, window_bounds = array<i64: 2, 8, 16>}, {transform_indices = @transform_3, window_bounds = array<i64: 2, 8, 4, 16>}, {transform_indices = @transform_4, window_bounds = array<i64: 2, 8, 1>}, {pipeline_mode = #tpu.pipeline_mode<synchronous>, transform_indices = @transform_5, window_bounds = array<i64: 32, 32>}, {pipeline_mode = #tpu.pipeline_mode<synchronous>, transform_indices = @transform_6, window_bounds = array<i64: 1, 32>}, {pipeline_mode = #tpu.pipeline_mode<synchronous>, transform_indices = @transform_7, window_bounds = array<i64: 32, 1>}, {pipeline_mode = #tpu.pipeline_mode<synchronous>, transform_indices = @transform_8, window_bounds = array<i64: 1, 1>}, {pipeline_mode = #tpu.pipeline_mode<synchronous>, transform_indices = @transform_9, window_bounds = array<i64: 5, 16>}, {transform_indices = @transform_10, window_bounds = array<i64: 2, 8, 112>}]} {
    %c0 = arith.constant 0 : index
    %c0_0 = arith.constant 0 : index
    %0 = vector.load %arg6[%c0, %c0_0] : memref<32x32xf32, #tpu.memory_space<vmem>>, vector<32x32xf32>
    %c0_1 = arith.constant 0 : index
    %c0_2 = arith.constant 0 : index
    %1 = vector.load %arg7[%c0_1, %c0_2] : memref<1x32xf32, #tpu.memory_space<vmem>>, vector<1x32xf32>
    %c0_3 = arith.constant 0 : index
    %c0_4 = arith.constant 0 : index
    %2 = vector.load %arg8[%c0_3, %c0_4] : memref<32x1xf32, #tpu.memory_space<vmem>>, vector<32x1xf32>
    %c0_5 = arith.constant 0 : index
    %c0_6 = arith.constant 0 : index
    %3 = vector.load %arg9[%c0_5, %c0_6] : memref<1x1xf32, #tpu.memory_space<vmem>>, vector<1x1xf32>
    %c0_7 = arith.constant 0 : index
    %c0_8 = arith.constant 0 : index
    %4 = vector.load %arg10[%c0_7, %c0_8] : memref<5x16xf32, #tpu.memory_space<vmem>>, vector<5x16xf32>
    %5 = tpu.iota {dimensions = array<i32: 1>} : vector<8x4xi32>
    %c0_9 = arith.constant 0 : index
    %c0_10 = arith.constant 0 : index
    %c0_11 = arith.constant 0 : index
    %6 = vector.load %arg1[%c0_9, %c0_10, %c0_11] : memref<2x16x32xf32, #tpu.memory_space<vmem>>, vector<1x16x32xf32>
    %7 = vector.shape_cast %6 : vector<1x16x32xf32> to vector<16x32xf32>
    %c0_12 = arith.constant 0 : index
    %c0_13 = arith.constant 0 : index
    %c0_14 = arith.constant 0 : index
    %8 = vector.load %arg5[%c0_12, %c0_13, %c0_14] : memref<2x8x1xi32, #tpu.memory_space<vmem>>, vector<1x8x1xi32>
    %9 = vector.shape_cast %8 : vector<1x8x1xi32> to vector<8x1xi32>
    %c0_15 = arith.constant 0 : index
    %c0_16 = arith.constant 0 : index
    %c0_17 = arith.constant 0 : index
    %10 = vector.load %arg2[%c0_15, %c0_16, %c0_17] : memref<2x8x16xf32, #tpu.memory_space<vmem>>, vector<1x8x16xf32>
    %11 = vector.shape_cast %10 : vector<1x8x16xf32> to vector<8x16xf32>
    %c0_18 = arith.constant 0 : index
    %c0_19 = arith.constant 0 : index
    %12 = vector.load %arg12[%c0_18, %c0_19] : memref<48x16xf32, #tpu.memory_space<vmem>>, vector<8x16xf32>
    tpu.vector_store %arg12[%c0_18, %c0_19], %11 {strides = array<i32>} : memref<48x16xf32, #tpu.memory_space<vmem>>, vector<8x16xf32>,
    %c0_20 = arith.constant 0 : index
    %c0_21 = arith.constant 0 : index
    %c0_22 = arith.constant 0 : index
    %13 = vector.load %arg3[%c0_20, %c0_21, %c0_22] : memref<2x8x16xf32, #tpu.memory_space<vmem>>, vector<1x8x16xf32>
    %14 = vector.shape_cast %13 : vector<1x8x16xf32> to vector<8x16xf32>
    %c8 = arith.constant 8 : index
    %c0_23 = arith.constant 0 : index
    %15 = vector.load %arg12[%c8, %c0_23] : memref<48x16xf32, #tpu.memory_space<vmem>>, vector<8x16xf32>
    tpu.vector_store %arg12[%c8, %c0_23], %14 {strides = array<i32>} : memref<48x16xf32, #tpu.memory_space<vmem>>, vector<8x16xf32>,
    %c0_24 = arith.constant 0 : index
    %c0_25 = arith.constant 0 : index
    %c0_26 = arith.constant 0 : index
    %c0_27 = arith.constant 0 : index
    %16 = vector.load %arg4[%c0_24, %c0_25, %c0_26, %c0_27] : memref<2x8x4x16xf32, #tpu.memory_space<vmem>>, vector<1x8x4x16xf32>
    %17 = vector.shape_cast %16 : vector<1x8x4x16xf32> to vector<8x4x16xf32>
    %18 = vector.shape_cast %17 : vector<8x4x16xf32> to vector<32x16xf32>
    %c16 = arith.constant 16 : index
    %c0_28 = arith.constant 0 : index
    %19 = vector.load %arg12[%c16, %c0_28] : memref<48x16xf32, #tpu.memory_space<vmem>>, vector<32x16xf32>
    tpu.vector_store %arg12[%c16, %c0_28], %18 {strides = array<i32>} : memref<48x16xf32, #tpu.memory_space<vmem>>, vector<32x16xf32>,
    %c0_29 = arith.constant 0 : index
    %c0_30 = arith.constant 0 : index
    %20 = vector.load %arg12[%c0_29, %c0_30] : memref<48x16xf32, #tpu.memory_space<vmem>>, vector<48x16xf32>
    %cst = arith.constant dense<0.000000e+00> : vector<48x32xf32>
    %21 = tpu.matmul %20, %7, %cst {dimension_numbers = #tpu.dot_dimension_numbers<[1], [0], [0], [1], [0, 0, 1, 1], [], []>} : vector<48x16xf32>, vector<16x32xf32>, vector<48x32xf32> -> vector<48x32xf32>
    %22 = vector.extract_strided_slice %21 {offsets = [0, 0], sizes = [8, 32], strides = [1, 1]} : vector<48x32xf32> to vector<8x32xf32>
    %23 = vector.extract_strided_slice %21 {offsets = [8, 0], sizes = [8, 32], strides = [1, 1]} : vector<48x32xf32> to vector<8x32xf32>
    %24 = vector.extract_strided_slice %21 {offsets = [16, 0], sizes = [32, 32], strides = [1, 1]} : vector<48x32xf32> to vector<32x32xf32>
    %cst_31 = arith.constant dense<0.000000e+00> : vector<32x32xf32>
    %25 = tpu.matmul %24, %0, %cst_31 {dimension_numbers = #tpu.dot_dimension_numbers<[1], [0], [0], [1], [0, 0, 1, 1], [], []>} : vector<32x32xf32>, vector<32x32xf32>, vector<32x32xf32> -> vector<32x32xf32>
    %26 = vector.broadcast %1 : vector<1x32xf32> to vector<32x32xf32>
    %27 = arith.addf %25, %26 : vector<32x32xf32>
    %cst_32 = arith.constant 0.000000e+00 : f32
    %28 = vector.broadcast %cst_32 : f32 to vector<32x32xf32>
    %29 = arith.maximumf %27, %28 : vector<32x32xf32>
    %cst_33 = arith.constant dense<0.000000e+00> : vector<32x1xf32>
    %30 = tpu.matmul %29, %2, %cst_33 {dimension_numbers = #tpu.dot_dimension_numbers<[1], [0], [0], [1], [0, 0, 1, 1], [], []>} : vector<32x32xf32>, vector<32x1xf32>, vector<32x1xf32> -> vector<32x1xf32>
    %31 = vector.broadcast %3 : vector<1x1xf32> to vector<32x1xf32>
    %32 = arith.addf %30, %31 : vector<32x1xf32>
    %33 = vector.shape_cast %32 : vector<32x1xf32> to vector<8x4xf32>
    %c1_i32 = arith.constant 1 : i32
    %34 = vector.broadcast %c1_i32 : i32 to vector<8x1xi32>
    %35 = arith.maxsi %9, %34 : vector<8x1xi32>
    %36 = vector.broadcast %35 : vector<8x1xi32> to vector<8x4xi32>
    %37 = arith.cmpi slt, %5, %36 : vector<8x4xi32>
    %38 = arith.extui %37 : vector<8x4xi1> to vector<8x4xi32>
    %39 = arith.sitofp %38 : vector<8x4xi32> to vector<8x4xf32>
    %40 = arith.mulf %33, %39 : vector<8x4xf32>
    %cst_34 = arith.constant 0.000000e+00 : f32
    %41 = vector.broadcast %cst_34 : f32 to vector<8x4xf32>
    %42 = arith.cmpf one, %40, %41 : vector<8x4xf32>
    %cst_35 = arith.constant -8.99999948E+9 : f32
    %43 = vector.broadcast %cst_35 : f32 to vector<8x4xf32>
    %44 = arith.select %42, %40, %43 : vector<8x4xi1>, vector<8x4xf32>
    %cst_36 = arith.constant dense<0xFF800000> : vector<8xf32>
    %45 = vector.multi_reduction <maximumf>, %44, %cst_36 [1] : vector<8x4xf32> to vector<8xf32>
    %46 = vector.shape_cast %45 : vector<8xf32> to vector<8x1xf32>
    %47 = vector.broadcast %46 : vector<8x1xf32> to vector<8x4xf32>
    %48 = arith.subf %44, %47 : vector<8x4xf32>
    %49 = math.exp %48 : vector<8x4xf32>
    %cst_37 = arith.constant dense<0.000000e+00> : vector<8xf32>
    %50 = vector.multi_reduction <add>, %49, %cst_37 [1] : vector<8x4xf32> to vector<8xf32>
    %51 = vector.shape_cast %50 : vector<8xf32> to vector<8x1xf32>
    %52 = tpu.reciprocal %51 {approx = true} : vector<8x1xf32> -> vector<8x1xf32>
    %53 = vector.broadcast %52 : vector<8x1xf32> to vector<8x4xf32>
    %54 = arith.mulf %49, %53 : vector<8x4xf32>
    %55 = vector.shape_cast %24 : vector<32x32xf32> to vector<8x4x32xf32>
    %56 = vector.extract_strided_slice %54 {offsets = [0, 0], sizes = [8, 1], strides = [1, 1]} : vector<8x4xf32> to vector<8x1xf32>
    %57 = vector.extract_strided_slice %55 {offsets = [0, 0, 0], sizes = [8, 1, 32], strides = [1, 1, 1]} : vector<8x4x32xf32> to vector<8x1x32xf32>
    %58 = vector.shape_cast %57 : vector<8x1x32xf32> to vector<8x32xf32>
    %59 = vector.broadcast %56 : vector<8x1xf32> to vector<8x32xf32>
    %60 = arith.mulf %59, %58 : vector<8x32xf32>
    %61 = vector.extract_strided_slice %54 {offsets = [0, 1], sizes = [8, 1], strides = [1, 1]} : vector<8x4xf32> to vector<8x1xf32>
    %62 = vector.extract_strided_slice %55 {offsets = [0, 1, 0], sizes = [8, 1, 32], strides = [1, 1, 1]} : vector<8x4x32xf32> to vector<8x1x32xf32>
    %63 = vector.shape_cast %62 : vector<8x1x32xf32> to vector<8x32xf32>
    %64 = vector.broadcast %61 : vector<8x1xf32> to vector<8x32xf32>
    %65 = arith.mulf %64, %63 : vector<8x32xf32>
    %66 = arith.addf %60, %65 : vector<8x32xf32>
    %67 = vector.extract_strided_slice %54 {offsets = [0, 2], sizes = [8, 1], strides = [1, 1]} : vector<8x4xf32> to vector<8x1xf32>
    %68 = vector.extract_strided_slice %55 {offsets = [0, 2, 0], sizes = [8, 1, 32], strides = [1, 1, 1]} : vector<8x4x32xf32> to vector<8x1x32xf32>
    %69 = vector.shape_cast %68 : vector<8x1x32xf32> to vector<8x32xf32>
    %70 = vector.broadcast %67 : vector<8x1xf32> to vector<8x32xf32>
    %71 = arith.mulf %70, %69 : vector<8x32xf32>
    %72 = arith.addf %66, %71 : vector<8x32xf32>
    %73 = vector.extract_strided_slice %54 {offsets = [0, 3], sizes = [8, 1], strides = [1, 1]} : vector<8x4xf32> to vector<8x1xf32>
    %74 = vector.extract_strided_slice %55 {offsets = [0, 3, 0], sizes = [8, 1, 32], strides = [1, 1, 1]} : vector<8x4x32xf32> to vector<8x1x32xf32>
    %75 = vector.shape_cast %74 : vector<8x1x32xf32> to vector<8x32xf32>
    %76 = vector.broadcast %73 : vector<8x1xf32> to vector<8x32xf32>
    %77 = arith.mulf %76, %75 : vector<8x32xf32>
    %78 = arith.addf %72, %77 : vector<8x32xf32>
    %c4_i32 = arith.constant 4 : i32
    %79 = vector.broadcast %c4_i32 : i32 to vector<8x1xi32>
    %80 = arith.minsi %9, %79 : vector<8x1xi32>
    %cst_38 = arith.constant 0.000000e+00 : f32
    %81 = vector.broadcast %cst_38 : f32 to vector<8x16xf32>
    %c0_i32 = arith.constant 0 : i32
    %82 = vector.broadcast %c0_i32 : i32 to vector<8x1xi32>
    %83 = arith.cmpi eq, %80, %82 : vector<8x1xi32>
    %84 = vector.extract_strided_slice %4 {offsets = [0, 0], sizes = [1, 16], strides = [1, 1]} : vector<5x16xf32> to vector<1x16xf32>
    %cst_39 = arith.constant 0.000000e+00 : f32
    %85 = vector.shape_cast %83 : vector<8x1xi1> to vector<8x1xi1>
    %86 = vector.broadcast %85 : vector<8x1xi1> to vector<8x16xi1>
    %87 = vector.shape_cast %84 : vector<1x16xf32> to vector<1x16xf32>
    %88 = vector.broadcast %87 : vector<1x16xf32> to vector<8x16xf32>
    %89 = vector.broadcast %cst_39 : f32 to vector<8x16xf32>
    %90 = arith.select %86, %88, %89 : vector<8x16xi1>, vector<8x16xf32>
    %91 = arith.addf %81, %90 : vector<8x16xf32>
    %c1_i32_40 = arith.constant 1 : i32
    %92 = vector.broadcast %c1_i32_40 : i32 to vector<8x1xi32>
    %93 = arith.cmpi eq, %80, %92 : vector<8x1xi32>
    %94 = vector.extract_strided_slice %4 {offsets = [1, 0], sizes = [1, 16], strides = [1, 1]} : vector<5x16xf32> to vector<1x16xf32>
    %cst_41 = arith.constant 0.000000e+00 : f32
    %95 = vector.shape_cast %93 : vector<8x1xi1> to vector<8x1xi1>
    %96 = vector.broadcast %95 : vector<8x1xi1> to vector<8x16xi1>
    %97 = vector.shape_cast %94 : vector<1x16xf32> to vector<1x16xf32>
    %98 = vector.broadcast %97 : vector<1x16xf32> to vector<8x16xf32>
    %99 = vector.broadcast %cst_41 : f32 to vector<8x16xf32>
    %100 = arith.select %96, %98, %99 : vector<8x16xi1>, vector<8x16xf32>
    %101 = arith.addf %91, %100 : vector<8x16xf32>
    %c2_i32 = arith.constant 2 : i32
    %102 = vector.broadcast %c2_i32 : i32 to vector<8x1xi32>
    %103 = arith.cmpi eq, %80, %102 : vector<8x1xi32>
    %104 = vector.extract_strided_slice %4 {offsets = [2, 0], sizes = [1, 16], strides = [1, 1]} : vector<5x16xf32> to vector<1x16xf32>
    %cst_42 = arith.constant 0.000000e+00 : f32
    %105 = vector.shape_cast %103 : vector<8x1xi1> to vector<8x1xi1>
    %106 = vector.broadcast %105 : vector<8x1xi1> to vector<8x16xi1>
    %107 = vector.shape_cast %104 : vector<1x16xf32> to vector<1x16xf32>
    %108 = vector.broadcast %107 : vector<1x16xf32> to vector<8x16xf32>
    %109 = vector.broadcast %cst_42 : f32 to vector<8x16xf32>
    %110 = arith.select %106, %108, %109 : vector<8x16xi1>, vector<8x16xf32>
    %111 = arith.addf %101, %110 : vector<8x16xf32>
    %c3_i32 = arith.constant 3 : i32
    %112 = vector.broadcast %c3_i32 : i32 to vector<8x1xi32>
    %113 = arith.cmpi eq, %80, %112 : vector<8x1xi32>
    %114 = vector.extract_strided_slice %4 {offsets = [3, 0], sizes = [1, 16], strides = [1, 1]} : vector<5x16xf32> to vector<1x16xf32>
    %cst_43 = arith.constant 0.000000e+00 : f32
    %115 = vector.shape_cast %113 : vector<8x1xi1> to vector<8x1xi1>
    %116 = vector.broadcast %115 : vector<8x1xi1> to vector<8x16xi1>
    %117 = vector.shape_cast %114 : vector<1x16xf32> to vector<1x16xf32>
    %118 = vector.broadcast %117 : vector<1x16xf32> to vector<8x16xf32>
    %119 = vector.broadcast %cst_43 : f32 to vector<8x16xf32>
    %120 = arith.select %116, %118, %119 : vector<8x16xi1>, vector<8x16xf32>
    %121 = arith.addf %111, %120 : vector<8x16xf32>
    %c4_i32_44 = arith.constant 4 : i32
    %122 = vector.broadcast %c4_i32_44 : i32 to vector<8x1xi32>
    %123 = arith.cmpi eq, %80, %122 : vector<8x1xi32>
    %124 = vector.extract_strided_slice %4 {offsets = [4, 0], sizes = [1, 16], strides = [1, 1]} : vector<5x16xf32> to vector<1x16xf32>
    %cst_45 = arith.constant 0.000000e+00 : f32
    %125 = vector.shape_cast %123 : vector<8x1xi1> to vector<8x1xi1>
    %126 = vector.broadcast %125 : vector<8x1xi1> to vector<8x16xi1>
    %127 = vector.shape_cast %124 : vector<1x16xf32> to vector<1x16xf32>
    %128 = vector.broadcast %127 : vector<1x16xf32> to vector<8x16xf32>
    %129 = vector.broadcast %cst_45 : f32 to vector<8x16xf32>
    %130 = arith.select %126, %128, %129 : vector<8x16xi1>, vector<8x16xf32>
    %131 = arith.addf %121, %130 : vector<8x16xf32>
    %c0_46 = arith.constant 0 : index
    %c0_47 = arith.constant 0 : index
    %c0_48 = arith.constant 0 : index
    %132 = vector.load %arg11[%c0_46, %c0_47, %c0_48] : memref<2x8x112xf32, #tpu.memory_space<vmem>>, vector<1x8x32xf32>
    %133 = vector.shape_cast %132 : vector<1x8x32xf32> to vector<8x32xf32>
    %134 = vector.shape_cast %22 : vector<8x32xf32> to vector<1x8x32xf32>
    tpu.vector_store %arg11[%c0_46, %c0_47, %c0_48], %134 {strides = array<i32>} : memref<2x8x112xf32, #tpu.memory_space<vmem>>, vector<1x8x32xf32>,
    %c0_49 = arith.constant 0 : index
    %c0_50 = arith.constant 0 : index
    %c32 = arith.constant 32 : index
    %135 = vector.load %arg11[%c0_49, %c0_50, %c32] : memref<2x8x112xf32, #tpu.memory_space<vmem>>, vector<1x8x32xf32>
    %136 = vector.shape_cast %135 : vector<1x8x32xf32> to vector<8x32xf32>
    %137 = vector.shape_cast %23 : vector<8x32xf32> to vector<1x8x32xf32>
    tpu.vector_store %arg11[%c0_49, %c0_50, %c32], %137 {strides = array<i32>} : memref<2x8x112xf32, #tpu.memory_space<vmem>>, vector<1x8x32xf32>,
    %c0_51 = arith.constant 0 : index
    %c0_52 = arith.constant 0 : index
    %c64 = arith.constant 64 : index
    %138 = vector.load %arg11[%c0_51, %c0_52, %c64] : memref<2x8x112xf32, #tpu.memory_space<vmem>>, vector<1x8x32xf32>
    %139 = vector.shape_cast %138 : vector<1x8x32xf32> to vector<8x32xf32>
    %140 = vector.shape_cast %78 : vector<8x32xf32> to vector<1x8x32xf32>
    tpu.vector_store %arg11[%c0_51, %c0_52, %c64], %140 {strides = array<i32>} : memref<2x8x112xf32, #tpu.memory_space<vmem>>, vector<1x8x32xf32>,
    %c0_53 = arith.constant 0 : index
    %c0_54 = arith.constant 0 : index
    %c96 = arith.constant 96 : index
    %141 = vector.load %arg11[%c0_53, %c0_54, %c96] : memref<2x8x112xf32, #tpu.memory_space<vmem>>, vector<1x8x16xf32>
    %142 = vector.shape_cast %141 : vector<1x8x16xf32> to vector<8x16xf32>
    %143 = vector.shape_cast %131 : vector<8x16xf32> to vector<1x8x16xf32>
    tpu.vector_store %arg11[%c0_53, %c0_54, %c96], %143 {strides = array<i32>} : memref<2x8x112xf32, #tpu.memory_space<vmem>>, vector<1x8x16xf32>,
    %c1 = arith.constant 1 : index
    %c0_55 = arith.constant 0 : index
    %c0_56 = arith.constant 0 : index
    %144 = vector.load %arg1[%c1, %c0_55, %c0_56] : memref<2x16x32xf32, #tpu.memory_space<vmem>>, vector<1x16x32xf32>
    %145 = vector.shape_cast %144 : vector<1x16x32xf32> to vector<16x32xf32>
    %c1_57 = arith.constant 1 : index
    %c0_58 = arith.constant 0 : index
    %c0_59 = arith.constant 0 : index
    %146 = vector.load %arg5[%c1_57, %c0_58, %c0_59] : memref<2x8x1xi32, #tpu.memory_space<vmem>>, vector<1x8x1xi32>
    %147 = vector.shape_cast %146 : vector<1x8x1xi32> to vector<8x1xi32>
    %c1_60 = arith.constant 1 : index
    %c0_61 = arith.constant 0 : index
    %c0_62 = arith.constant 0 : index
    %148 = vector.load %arg2[%c1_60, %c0_61, %c0_62] : memref<2x8x16xf32, #tpu.memory_space<vmem>>, vector<1x8x16xf32>
    %149 = vector.shape_cast %148 : vector<1x8x16xf32> to vector<8x16xf32>
    %c0_63 = arith.constant 0 : index
    %c0_64 = arith.constant 0 : index
    %150 = vector.load %arg12[%c0_63, %c0_64] : memref<48x16xf32, #tpu.memory_space<vmem>>, vector<8x16xf32>
    tpu.vector_store %arg12[%c0_63, %c0_64], %149 {strides = array<i32>} : memref<48x16xf32, #tpu.memory_space<vmem>>, vector<8x16xf32>,
    %c1_65 = arith.constant 1 : index
    %c0_66 = arith.constant 0 : index
    %c0_67 = arith.constant 0 : index
    %151 = vector.load %arg3[%c1_65, %c0_66, %c0_67] : memref<2x8x16xf32, #tpu.memory_space<vmem>>, vector<1x8x16xf32>
    %152 = vector.shape_cast %151 : vector<1x8x16xf32> to vector<8x16xf32>
    %c8_68 = arith.constant 8 : index
    %c0_69 = arith.constant 0 : index
    %153 = vector.load %arg12[%c8_68, %c0_69] : memref<48x16xf32, #tpu.memory_space<vmem>>, vector<8x16xf32>
    tpu.vector_store %arg12[%c8_68, %c0_69], %152 {strides = array<i32>} : memref<48x16xf32, #tpu.memory_space<vmem>>, vector<8x16xf32>,
    %c1_70 = arith.constant 1 : index
    %c0_71 = arith.constant 0 : index
    %c0_72 = arith.constant 0 : index
    %c0_73 = arith.constant 0 : index
    %154 = vector.load %arg4[%c1_70, %c0_71, %c0_72, %c0_73] : memref<2x8x4x16xf32, #tpu.memory_space<vmem>>, vector<1x8x4x16xf32>
    %155 = vector.shape_cast %154 : vector<1x8x4x16xf32> to vector<8x4x16xf32>
    %156 = vector.shape_cast %155 : vector<8x4x16xf32> to vector<32x16xf32>
    %c16_74 = arith.constant 16 : index
    %c0_75 = arith.constant 0 : index
    %157 = vector.load %arg12[%c16_74, %c0_75] : memref<48x16xf32, #tpu.memory_space<vmem>>, vector<32x16xf32>
    tpu.vector_store %arg12[%c16_74, %c0_75], %156 {strides = array<i32>} : memref<48x16xf32, #tpu.memory_space<vmem>>, vector<32x16xf32>,
    %c0_76 = arith.constant 0 : index
    %c0_77 = arith.constant 0 : index
    %158 = vector.load %arg12[%c0_76, %c0_77] : memref<48x16xf32, #tpu.memory_space<vmem>>, vector<48x16xf32>
    %cst_78 = arith.constant dense<0.000000e+00> : vector<48x32xf32>
    %159 = tpu.matmul %158, %145, %cst_78 {dimension_numbers = #tpu.dot_dimension_numbers<[1], [0], [0], [1], [0, 0, 1, 1], [], []>} : vector<48x16xf32>, vector<16x32xf32>, vector<48x32xf32> -> vector<48x32xf32>
    %160 = vector.extract_strided_slice %159 {offsets = [0, 0], sizes = [8, 32], strides = [1, 1]} : vector<48x32xf32> to vector<8x32xf32>
    %161 = vector.extract_strided_slice %159 {offsets = [8, 0], sizes = [8, 32], strides = [1, 1]} : vector<48x32xf32> to vector<8x32xf32>
    %162 = vector.extract_strided_slice %159 {offsets = [16, 0], sizes = [32, 32], strides = [1, 1]} : vector<48x32xf32> to vector<32x32xf32>
    %cst_79 = arith.constant dense<0.000000e+00> : vector<32x32xf32>
    %163 = tpu.matmul %162, %0, %cst_79 {dimension_numbers = #tpu.dot_dimension_numbers<[1], [0], [0], [1], [0, 0, 1, 1], [], []>} : vector<32x32xf32>, vector<32x32xf32>, vector<32x32xf32> -> vector<32x32xf32>
    %164 = vector.broadcast %1 : vector<1x32xf32> to vector<32x32xf32>
    %165 = arith.addf %163, %164 : vector<32x32xf32>
    %cst_80 = arith.constant 0.000000e+00 : f32
    %166 = vector.broadcast %cst_80 : f32 to vector<32x32xf32>
    %167 = arith.maximumf %165, %166 : vector<32x32xf32>
    %cst_81 = arith.constant dense<0.000000e+00> : vector<32x1xf32>
    %168 = tpu.matmul %167, %2, %cst_81 {dimension_numbers = #tpu.dot_dimension_numbers<[1], [0], [0], [1], [0, 0, 1, 1], [], []>} : vector<32x32xf32>, vector<32x1xf32>, vector<32x1xf32> -> vector<32x1xf32>
    %169 = vector.broadcast %3 : vector<1x1xf32> to vector<32x1xf32>
    %170 = arith.addf %168, %169 : vector<32x1xf32>
    %171 = vector.shape_cast %170 : vector<32x1xf32> to vector<8x4xf32>
    %c1_i32_82 = arith.constant 1 : i32
    %172 = vector.broadcast %c1_i32_82 : i32 to vector<8x1xi32>
    %173 = arith.maxsi %147, %172 : vector<8x1xi32>
    %174 = vector.broadcast %173 : vector<8x1xi32> to vector<8x4xi32>
    %175 = arith.cmpi slt, %5, %174 : vector<8x4xi32>
    %176 = arith.extui %175 : vector<8x4xi1> to vector<8x4xi32>
    %177 = arith.sitofp %176 : vector<8x4xi32> to vector<8x4xf32>
    %178 = arith.mulf %171, %177 : vector<8x4xf32>
    %cst_83 = arith.constant 0.000000e+00 : f32
    %179 = vector.broadcast %cst_83 : f32 to vector<8x4xf32>
    %180 = arith.cmpf one, %178, %179 : vector<8x4xf32>
    %cst_84 = arith.constant -8.99999948E+9 : f32
    %181 = vector.broadcast %cst_84 : f32 to vector<8x4xf32>
    %182 = arith.select %180, %178, %181 : vector<8x4xi1>, vector<8x4xf32>
    %cst_85 = arith.constant dense<0xFF800000> : vector<8xf32>
    %183 = vector.multi_reduction <maximumf>, %182, %cst_85 [1] : vector<8x4xf32> to vector<8xf32>
    %184 = vector.shape_cast %183 : vector<8xf32> to vector<8x1xf32>
    %185 = vector.broadcast %184 : vector<8x1xf32> to vector<8x4xf32>
    %186 = arith.subf %182, %185 : vector<8x4xf32>
    %187 = math.exp %186 : vector<8x4xf32>
    %cst_86 = arith.constant dense<0.000000e+00> : vector<8xf32>
    %188 = vector.multi_reduction <add>, %187, %cst_86 [1] : vector<8x4xf32> to vector<8xf32>
    %189 = vector.shape_cast %188 : vector<8xf32> to vector<8x1xf32>
    %190 = tpu.reciprocal %189 {approx = true} : vector<8x1xf32> -> vector<8x1xf32>
    %191 = vector.broadcast %190 : vector<8x1xf32> to vector<8x4xf32>
    %192 = arith.mulf %187, %191 : vector<8x4xf32>
    %193 = vector.shape_cast %162 : vector<32x32xf32> to vector<8x4x32xf32>
    %194 = vector.extract_strided_slice %192 {offsets = [0, 0], sizes = [8, 1], strides = [1, 1]} : vector<8x4xf32> to vector<8x1xf32>
    %195 = vector.extract_strided_slice %193 {offsets = [0, 0, 0], sizes = [8, 1, 32], strides = [1, 1, 1]} : vector<8x4x32xf32> to vector<8x1x32xf32>
    %196 = vector.shape_cast %195 : vector<8x1x32xf32> to vector<8x32xf32>
    %197 = vector.broadcast %194 : vector<8x1xf32> to vector<8x32xf32>
    %198 = arith.mulf %197, %196 : vector<8x32xf32>
    %199 = vector.extract_strided_slice %192 {offsets = [0, 1], sizes = [8, 1], strides = [1, 1]} : vector<8x4xf32> to vector<8x1xf32>
    %200 = vector.extract_strided_slice %193 {offsets = [0, 1, 0], sizes = [8, 1, 32], strides = [1, 1, 1]} : vector<8x4x32xf32> to vector<8x1x32xf32>
    %201 = vector.shape_cast %200 : vector<8x1x32xf32> to vector<8x32xf32>
    %202 = vector.broadcast %199 : vector<8x1xf32> to vector<8x32xf32>
    %203 = arith.mulf %202, %201 : vector<8x32xf32>
    %204 = arith.addf %198, %203 : vector<8x32xf32>
    %205 = vector.extract_strided_slice %192 {offsets = [0, 2], sizes = [8, 1], strides = [1, 1]} : vector<8x4xf32> to vector<8x1xf32>
    %206 = vector.extract_strided_slice %193 {offsets = [0, 2, 0], sizes = [8, 1, 32], strides = [1, 1, 1]} : vector<8x4x32xf32> to vector<8x1x32xf32>
    %207 = vector.shape_cast %206 : vector<8x1x32xf32> to vector<8x32xf32>
    %208 = vector.broadcast %205 : vector<8x1xf32> to vector<8x32xf32>
    %209 = arith.mulf %208, %207 : vector<8x32xf32>
    %210 = arith.addf %204, %209 : vector<8x32xf32>
    %211 = vector.extract_strided_slice %192 {offsets = [0, 3], sizes = [8, 1], strides = [1, 1]} : vector<8x4xf32> to vector<8x1xf32>
    %212 = vector.extract_strided_slice %193 {offsets = [0, 3, 0], sizes = [8, 1, 32], strides = [1, 1, 1]} : vector<8x4x32xf32> to vector<8x1x32xf32>
    %213 = vector.shape_cast %212 : vector<8x1x32xf32> to vector<8x32xf32>
    %214 = vector.broadcast %211 : vector<8x1xf32> to vector<8x32xf32>
    %215 = arith.mulf %214, %213 : vector<8x32xf32>
    %216 = arith.addf %210, %215 : vector<8x32xf32>
    %c4_i32_87 = arith.constant 4 : i32
    %217 = vector.broadcast %c4_i32_87 : i32 to vector<8x1xi32>
    %218 = arith.minsi %147, %217 : vector<8x1xi32>
    %cst_88 = arith.constant 0.000000e+00 : f32
    %219 = vector.broadcast %cst_88 : f32 to vector<8x16xf32>
    %c0_i32_89 = arith.constant 0 : i32
    %220 = vector.broadcast %c0_i32_89 : i32 to vector<8x1xi32>
    %221 = arith.cmpi eq, %218, %220 : vector<8x1xi32>
    %222 = vector.extract_strided_slice %4 {offsets = [0, 0], sizes = [1, 16], strides = [1, 1]} : vector<5x16xf32> to vector<1x16xf32>
    %cst_90 = arith.constant 0.000000e+00 : f32
    %223 = vector.shape_cast %221 : vector<8x1xi1> to vector<8x1xi1>
    %224 = vector.broadcast %223 : vector<8x1xi1> to vector<8x16xi1>
    %225 = vector.shape_cast %222 : vector<1x16xf32> to vector<1x16xf32>
    %226 = vector.broadcast %225 : vector<1x16xf32> to vector<8x16xf32>
    %227 = vector.broadcast %cst_90 : f32 to vector<8x16xf32>
    %228 = arith.select %224, %226, %227 : vector<8x16xi1>, vector<8x16xf32>
    %229 = arith.addf %219, %228 : vector<8x16xf32>
    %c1_i32_91 = arith.constant 1 : i32
    %230 = vector.broadcast %c1_i32_91 : i32 to vector<8x1xi32>
    %231 = arith.cmpi eq, %218, %230 : vector<8x1xi32>
    %232 = vector.extract_strided_slice %4 {offsets = [1, 0], sizes = [1, 16], strides = [1, 1]} : vector<5x16xf32> to vector<1x16xf32>
    %cst_92 = arith.constant 0.000000e+00 : f32
    %233 = vector.shape_cast %231 : vector<8x1xi1> to vector<8x1xi1>
    %234 = vector.broadcast %233 : vector<8x1xi1> to vector<8x16xi1>
    %235 = vector.shape_cast %232 : vector<1x16xf32> to vector<1x16xf32>
    %236 = vector.broadcast %235 : vector<1x16xf32> to vector<8x16xf32>
    %237 = vector.broadcast %cst_92 : f32 to vector<8x16xf32>
    %238 = arith.select %234, %236, %237 : vector<8x16xi1>, vector<8x16xf32>
    %239 = arith.addf %229, %238 : vector<8x16xf32>
    %c2_i32_93 = arith.constant 2 : i32
    %240 = vector.broadcast %c2_i32_93 : i32 to vector<8x1xi32>
    %241 = arith.cmpi eq, %218, %240 : vector<8x1xi32>
    %242 = vector.extract_strided_slice %4 {offsets = [2, 0], sizes = [1, 16], strides = [1, 1]} : vector<5x16xf32> to vector<1x16xf32>
    %cst_94 = arith.constant 0.000000e+00 : f32
    %243 = vector.shape_cast %241 : vector<8x1xi1> to vector<8x1xi1>
    %244 = vector.broadcast %243 : vector<8x1xi1> to vector<8x16xi1>
    %245 = vector.shape_cast %242 : vector<1x16xf32> to vector<1x16xf32>
    %246 = vector.broadcast %245 : vector<1x16xf32> to vector<8x16xf32>
    %247 = vector.broadcast %cst_94 : f32 to vector<8x16xf32>
    %248 = arith.select %244, %246, %247 : vector<8x16xi1>, vector<8x16xf32>
    %249 = arith.addf %239, %248 : vector<8x16xf32>
    %c3_i32_95 = arith.constant 3 : i32
    %250 = vector.broadcast %c3_i32_95 : i32 to vector<8x1xi32>
    %251 = arith.cmpi eq, %218, %250 : vector<8x1xi32>
    %252 = vector.extract_strided_slice %4 {offsets = [3, 0], sizes = [1, 16], strides = [1, 1]} : vector<5x16xf32> to vector<1x16xf32>
    %cst_96 = arith.constant 0.000000e+00 : f32
    %253 = vector.shape_cast %251 : vector<8x1xi1> to vector<8x1xi1>
    %254 = vector.broadcast %253 : vector<8x1xi1> to vector<8x16xi1>
    %255 = vector.shape_cast %252 : vector<1x16xf32> to vector<1x16xf32>
    %256 = vector.broadcast %255 : vector<1x16xf32> to vector<8x16xf32>
    %257 = vector.broadcast %cst_96 : f32 to vector<8x16xf32>
    %258 = arith.select %254, %256, %257 : vector<8x16xi1>, vector<8x16xf32>
    %259 = arith.addf %249, %258 : vector<8x16xf32>
    %c4_i32_97 = arith.constant 4 : i32
    %260 = vector.broadcast %c4_i32_97 : i32 to vector<8x1xi32>
    %261 = arith.cmpi eq, %218, %260 : vector<8x1xi32>
    %262 = vector.extract_strided_slice %4 {offsets = [4, 0], sizes = [1, 16], strides = [1, 1]} : vector<5x16xf32> to vector<1x16xf32>
    %cst_98 = arith.constant 0.000000e+00 : f32
    %263 = vector.shape_cast %261 : vector<8x1xi1> to vector<8x1xi1>
    %264 = vector.broadcast %263 : vector<8x1xi1> to vector<8x16xi1>
    %265 = vector.shape_cast %262 : vector<1x16xf32> to vector<1x16xf32>
    %266 = vector.broadcast %265 : vector<1x16xf32> to vector<8x16xf32>
    %267 = vector.broadcast %cst_98 : f32 to vector<8x16xf32>
    %268 = arith.select %264, %266, %267 : vector<8x16xi1>, vector<8x16xf32>
    %269 = arith.addf %259, %268 : vector<8x16xf32>
    %c1_99 = arith.constant 1 : index
    %c0_100 = arith.constant 0 : index
    %c0_101 = arith.constant 0 : index
    %270 = vector.load %arg11[%c1_99, %c0_100, %c0_101] : memref<2x8x112xf32, #tpu.memory_space<vmem>>, vector<1x8x32xf32>
    %271 = vector.shape_cast %270 : vector<1x8x32xf32> to vector<8x32xf32>
    %272 = vector.shape_cast %160 : vector<8x32xf32> to vector<1x8x32xf32>
    tpu.vector_store %arg11[%c1_99, %c0_100, %c0_101], %272 {strides = array<i32>} : memref<2x8x112xf32, #tpu.memory_space<vmem>>, vector<1x8x32xf32>,
    %c1_102 = arith.constant 1 : index
    %c0_103 = arith.constant 0 : index
    %c32_104 = arith.constant 32 : index
    %273 = vector.load %arg11[%c1_102, %c0_103, %c32_104] : memref<2x8x112xf32, #tpu.memory_space<vmem>>, vector<1x8x32xf32>
    %274 = vector.shape_cast %273 : vector<1x8x32xf32> to vector<8x32xf32>
    %275 = vector.shape_cast %161 : vector<8x32xf32> to vector<1x8x32xf32>
    tpu.vector_store %arg11[%c1_102, %c0_103, %c32_104], %275 {strides = array<i32>} : memref<2x8x112xf32, #tpu.memory_space<vmem>>, vector<1x8x32xf32>,
    %c1_105 = arith.constant 1 : index
    %c0_106 = arith.constant 0 : index
    %c64_107 = arith.constant 64 : index
    %276 = vector.load %arg11[%c1_105, %c0_106, %c64_107] : memref<2x8x112xf32, #tpu.memory_space<vmem>>, vector<1x8x32xf32>
    %277 = vector.shape_cast %276 : vector<1x8x32xf32> to vector<8x32xf32>
    %278 = vector.shape_cast %216 : vector<8x32xf32> to vector<1x8x32xf32>
    tpu.vector_store %arg11[%c1_105, %c0_106, %c64_107], %278 {strides = array<i32>} : memref<2x8x112xf32, #tpu.memory_space<vmem>>, vector<1x8x32xf32>,
    %c1_108 = arith.constant 1 : index
    %c0_109 = arith.constant 0 : index
    %c96_110 = arith.constant 96 : index
    %279 = vector.load %arg11[%c1_108, %c0_109, %c96_110] : memref<2x8x112xf32, #tpu.memory_space<vmem>>, vector<1x8x16xf32>
    %280 = vector.shape_cast %279 : vector<1x8x16xf32> to vector<8x16xf32>
    %281 = vector.shape_cast %269 : vector<8x16xf32> to vector<1x8x16xf32>
    tpu.vector_store %arg11[%c1_108, %c0_109, %c96_110], %281 {strides = array<i32>} : memref<2x8x112xf32, #tpu.memory_space<vmem>>, vector<1x8x16xf32>,
    return
  }
  func.func @transform_0(%arg0: i32) -> (i32, i32, i32) {
    %c0_i32 = arith.constant 0 : i32
    %c0_i32_0 = arith.constant 0 : i32
    %c0_i32_1 = arith.constant 0 : i32
    return %arg0, %c0_i32, %c0_i32_0 : i32, i32, i32
  }
  func.func @transform_1(%arg0: i32) -> (i32, i32, i32) {
    %c0_i32 = arith.constant 0 : i32
    %c0_i32_0 = arith.constant 0 : i32
    %c0_i32_1 = arith.constant 0 : i32
    return %arg0, %c0_i32, %c0_i32_0 : i32, i32, i32
  }
  func.func @transform_2(%arg0: i32) -> (i32, i32, i32) {
    %c0_i32 = arith.constant 0 : i32
    %c0_i32_0 = arith.constant 0 : i32
    %c0_i32_1 = arith.constant 0 : i32
    return %arg0, %c0_i32, %c0_i32_0 : i32, i32, i32
  }
  func.func @transform_3(%arg0: i32) -> (i32, i32, i32, i32) {
    %c0_i32 = arith.constant 0 : i32
    %c0_i32_0 = arith.constant 0 : i32
    %c0_i32_1 = arith.constant 0 : i32
    %c0_i32_2 = arith.constant 0 : i32
    return %arg0, %c0_i32, %c0_i32_0, %c0_i32_1 : i32, i32, i32, i32
  }
  func.func @transform_4(%arg0: i32) -> (i32, i32, i32) {
    %c0_i32 = arith.constant 0 : i32
    %c0_i32_0 = arith.constant 0 : i32
    %c0_i32_1 = arith.constant 0 : i32
    return %arg0, %c0_i32, %c0_i32_0 : i32, i32, i32
  }
  func.func @transform_5(%arg0: i32) -> (i32, i32) {
    %c0_i32 = arith.constant 0 : i32
    %c0_i32_0 = arith.constant 0 : i32
    %c0_i32_1 = arith.constant 0 : i32
    return %c0_i32, %c0_i32_0 : i32, i32
  }
  func.func @transform_6(%arg0: i32) -> (i32, i32) {
    %c0_i32 = arith.constant 0 : i32
    %c0_i32_0 = arith.constant 0 : i32
    %c0_i32_1 = arith.constant 0 : i32
    return %c0_i32, %c0_i32_0 : i32, i32
  }
  func.func @transform_7(%arg0: i32) -> (i32, i32) {
    %c0_i32 = arith.constant 0 : i32
    %c0_i32_0 = arith.constant 0 : i32
    %c0_i32_1 = arith.constant 0 : i32
    return %c0_i32, %c0_i32_0 : i32, i32
  }
  func.func @transform_8(%arg0: i32) -> (i32, i32) {
    %c0_i32 = arith.constant 0 : i32
    %c0_i32_0 = arith.constant 0 : i32
    %c0_i32_1 = arith.constant 0 : i32
    return %c0_i32, %c0_i32_0 : i32, i32
  }
  func.func @transform_9(%arg0: i32) -> (i32, i32) {
    %c0_i32 = arith.constant 0 : i32
    %c0_i32_0 = arith.constant 0 : i32
    %c0_i32_1 = arith.constant 0 : i32
    return %c0_i32, %c0_i32_0 : i32, i32
  }
  func.func @transform_10(%arg0: i32) -> (i32, i32, i32) {
    %c0_i32 = arith.constant 0 : i32
    %c0_i32_0 = arith.constant 0 : i32
    %c0_i32_1 = arith.constant 0 : i32
    return %arg0, %c0_i32, %c0_i32_0 : i32, i32, i32
  }
}

</mosaic_0001>

<llo_original>
// kernel: tpu_custom_call.1
$region0: #{tpu_custom_call.1}
  #allocation0 [shape = 'u32[]', space=smem, size = 0x4, offset = 0x4, fixed_abs, tag = 'smem constant byte address 0x4 - core index']
  #allocation1 [shape = 'u32[72,128]{1,0:T(1,128)}', space=vmem, size = 0x9000, scoped, tag = 'internal scratch']
  #allocation2 [shape = 'f32[48,16]{1,0:T(8,128)}', space=vmem, size = 0x6000, scoped, tag = 'scratch operand']
  #allocation3 [shape = 'f32[1,1]{1,0:T(1,128)S(1)}', space=vmem, size = 0x200, scoped, tag = 'scoped memory for tpu_custom_call.1']
  %s0 = inlined_call_operand.vmem [shape: f32[2,16,32], index: 0, kind: input, shape index: {}]
  %s1 = inlined_call_operand.vmem [shape: f32[2,8,16], index: 1, kind: input, shape index: {}]
  %s2 = inlined_call_operand.hbm [shape: f32[2,8,16], index: 2, kind: input, shape index: {}]
  %s3 = inlined_call_operand.hbm [shape: f32[2,8,4,16], index: 3, kind: input, shape index: {}]
  %s4 = inlined_call_operand.vmem [shape: s32[2,8,1], index: 4, kind: input, shape index: {}]
  %s5 = inlined_call_operand.hbm [shape: f32[32,32], index: 5, kind: input, shape index: {}]
  %s6 = inlined_call_operand.vmem [shape: f32[1,32], index: 6, kind: input, shape index: {}]
  %s7 = inlined_call_operand.vmem [shape: f32[32,1], index: 7, kind: input, shape index: {}]
  %s8 = inlined_call_operand.<no memory space> [shape: f32[1,1], index: 8, kind: input, shape index: {}]
  %s9 = inlined_call_operand.hbm [shape: f32[5,16], index: 9, kind: input, shape index: {}]
  %s10 = inlined_call_operand.hbm [shape: f32[2,8,112], index: 10, kind: output, shape index: {}]
  %s11 = sld [smem:[#allocation0]]
  $region66: #{tpu_custom_call.1} parent=0
    _
  %s13 = ssub.s32 1, %s11
  %s14 = scalar_select 0, %s13, %s11
  %v15 = vstv %s8
  %16 = vst [vmem:[#allocation3] sm:$0x1] %v15
  $region1: #{tpu_custom_call.1} parent=0
    #allocation4 [shape = 'u8[8192]{0}', space=vmem, size = 0x2000, scoped, tag = 'input window, operand 2, single buffered']
    #allocation5 [shape = 's32[1]{0}', space=sflag, size = 0x4, scoped, tag = 'scoped memory for tpu_custom_call.1']
    #allocation6 [shape = 's32[1]{0}', space=sflag, size = 0x4, scoped, tag = 'scoped memory for tpu_custom_call.1']
    #allocation7 [shape = 'u8[32768]{0}', space=vmem, size = 0x8000, scoped, tag = 'input window, operand 3, single buffered']
    #allocation8 [shape = 's32[1]{0}', space=sflag, size = 0x4, scoped, tag = 'scoped memory for tpu_custom_call.1']
    #allocation9 [shape = 'u8[16384]{0}', space=vmem, size = 0x4000, scoped, tag = 'input window, operand 5, single buffered']
    #allocation10 [shape = 'u8[4096]{0}', space=vmem, size = 0x1000, scoped, tag = 'input window, operand 9, single buffered']
    #allocation11 [shape = 's32[1]{0}', space=sflag, size = 0x4, scoped, tag = 'scoped memory for tpu_custom_call.1']
    #allocation12 [shape = 'u8[8192]{0}', space=vmem, size = 0x2000, scoped, tag = 'output window, operand 0, single buffered']
    %17 = vsyncpa [#allocation5], 0
    %18 = vsyncpa [#allocation8], 0
    %19 = vsyncpa [#allocation11], 0
    %20 = vsyncpa [#allocation6], 0
    // Predicated region
    $region2: #{tpu_custom_call.1} parent=1 // pred_check
      _
    $region3: #{tpu_custom_call.1} parent=1 // pred_check_branch
      %22 = sbr.rel (0) target = $region5
    $region4: #{tpu_custom_call.1} parent=1 // pred_region
      _
    $region5: #{tpu_custom_call.1} parent=1 // pred_fallthru
      _
    // Predicated region
    $region6: #{tpu_custom_call.1} parent=1 // pred_check
      _
    $region7: #{tpu_custom_call.1} parent=1 // pred_check_branch
      %24 = sbr.rel (0) target = $region9
    $region8: #{tpu_custom_call.1} parent=1 // pred_region
      _
    $region9: #{tpu_custom_call.1} parent=1 // pred_fallthru
      _
    // Predicated region
    $region10: #{tpu_custom_call.1} parent=1 // pred_check
      _
    $region11: #{tpu_custom_call.1} parent=1 // pred_check_branch
      %26 = sbr.rel (0) target = $region13
    $region12: #{tpu_custom_call.1} parent=1 // pred_region
      %28 = vsyncadd [#allocation5], 0
      %s29 = sshll.u32 %s2, 4
      %s30 = int_to_ptr.hbm [resolvable:$true] %s29
      %s31 = sshll.u32 [#allocation4], 4
      %s32 = int_to_ptr.vmem [resolvable:$true] %s31
      %37 = dma.hbm_to_vmem [thread:$0]  %s30, 256, %s32, [#allocation5], 128, 128, 8
    $region13: #{tpu_custom_call.1} parent=1 // pred_fallthru
      _
    // Predicated region
    $region14: #{tpu_custom_call.1} parent=1 // pred_check
      _
    $region15: #{tpu_custom_call.1} parent=1 // pred_check_branch
      %39 = sbr.rel (0) target = $region17
    $region16: #{tpu_custom_call.1} parent=1 // pred_region
      %41 = vsyncadd [#allocation8], 0
      %s42 = sshll.u32 %s3, 4
      %s43 = int_to_ptr.hbm [resolvable:$true] %s42
      %s44 = sshll.u32 [#allocation7], 4
      %s45 = int_to_ptr.vmem [resolvable:$true] %s44
      %50 = dma.hbm_to_vmem [thread:$0]  %s43, 1024, %s45, [#allocation8], 64, 64, 4
    $region17: #{tpu_custom_call.1} parent=1 // pred_fallthru
      _
    // Predicated region
    $region18: #{tpu_custom_call.1} parent=1 // pred_check
      _
    $region19: #{tpu_custom_call.1} parent=1 // pred_check_branch
      %52 = sbr.rel (0) target = $region21
    $region20: #{tpu_custom_call.1} parent=1 // pred_region
      _
    $region21: #{tpu_custom_call.1} parent=1 // pred_fallthru
      _
    // Predicated region
    $region22: #{tpu_custom_call.1} parent=1 // pred_check
      _
    $region23: #{tpu_custom_call.1} parent=1 // pred_check_branch
      %54 = sbr.rel (0) target = $region25
    $region24: #{tpu_custom_call.1} parent=1 // pred_region
      %56 = vsyncadd [#allocation8], 0
      %s57 = sshll.u32 %s5, 4
      %s58 = int_to_ptr.hbm [resolvable:$true] %s57
      %s59 = sshll.u32 [#allocation9], 4
      %s60 = int_to_ptr.vmem [resolvable:$true] %s59
      %65 = dma.hbm_to_vmem [thread:$0]  %s58, 512, %s60, [#allocation8], 128, 128, 8
    $region25: #{tpu_custom_call.1} parent=1 // pred_fallthru
      _
    // Predicated region
    $region26: #{tpu_custom_call.1} parent=1 // pred_check
      _
    $region27: #{tpu_custom_call.1} parent=1 // pred_check_branch
      %67 = sbr.rel (0) target = $region29
    $region28: #{tpu_custom_call.1} parent=1 // pred_region
      _
    $region29: #{tpu_custom_call.1} parent=1 // pred_fallthru
      _
    // Predicated region
    $region30: #{tpu_custom_call.1} parent=1 // pred_check
      _
    $region31: #{tpu_custom_call.1} parent=1 // pred_check_branch
      %69 = sbr.rel (0) target = $region33
    $region32: #{tpu_custom_call.1} parent=1 // pred_region
      _
    $region33: #{tpu_custom_call.1} parent=1 // pred_fallthru
      _
    // Predicated region
    $region34: #{tpu_custom_call.1} parent=1 // pred_check
      _
    $region35: #{tpu_custom_call.1} parent=1 // pred_check_branch
      %71 = sbr.rel (0) target = $region37
    $region36: #{tpu_custom_call.1} parent=1 // pred_region
      _
    $region37: #{tpu_custom_call.1} parent=1 // pred_fallthru
      _
    // Predicated region
    $region38: #{tpu_custom_call.1} parent=1 // pred_check
      _
    $region39: #{tpu_custom_call.1} parent=1 // pred_check_branch
      %73 = sbr.rel (0) target = $region41
    $region40: #{tpu_custom_call.1} parent=1 // pred_region
      %75 = vsyncadd [#allocation11], 0
      %s77 = sshll.u32 %s9, 4
      %s78 = int_to_ptr.hbm [resolvable:$true] %s77
      %s79 = sshll.u32 [#allocation10], 4
      %s80 = int_to_ptr.vmem [resolvable:$true] %s79
      %82 = dma.hbm_to_vmem [thread:$0]  %s78, 128, %s80, [#allocation11]
    $region41: #{tpu_custom_call.1} parent=1 // pred_fallthru
      _
    // Predicated region
    $region42: #{tpu_custom_call.1} parent=1 // pred_check
      _
    $region43: #{tpu_custom_call.1} parent=1 // pred_check_branch
      %84 = sbr.rel (0) target = $region45
    $region44: #{tpu_custom_call.1} parent=1 // pred_region
      %86 = dma.done [#allocation5], 256
    $region45: #{tpu_custom_call.1} parent=1 // pred_fallthru
      _
    // Predicated region
    $region46: #{tpu_custom_call.1} parent=1 // pred_check
      _
    $region47: #{tpu_custom_call.1} parent=1 // pred_check_branch
      %88 = sbr.rel (0) target = $region49
    $region48: #{tpu_custom_call.1} parent=1 // pred_region
      %90 = dma.done [#allocation8], 1024
    $region49: #{tpu_custom_call.1} parent=1 // pred_fallthru
      _
    // Predicated region
    $region50: #{tpu_custom_call.1} parent=1 // pred_check
      _
    $region51: #{tpu_custom_call.1} parent=1 // pred_check_branch
      %92 = sbr.rel (0) target = $region53
    $region52: #{tpu_custom_call.1} parent=1 // pred_region
      %94 = dma.done [#allocation8], 512
    $region53: #{tpu_custom_call.1} parent=1 // pred_fallthru
      _
    // Predicated region
    $region54: #{tpu_custom_call.1} parent=1 // pred_check
      _
    $region55: #{tpu_custom_call.1} parent=1 // pred_check_branch
      %96 = sbr.rel (0) target = $region57
    $region56: #{tpu_custom_call.1} parent=1 // pred_region
      %98 = dma.done [#allocation11], 128
    $region57: #{tpu_custom_call.1} parent=1 // pred_fallthru
      _
    %v99 = vld [vmem:[#allocation9] sm:$0xff]
    %v100 = vld [vmem:[#allocation9 + $0x8] sm:$0xff]
    %v101 = vld [vmem:[#allocation9 + $0x10] sm:$0xff]
    %v102 = vld [vmem:[#allocation9 + $0x18] sm:$0xff]
    %v103 = vld [vmem:[%s6] sm:$0x1]
    %v104 = vld [vmem:[%s7] sm:$0xff]
    %v105 = vld [vmem:[%s7 + $0x8] sm:$0xff]
    %v106 = vld [vmem:[%s7 + $0x10] sm:$0xff]
    %v107 = vld [vmem:[%s7 + $0x18] sm:$0xff]
    %v108 = vld [vmem:[#allocation3] sm:$0x1]
    %v109 = vld [vmem:[#allocation10] sm:$0x1f]
    %v110 = vlaneseq
    %v111 = vand.u32 %v110, 127
    %v112 = vld [vmem:[%s0] sm:$0xff]
    %v113 = vld [vmem:[%s0 + $0x8] sm:$0xff]
    %v114 = vld [vmem:[%s4] sm:$0xff]
    %v115 = vld [vmem:[%s1] sm:$0xff]
    %vm116 = vcmask 130048
    %117 = vst.msk [vmem:[#allocation2] sm:$0xff] %vm116, %v115
    %v118 = vld [vmem:[#allocation4] sm:$0xff]
    %119 = vst.msk [vmem:[#allocation2 + $0x8] sm:$0xff] %vm116, %v118
    %v120 = vld [vmem:[#allocation7] sm:$0xf]
    %v121 = vld [vmem:[#allocation7 + $0x4] sm:$0xf]
    %v122 = vld [vmem:[#allocation7 + $0x8] sm:$0xf]
    %v123 = vld [vmem:[#allocation7 + $0xc] sm:$0xf]
    %v124 = vld [vmem:[#allocation7 + $0x10] sm:$0xf]
    %v125 = vld [vmem:[#allocation7 + $0x14] sm:$0xf]
    %v126 = vld [vmem:[#allocation7 + $0x18] sm:$0xf]
    %v127 = vld [vmem:[#allocation7 + $0x1c] sm:$0xf]
    %136 = vst [vmem:[#allocation1] ss:$2 sm:$0xff] %v120
    %s137 = scalar_lea.vmem [#allocation1], 1
    %138 = vst [vmem:[%s137] ss:$2 sm:$0xff] %v121
    %s139 = scalar_lea.vmem [#allocation1], 16
    %140 = vst [vmem:[%s139] ss:$2 sm:$0xff] %v122
    %s141 = scalar_lea.vmem [#allocation1], 17
    %142 = vst [vmem:[%s141] ss:$2 sm:$0xff] %v123
    %s143 = scalar_lea.vmem [#allocation1], 32
    %144 = vst [vmem:[%s143] ss:$2 sm:$0xff] %v124
    %s145 = scalar_lea.vmem [#allocation1], 33
    %146 = vst [vmem:[%s145] ss:$2 sm:$0xff] %v125
    %s147 = scalar_lea.vmem [#allocation1], 48
    %148 = vst [vmem:[%s147] ss:$2 sm:$0xff] %v126
    %s149 = scalar_lea.vmem [#allocation1], 49
    %150 = vst [vmem:[%s149] ss:$2 sm:$0xff] %v127
    %v151 = vld.sshfl [vmem:[#allocation1] sm:$0xff pattern:$0x75316420]
    %v152 = vld.sshfl [vmem:[#allocation1 + $0x10] sm:$0xff pattern:$0x75316420]
    %v153 = vld.sshfl [vmem:[#allocation1 + $0x20] sm:$0xff pattern:$0x75316420]
    %v154 = vld.sshfl [vmem:[#allocation1 + $0x30] sm:$0xff pattern:$0x75316420]
    %159 = vst.msk [vmem:[#allocation2 + $0x10] sm:$0xff] %vm116, %v151
    %160 = vst.msk [vmem:[#allocation2 + $0x18] sm:$0xff] %vm116, %v152
    %161 = vst.msk [vmem:[#allocation2 + $0x20] sm:$0xff] %vm116, %v153
    %162 = vst.msk [vmem:[#allocation2 + $0x28] sm:$0xff] %vm116, %v154
    %v163 = vld [vmem:[#allocation2] sm:$0xff]
    %v164 = vld [vmem:[#allocation2 + $0x8] sm:$0xff]
    %v165 = vld [vmem:[#allocation2 + $0x10] sm:$0xff]
    %v166 = vld [vmem:[#allocation2 + $0x18] sm:$0xff]
    %v167 = vld [vmem:[#allocation2 + $0x20] sm:$0xff]
    %v168 = vld [vmem:[#allocation2 + $0x28] sm:$0xff]
    %v170 = vsel %vm116, %v163, 0
    %v173 = vsel %vm116, %v164, 0
    %v176 = vsel %vm116, %v165, 0
    %v179 = vsel %vm116, %v166, 0
    %v182 = vsel %vm116, %v167, 0
    %v185 = vsel %vm116, %v168, 0
    %187 = vmatpush.msra.mxu0 0.0
    %188 = vmatpush.msra.mxu0 0.0
    %189 = vmatpush.msra.mxu0 0.0
    %190 = vmatpush.msra.mxu0 0.0
    %191 = vmatpush.msra.mxu0 0.0
    %192 = vmatpush.msra.mxu0 0.0
    %193 = vmatpush.msra.mxu0 0.0
    %194 = vmatpush.msra.mxu0 0.0
    %195 = vmatpush.msra.mxu0 0.0
    %196 = vmatpush.msra.mxu0 0.0
    %197 = vmatpush.msra.mxu0 0.0
    %198 = vmatpush.msra.mxu0 0.0
    %199 = vmatpush.msra.mxu0 0.0
    %200 = vmatpush.msra.mxu0 0.0
    %201 = vmatpush.msra.mxu0 %v113
    %202 = vmatpush.msra.mxu0 %v112
    %203 = vmatmul.f32.gmra.mxu0 %v170
    %v204 = vpop.f32.mrf.mxu0
    %v205 = vadd.f32 0.0, %v204
    %206 = vmatmul.f32.gmra.mxu0 %v173
    %v207 = vpop.f32.mrf.mxu0
    %v208 = vadd.f32 0.0, %v207
    %209 = vmatmul.f32.gmra.mxu0 %v176
    %v210 = vpop.f32.mrf.mxu0
    %v211 = vadd.f32 0.0, %v210
    %212 = vmatmul.f32.gmra.mxu0 %v179
    %v213 = vpop.f32.mrf.mxu0
    %v214 = vadd.f32 0.0, %v213
    %215 = vmatmul.f32.gmra.mxu0 %v182
    %v216 = vpop.f32.mrf.mxu0
    %v217 = vadd.f32 0.0, %v216
    %218 = vmatmul.f32.gmra.mxu0 %v185
    %v219 = vpop.f32.mrf.mxu0
    %v220 = vadd.f32 0.0, %v219
    %221 = vdwg.mxu0
    %v223 = vperm.slane %v103, 0
    %vm225 = vcmask 261120
    %v227 = vsel %vm225, %v211, 0
    %v230 = vsel %vm225, %v214, 0
    %v233 = vsel %vm225, %v217, 0
    %v236 = vsel %vm225, %v220, 0
    %238 = vmatpush.msra.mxu0 0.0
    %239 = vmatpush.msra.mxu0 0.0
    %240 = vmatpush.msra.mxu0 0.0
    %241 = vmatpush.msra.mxu0 0.0
    %242 = vmatpush.msra.mxu0 0.0
    %243 = vmatpush.msra.mxu0 0.0
    %244 = vmatpush.msra.mxu0 0.0
    %245 = vmatpush.msra.mxu0 0.0
    %246 = vmatpush.msra.mxu0 0.0
    %247 = vmatpush.msra.mxu0 0.0
    %248 = vmatpush.msra.mxu0 0.0
    %249 = vmatpush.msra.mxu0 0.0
    %250 = vmatpush.msra.mxu0 %v102
    %251 = vmatpush.msra.mxu0 %v101
    %252 = vmatpush.msra.mxu0 %v100
    %253 = vmatpush.msra.mxu0 %v99
    %254 = vmatmul.f32.gmra.mxu0 %v227
    %v255 = vpop.f32.mrf.mxu0
    %v256 = vadd.f32 %v223, %v255
    %257 = vmatmul.f32.gmra.mxu0 %v230
    %v258 = vpop.f32.mrf.mxu0
    %v259 = vadd.f32 %v223, %v258
    %260 = vmatmul.f32.gmra.mxu0 %v233
    %v261 = vpop.f32.mrf.mxu0
    %v262 = vadd.f32 %v223, %v261
    %263 = vmatmul.f32.gmra.mxu0 %v236
    %v264 = vpop.f32.mrf.mxu0
    %v265 = vadd.f32 %v223, %v264
    %266 = vdwg.mxu0
    %v267 = vmax.f32 %v256, 0.0
    %v268 = vmax.f32 %v259, 0.0
    %v269 = vmax.f32 %v262, 0.0
    %v270 = vmax.f32 %v265, 0.0
    %v272 = vperm.slane %v108, 0
    %v275 = vsel %vm225, %v267, 0
    %v278 = vsel %vm225, %v268, 0
    %v281 = vsel %vm225, %v269, 0
    %v284 = vsel %vm225, %v270, 0
    %286 = vmatpush.msra.mxu0 0.0
    %287 = vmatpush.msra.mxu0 0.0
    %288 = vmatpush.msra.mxu0 0.0
    %289 = vmatpush.msra.mxu0 0.0
    %290 = vmatpush.msra.mxu0 0.0
    %291 = vmatpush.msra.mxu0 0.0
    %292 = vmatpush.msra.mxu0 0.0
    %293 = vmatpush.msra.mxu0 0.0
    %294 = vmatpush.msra.mxu0 0.0
    %295 = vmatpush.msra.mxu0 0.0
    %296 = vmatpush.msra.mxu0 0.0
    %297 = vmatpush.msra.mxu0 0.0
    %298 = vmatpush.msra.mxu0 %v107
    %299 = vmatpush.msra.mxu0 %v106
    %300 = vmatpush.msra.mxu0 %v105
    %301 = vmatpush.msra.mxu0 %v104
    %302 = vmatmul.f32.gmra.mxu0 %v275
    %v303 = vpop.f32.mrf.mxu0
    %v304 = vadd.f32 %v272, %v303
    %305 = vmatmul.f32.gmra.mxu0 %v278
    %v306 = vpop.f32.mrf.mxu0
    %v307 = vadd.f32 %v272, %v306
    %308 = vmatmul.f32.gmra.mxu0 %v281
    %v309 = vpop.f32.mrf.mxu0
    %v310 = vadd.f32 %v272, %v309
    %311 = vmatmul.f32.gmra.mxu0 %v284
    %v312 = vpop.f32.mrf.mxu0
    %v313 = vadd.f32 %v272, %v312
    %314 = vdwg.mxu0
    %v319 = vrot.slane %v304, 4
    %v320 = vrot.slane %v307, 4
    %v321 = vrot.slane %v310, 4
    %v322 = vrot.slane %v313, 4
    %vm327 = vcmp.gt.s32.totalorder %v114, 1
    %v328 = vsel %vm327, %v114, 1
    %329 = vset.pattern.permute.xlu0 0
    %330 = vperm.xlu0 %329, %v328
    %v331 = vpop.permute.xlu0 %330
    %vm332 = vcmp.lt.s32.totalorder %v111, %v331
    %v333 = vsel %vm332, 1, 0
    %v334 = vcvt.s32.f32 %v333
    %v336 = vrot.slane %v334, 4
    %337 = vst [vmem:[#allocation1] ss:$2 sm:$0xff] %v334
    %s338 = scalar_lea.vmem [#allocation1], 1
    %339 = vst [vmem:[%s338] ss:$2 sm:$0xff] %v336
    %v340 = vld.sshfl [vmem:[#allocation1] sm:$0xff pattern:$0x75316420]
    %v341 = vperm.slane %v340, 0
    %v342 = vlaneseq
    %v343 = vshrl.u32 %v342, 7
    %345 = vset.pattern.permute.xlu0 %v343
    %346 = vperm.xlu0 %345, %v341
    %v347 = vpop.permute.xlu0 %346
    %v348 = vperm.slane %v340, 1
    %v349 = vlaneseq
    %v350 = vshrl.u32 %v349, 7
    %352 = vset.pattern.permute.xlu0 %v350
    %353 = vperm.xlu0 %352, %v348
    %v354 = vpop.permute.xlu0 %353
    %v355 = vperm.slane %v340, 2
    %v356 = vlaneseq
    %v357 = vshrl.u32 %v356, 7
    %359 = vset.pattern.permute.xlu0 %v357
    %360 = vperm.xlu0 %359, %v355
    %v361 = vpop.permute.xlu0 %360
    %v362 = vperm.slane %v340, 3
    %v363 = vlaneseq
    %v364 = vshrl.u32 %v363, 7
    %366 = vset.pattern.permute.xlu0 %v364
    %367 = vperm.xlu0 %366, %v362
    %v368 = vpop.permute.xlu0 %367
    %v369 = vperm.slane %v340, 4
    %v370 = vlaneseq
    %v371 = vshrl.u32 %v370, 7
    %373 = vset.pattern.permute.xlu0 %v371
    %374 = vperm.xlu0 %373, %v369
    %v375 = vpop.permute.xlu0 %374
    %v376 = vperm.slane %v340, 5
    %v377 = vlaneseq
    %v378 = vshrl.u32 %v377, 7
    %380 = vset.pattern.permute.xlu0 %v378
    %381 = vperm.xlu0 %380, %v376
    %v382 = vpop.permute.xlu0 %381
    %v383 = vperm.slane %v340, 6
    %v384 = vlaneseq
    %v385 = vshrl.u32 %v384, 7
    %387 = vset.pattern.permute.xlu0 %v385
    %388 = vperm.xlu0 %387, %v383
    %v389 = vpop.permute.xlu0 %388
    %v390 = vperm.slane %v340, 7
    %v391 = vlaneseq
    %v392 = vshrl.u32 %v391, 7
    %394 = vset.pattern.permute.xlu0 %v392
    %395 = vperm.xlu0 %394, %v390
    %v396 = vpop.permute.xlu0 %395
    %v405 = vmul.f32 %v304, %v347
    %v406 = vmul.f32 %v319, %v354
    %v407 = vmul.f32 %v307, %v361
    %v408 = vmul.f32 %v320, %v368
    %v409 = vmul.f32 %v310, %v375
    %v410 = vmul.f32 %v321, %v382
    %v411 = vmul.f32 %v313, %v389
    %v412 = vmul.f32 %v322, %v396
    %vm413 = vcmp.ne.f32.partialorder %v405, 0.0
    %vm414 = vcmp.ne.f32.partialorder %v406, 0.0
    %vm415 = vcmp.ne.f32.partialorder %v407, 0.0
    %vm416 = vcmp.ne.f32.partialorder %v408, 0.0
    %vm417 = vcmp.ne.f32.partialorder %v409, 0.0
    %vm418 = vcmp.ne.f32.partialorder %v410, 0.0
    %vm419 = vcmp.ne.f32.partialorder %v411, 0.0
    %vm420 = vcmp.ne.f32.partialorder %v412, 0.0
    %v421 = vsel %vm413, %v405, -8.999999e+09
    %v422 = vsel %vm414, %v406, -8.999999e+09
    %v423 = vsel %vm415, %v407, -8.999999e+09
    %v424 = vsel %vm416, %v408, -8.999999e+09
    %v425 = vsel %vm417, %v409, -8.999999e+09
    %v426 = vsel %vm418, %v410, -8.999999e+09
    %v427 = vsel %vm419, %v411, -8.999999e+09
    %v428 = vsel %vm420, %v412, -8.999999e+09
    %437 = vst [vmem:[#allocation1] ss:$2 sm:$0xff] %v421
    %v438 = vld.sshfl [vmem:[#allocation1] sm:$0xff pattern:$0x75316420]
    %s439 = scalar_lea.vmem [#allocation1], 16
    %440 = vst [vmem:[%s439] ss:$2 sm:$0xff] %v422
    %v441 = vld.sshfl [vmem:[#allocation1 + $0x10] sm:$0xff pattern:$0x75316420]
    %s442 = scalar_lea.vmem [#allocation1], 32
    %443 = vst [vmem:[%s442] ss:$2 sm:$0xff] %v423
    %v444 = vld.sshfl [vmem:[#allocation1 + $0x20] sm:$0xff pattern:$0x75316420]
    %s445 = scalar_lea.vmem [#allocation1], 48
    %446 = vst [vmem:[%s445] ss:$2 sm:$0xff] %v424
    %v447 = vld.sshfl [vmem:[#allocation1 + $0x30] sm:$0xff pattern:$0x75316420]
    %448 = vst [vmem:[#allocation1] ss:$2 sm:$0xff] %v425
    %v449 = vld.sshfl [vmem:[#allocation1] sm:$0xff pattern:$0x75316420]
    %450 = vst [vmem:[%s439] ss:$2 sm:$0xff] %v426
    %v451 = vld.sshfl [vmem:[#allocation1 + $0x10] sm:$0xff pattern:$0x75316420]
    %452 = vst [vmem:[%s442] ss:$2 sm:$0xff] %v427
    %v453 = vld.sshfl [vmem:[#allocation1 + $0x20] sm:$0xff pattern:$0x75316420]
    %454 = vst [vmem:[%s445] ss:$2 sm:$0xff] %v428
    %v455 = vld.sshfl [vmem:[#allocation1 + $0x30] sm:$0xff pattern:$0x75316420]
    %456 = vset.pattern.permute.xlu0 0
    %457 = vperm.xlu0 %456, %v438
    %v458 = vpop.permute.xlu0 %457
    %459 = vset.pattern.permute.xlu0 0
    %460 = vperm.xlu0 %459, %v441
    %v461 = vpop.permute.xlu0 %460
    %462 = vset.pattern.permute.xlu0 0
    %463 = vperm.xlu0 %462, %v444
    %v464 = vpop.permute.xlu0 %463
    %465 = vset.pattern.permute.xlu0 0
    %466 = vperm.xlu0 %465, %v447
    %v467 = vpop.permute.xlu0 %466
    %468 = vset.pattern.permute.xlu0 0
    %469 = vperm.xlu0 %468, %v449
    %v470 = vpop.permute.xlu0 %469
    %471 = vset.pattern.permute.xlu0 0
    %472 = vperm.xlu0 %471, %v451
    %v473 = vpop.permute.xlu0 %472
    %474 = vset.pattern.permute.xlu0 0
    %475 = vperm.xlu0 %474, %v453
    %v476 = vpop.permute.xlu0 %475
    %477 = vset.pattern.permute.xlu0 0
    %478 = vperm.xlu0 %477, %v455
    %v479 = vpop.permute.xlu0 %478
    %v480 = vperm.slane %v458, %v111
    %v481 = vperm.slane %v461, %v111
    %v482 = vperm.slane %v464, %v111
    %v483 = vperm.slane %v467, %v111
    %v484 = vperm.slane %v470, %v111
    %v485 = vperm.slane %v473, %v111
    %v486 = vperm.slane %v476, %v111
    %v487 = vperm.slane %v479, %v111
    %vm488 = vcmask 1041409
    %v489 = vsel %vm488, %v481, %v480
    %vm490 = vcmask 1042434
    %v491 = vsel %vm490, %v482, %v489
    %vm492 = vcmask 1043459
    %v493 = vsel %vm492, %v483, %v491
    %vm494 = vcmask 1044484
    %v495 = vsel %vm494, %v484, %v493
    %vm496 = vcmask 1045509
    %v497 = vsel %vm496, %v485, %v495
    %vm498 = vcmask 1046534
    %v499 = vsel %vm498, %v486, %v497
    %vm500 = vcmask 1047559
    %v501 = vsel %vm500, %v487, %v499
    %vm503 = vcmask 31744
    %v504 = vsel %vm503, %v501, -inf
    %505 = vmax.xlane.f32.xlu0 %v504
    %v506 = vpop.xlane.xlu0 %505
    %v509 = vunpack.c.l.s4 839922192
    %v510 = vunpack.c.0.s8 %v509
    %v511 = vperm.slane %v506, %v510
    %v513 = vunpack.c.l.s4 1985246804
    %v514 = vunpack.c.0.s8 %v513
    %v515 = vperm.slane %v506, %v514
    %516 = vst [vmem:[#allocation1] ss:$2 sm:$0xff] %v511
    %s517 = scalar_lea.vmem [#allocation1], 1
    %518 = vst [vmem:[%s517] ss:$2 sm:$0xff] %v515
    %v519 = vld.sshfl [vmem:[#allocation1] sm:$0xff pattern:$0x75316420]
    %v520 = vperm.slane %v519, 0
    %v521 = vlaneseq
    %v522 = vshrl.u32 %v521, 7
    %524 = vset.pattern.permute.xlu0 %v522
    %525 = vperm.xlu0 %524, %v520
    %v526 = vpop.permute.xlu0 %525
    %v527 = vperm.slane %v519, 1
    %v528 = vlaneseq
    %v529 = vshrl.u32 %v528, 7
    %531 = vset.pattern.permute.xlu0 %v529
    %532 = vperm.xlu0 %531, %v527
    %v533 = vpop.permute.xlu0 %532
    %v534 = vperm.slane %v519, 2
    %v535 = vlaneseq
    %v536 = vshrl.u32 %v535, 7
    %538 = vset.pattern.permute.xlu0 %v536
    %539 = vperm.xlu0 %538, %v534
    %v540 = vpop.permute.xlu0 %539
    %v541 = vperm.slane %v519, 3
    %v542 = vlaneseq
    %v543 = vshrl.u32 %v542, 7
    %545 = vset.pattern.permute.xlu0 %v543
    %546 = vperm.xlu0 %545, %v541
    %v547 = vpop.permute.xlu0 %546
    %v548 = vperm.slane %v519, 4
    %v549 = vlaneseq
    %v550 = vshrl.u32 %v549, 7
    %552 = vset.pattern.permute.xlu0 %v550
    %553 = vperm.xlu0 %552, %v548
    %v554 = vpop.permute.xlu0 %553
    %v555 = vperm.slane %v519, 5
    %v556 = vlaneseq
    %v557 = vshrl.u32 %v556, 7
    %559 = vset.pattern.permute.xlu0 %v557
    %560 = vperm.xlu0 %559, %v555
    %v561 = vpop.permute.xlu0 %560
    %v562 = vperm.slane %v519, 6
    %v563 = vlaneseq
    %v564 = vshrl.u32 %v563, 7
    %566 = vset.pattern.permute.xlu0 %v564
    %567 = vperm.xlu0 %566, %v562
    %v568 = vpop.permute.xlu0 %567
    %v569 = vperm.slane %v519, 7
    %v570 = vlaneseq
    %v571 = vshrl.u32 %v570, 7
    %573 = vset.pattern.permute.xlu0 %v571
    %574 = vperm.xlu0 %573, %v569
    %v575 = vpop.permute.xlu0 %574
    %v584 = vsub.f32 %v421, %v526
    %v585 = vsub.f32 %v422, %v533
    %v586 = vsub.f32 %v423, %v540
    %v587 = vsub.f32 %v424, %v547
    %v588 = vsub.f32 %v425, %v554
    %v589 = vsub.f32 %v426, %v561
    %v590 = vsub.f32 %v427, %v568
    %v591 = vsub.f32 %v428, %v575
    %v592 = vmul.f32 %v584, 1.442695
    %v593 = vpow.pop %v592
    %v594 = vmul.f32 %v585, 1.442695
    %v595 = vpow.pop %v594
    %v596 = vmul.f32 %v586, 1.442695
    %v597 = vpow.pop %v596
    %v598 = vmul.f32 %v587, 1.442695
    %v599 = vpow.pop %v598
    %v600 = vmul.f32 %v588, 1.442695
    %v601 = vpow.pop %v600
    %v602 = vmul.f32 %v589, 1.442695
    %v603 = vpow.pop %v602
    %v604 = vmul.f32 %v590, 1.442695
    %v605 = vpow.pop %v604
    %v606 = vmul.f32 %v591, 1.442695
    %v607 = vpow.pop %v606
    %616 = vst [vmem:[#allocation1] ss:$2 sm:$0xff] %v593
    %v617 = vld.sshfl [vmem:[#allocation1] sm:$0xff pattern:$0x75316420]
    %s618 = scalar_lea.vmem [#allocation1], 16
    %619 = vst [vmem:[%s618] ss:$2 sm:$0xff] %v595
    %v620 = vld.sshfl [vmem:[#allocation1 + $0x10] sm:$0xff pattern:$0x75316420]
    %s621 = scalar_lea.vmem [#allocation1], 32
    %622 = vst [vmem:[%s621] ss:$2 sm:$0xff] %v597
    %v623 = vld.sshfl [vmem:[#allocation1 + $0x20] sm:$0xff pattern:$0x75316420]
    %s624 = scalar_lea.vmem [#allocation1], 48
    %625 = vst [vmem:[%s624] ss:$2 sm:$0xff] %v599
    %v626 = vld.sshfl [vmem:[#allocation1 + $0x30] sm:$0xff pattern:$0x75316420]
    %627 = vst [vmem:[#allocation1] ss:$2 sm:$0xff] %v601
    %v628 = vld.sshfl [vmem:[#allocation1] sm:$0xff pattern:$0x75316420]
    %629 = vst [vmem:[%s618] ss:$2 sm:$0xff] %v603
    %v630 = vld.sshfl [vmem:[#allocation1 + $0x10] sm:$0xff pattern:$0x75316420]
    %631 = vst [vmem:[%s621] ss:$2 sm:$0xff] %v605
    %v632 = vld.sshfl [vmem:[#allocation1 + $0x20] sm:$0xff pattern:$0x75316420]
    %633 = vst [vmem:[%s624] ss:$2 sm:$0xff] %v607
    %v634 = vld.sshfl [vmem:[#allocation1 + $0x30] sm:$0xff pattern:$0x75316420]
    %635 = vset.pattern.permute.xlu0 0
    %636 = vperm.xlu0 %635, %v617
    %v637 = vpop.permute.xlu0 %636
    %638 = vset.pattern.permute.xlu0 0
    %639 = vperm.xlu0 %638, %v620
    %v640 = vpop.permute.xlu0 %639
    %641 = vset.pattern.permute.xlu0 0
    %642 = vperm.xlu0 %641, %v623
    %v643 = vpop.permute.xlu0 %642
    %644 = vset.pattern.permute.xlu0 0
    %645 = vperm.xlu0 %644, %v626
    %v646 = vpop.permute.xlu0 %645
    %647 = vset.pattern.permute.xlu0 0
    %648 = vperm.xlu0 %647, %v628
    %v649 = vpop.permute.xlu0 %648
    %650 = vset.pattern.permute.xlu0 0
    %651 = vperm.xlu0 %650, %v630
    %v652 = vpop.permute.xlu0 %651
    %653 = vset.pattern.permute.xlu0 0
    %654 = vperm.xlu0 %653, %v632
    %v655 = vpop.permute.xlu0 %654
    %656 = vset.pattern.permute.xlu0 0
    %657 = vperm.xlu0 %656, %v634
    %v658 = vpop.permute.xlu0 %657
    %v659 = vperm.slane %v637, %v111
    %v660 = vperm.slane %v640, %v111
    %v661 = vperm.slane %v643, %v111
    %v662 = vperm.slane %v646, %v111
    %v663 = vperm.slane %v649, %v111
    %v664 = vperm.slane %v652, %v111
    %v665 = vperm.slane %v655, %v111
    %v666 = vperm.slane %v658, %v111
    %v667 = vsel %vm488, %v660, %v659
    %v668 = vsel %vm490, %v661, %v667
    %v669 = vsel %vm492, %v662, %v668
    %v670 = vsel %vm494, %v663, %v669
    %v671 = vsel %vm496, %v664, %v670
    %v672 = vsel %vm498, %v665, %v671
    %v673 = vsel %vm500, %v666, %v672
    %v675 = vsel %vm503, %v673, 0.0
    %676 = vadd.xlane.f32.xlu0 %v675
    %v677 = vpop.xlane.xlu0 %676
    %v678 = vrcp.pop %v677
    %v681 = vunpack.c.l.s4 839922192
    %v682 = vunpack.c.0.s8 %v681
    %v683 = vperm.slane %v678, %v682
    %v685 = vunpack.c.l.s4 1985246804
    %v686 = vunpack.c.0.s8 %v685
    %v687 = vperm.slane %v678, %v686
    %688 = vst [vmem:[#allocation1] ss:$2 sm:$0xff] %v683
    %s689 = scalar_lea.vmem [#allocation1], 1
    %690 = vst [vmem:[%s689] ss:$2 sm:$0xff] %v687
    %v691 = vld.sshfl [vmem:[#allocation1] sm:$0xff pattern:$0x75316420]
    %v692 = vperm.slane %v691, 0
    %v693 = vlaneseq
    %v694 = vshrl.u32 %v693, 7
    %696 = vset.pattern.permute.xlu0 %v694
    %697 = vperm.xlu0 %696, %v692
    %v698 = vpop.permute.xlu0 %697
    %v699 = vperm.slane %v691, 1
    %v700 = vlaneseq
    %v701 = vshrl.u32 %v700, 7
    %703 = vset.pattern.permute.xlu0 %v701
    %704 = vperm.xlu0 %703, %v699
    %v705 = vpop.permute.xlu0 %704
    %v706 = vperm.slane %v691, 2
    %v707 = vlaneseq
    %v708 = vshrl.u32 %v707, 7
    %710 = vset.pattern.permute.xlu0 %v708
    %711 = vperm.xlu0 %710, %v706
    %v712 = vpop.permute.xlu0 %711
    %v713 = vperm.slane %v691, 3
    %v714 = vlaneseq
    %v715 = vshrl.u32 %v714, 7
    %717 = vset.pattern.permute.xlu0 %v715
    %718 = vperm.xlu0 %717, %v713
    %v719 = vpop.permute.xlu0 %718
    %v720 = vperm.slane %v691, 4
    %v721 = vlaneseq
    %v722 = vshrl.u32 %v721, 7
    %724 = vset.pattern.permute.xlu0 %v722
    %725 = vperm.xlu0 %724, %v720
    %v726 = vpop.permute.xlu0 %725
    %v727 = vperm.slane %v691, 5
    %v728 = vlaneseq
    %v729 = vshrl.u32 %v728, 7
    %731 = vset.pattern.permute.xlu0 %v729
    %732 = vperm.xlu0 %731, %v727
    %v733 = vpop.permute.xlu0 %732
    %v734 = vperm.slane %v691, 6
    %v735 = vlaneseq
    %v736 = vshrl.u32 %v735, 7
    %738 = vset.pattern.permute.xlu0 %v736
    %739 = vperm.xlu0 %738, %v734
    %v740 = vpop.permute.xlu0 %739
    %v741 = vperm.slane %v691, 7
    %v742 = vlaneseq
    %v743 = vshrl.u32 %v742, 7
    %745 = vset.pattern.permute.xlu0 %v743
    %746 = vperm.xlu0 %745, %v741
    %v747 = vpop.permute.xlu0 %746
    %v756 = vmul.f32 %v593, %v698
    %v757 = vmul.f32 %v595, %v705
    %v758 = vmul.f32 %v597, %v712
    %v759 = vmul.f32 %v599, %v719
    %v760 = vmul.f32 %v601, %v726
    %v761 = vmul.f32 %v603, %v733
    %v762 = vmul.f32 %v605, %v740
    %v763 = vmul.f32 %v607, %v747
    %v764 = vrot.slane %v211, 4
    %v765 = vrot.slane %v214, 4
    %v766 = vrot.slane %v217, 4
    %v767 = vrot.slane %v220, 4
    %v768 = vperm.slane %v756, 0
    %v769 = vperm.slane %v757, 0
    %v770 = vperm.slane %v758, 0
    %v771 = vperm.slane %v759, 0
    %v772 = vperm.slane %v760, 0
    %v773 = vperm.slane %v761, 0
    %v774 = vperm.slane %v762, 0
    %v775 = vperm.slane %v763, 0
    %v776 = vperm.slane %v211, 0
    %v777 = vperm.slane %v764, 0
    %v778 = vperm.slane %v214, 0
    %v779 = vperm.slane %v765, 0
    %v780 = vperm.slane %v217, 0
    %v781 = vperm.slane %v766, 0
    %v782 = vperm.slane %v220, 0
    %v783 = vperm.slane %v767, 0
    %v784 = vlaneseq
    %v785 = vshrl.u32 %v784, 7
    %787 = vset.pattern.permute.xlu0 %v785
    %788 = vperm.xlu0 %787, %v776
    %v789 = vpop.permute.xlu0 %788
    %v790 = vlaneseq
    %v791 = vshrl.u32 %v790, 7
    %v792 = vadd.s32 %v791, 8
    %793 = vset.pattern.permute.xlu0 %v792
    %794 = vperm.xlu0 %793, %v776
    %v795 = vpop.permute.xlu0 %794
    %v796 = vlaneseq
    %v797 = vshrl.u32 %v796, 7
    %v798 = vadd.s32 %v797, 16
    %799 = vset.pattern.permute.xlu0 %v798
    %800 = vperm.xlu0 %799, %v776
    %v801 = vpop.permute.xlu0 %800
    %v802 = vlaneseq
    %v803 = vshrl.u32 %v802, 7
    %v804 = vadd.s32 %v803, 24
    %805 = vset.pattern.permute.xlu0 %v804
    %806 = vperm.xlu0 %805, %v776
    %v807 = vpop.permute.xlu0 %806
    %v808 = vlaneseq
    %v809 = vshrl.u32 %v808, 7
    %811 = vset.pattern.permute.xlu0 %v809
    %812 = vperm.xlu0 %811, %v777
    %v813 = vpop.permute.xlu0 %812
    %v814 = vlaneseq
    %v815 = vshrl.u32 %v814, 7
    %v816 = vadd.s32 %v815, 8
    %817 = vset.pattern.permute.xlu0 %v816
    %818 = vperm.xlu0 %817, %v777
    %v819 = vpop.permute.xlu0 %818
    %v820 = vlaneseq
    %v821 = vshrl.u32 %v820, 7
    %v822 = vadd.s32 %v821, 16
    %823 = vset.pattern.permute.xlu0 %v822
    %824 = vperm.xlu0 %823, %v777
    %v825 = vpop.permute.xlu0 %824
    %v826 = vlaneseq
    %v827 = vshrl.u32 %v826, 7
    %v828 = vadd.s32 %v827, 24
    %829 = vset.pattern.permute.xlu0 %v828
    %830 = vperm.xlu0 %829, %v777
    %v831 = vpop.permute.xlu0 %830
    %v832 = vlaneseq
    %v833 = vshrl.u32 %v832, 7
    %835 = vset.pattern.permute.xlu0 %v833
    %836 = vperm.xlu0 %835, %v778
    %v837 = vpop.permute.xlu0 %836
    %v838 = vlaneseq
    %v839 = vshrl.u32 %v838, 7
    %v840 = vadd.s32 %v839, 8
    %841 = vset.pattern.permute.xlu0 %v840
    %842 = vperm.xlu0 %841, %v778
    %v843 = vpop.permute.xlu0 %842
    %v844 = vlaneseq
    %v845 = vshrl.u32 %v844, 7
    %v846 = vadd.s32 %v845, 16
    %847 = vset.pattern.permute.xlu0 %v846
    %848 = vperm.xlu0 %847, %v778
    %v849 = vpop.permute.xlu0 %848
    %v850 = vlaneseq
    %v851 = vshrl.u32 %v850, 7
    %v852 = vadd.s32 %v851, 24
    %853 = vset.pattern.permute.xlu0 %v852
    %854 = vperm.xlu0 %853, %v778
    %v855 = vpop.permute.xlu0 %854
    %v856 = vlaneseq
    %v857 = vshrl.u32 %v856, 7
    %859 = vset.pattern.permute.xlu0 %v857
    %860 = vperm.xlu0 %859, %v779
    %v861 = vpop.permute.xlu0 %860
    %v862 = vlaneseq
    %v863 = vshrl.u32 %v862, 7
    %v864 = vadd.s32 %v863, 8
    %865 = vset.pattern.permute.xlu0 %v864
    %866 = vperm.xlu0 %865, %v779
    %v867 = vpop.permute.xlu0 %866
    %v868 = vlaneseq
    %v869 = vshrl.u32 %v868, 7
    %v870 = vadd.s32 %v869, 16
    %871 = vset.pattern.permute.xlu0 %v870
    %872 = vperm.xlu0 %871, %v779
    %v873 = vpop.permute.xlu0 %872
    %v874 = vlaneseq
    %v875 = vshrl.u32 %v874, 7
    %v876 = vadd.s32 %v875, 24
    %877 = vset.pattern.permute.xlu0 %v876
    %878 = vperm.xlu0 %877, %v779
    %v879 = vpop.permute.xlu0 %878
    %v880 = vlaneseq
    %v881 = vshrl.u32 %v880, 7
    %883 = vset.pattern.permute.xlu0 %v881
    %884 = vperm.xlu0 %883, %v780
    %v885 = vpop.permute.xlu0 %884
    %v886 = vlaneseq
    %v887 = vshrl.u32 %v886, 7
    %v888 = vadd.s32 %v887, 8
    %889 = vset.pattern.permute.xlu0 %v888
    %890 = vperm.xlu0 %889, %v780
    %v891 = vpop.permute.xlu0 %890
    %v892 = vlaneseq
    %v893 = vshrl.u32 %v892, 7
    %v894 = vadd.s32 %v893, 16
    %895 = vset.pattern.permute.xlu0 %v894
    %896 = vperm.xlu0 %895, %v780
    %v897 = vpop.permute.xlu0 %896
    %v898 = vlaneseq
    %v899 = vshrl.u32 %v898, 7
    %v900 = vadd.s32 %v899, 24
    %901 = vset.pattern.permute.xlu0 %v900
    %902 = vperm.xlu0 %901, %v780
    %v903 = vpop.permute.xlu0 %902
    %v904 = vlaneseq
    %v905 = vshrl.u32 %v904, 7
    %907 = vset.pattern.permute.xlu0 %v905
    %908 = vperm.xlu0 %907, %v781
    %v909 = vpop.permute.xlu0 %908
    %v910 = vlaneseq
    %v911 = vshrl.u32 %v910, 7
    %v912 = vadd.s32 %v911, 8
    %913 = vset.pattern.permute.xlu0 %v912
    %914 = vperm.xlu0 %913, %v781
    %v915 = vpop.permute.xlu0 %914
    %v916 = vlaneseq
    %v917 = vshrl.u32 %v916, 7
    %v918 = vadd.s32 %v917, 16
    %919 = vset.pattern.permute.xlu0 %v918
    %920 = vperm.xlu0 %919, %v781
    %v921 = vpop.permute.xlu0 %920
    %v922 = vlaneseq
    %v923 = vshrl.u32 %v922, 7
    %v924 = vadd.s32 %v923, 24
    %925 = vset.pattern.permute.xlu0 %v924
    %926 = vperm.xlu0 %925, %v781
    %v927 = vpop.permute.xlu0 %926
    %v928 = vlaneseq
    %v929 = vshrl.u32 %v928, 7
    %931 = vset.pattern.permute.xlu0 %v929
    %932 = vperm.xlu0 %931, %v782
    %v933 = vpop.permute.xlu0 %932
    %v934 = vlaneseq
    %v935 = vshrl.u32 %v934, 7
    %v936 = vadd.s32 %v935, 8
    %937 = vset.pattern.permute.xlu0 %v936
    %938 = vperm.xlu0 %937, %v782
    %v939 = vpop.permute.xlu0 %938
    %v940 = vlaneseq
    %v941 = vshrl.u32 %v940, 7
    %v942 = vadd.s32 %v941, 16
    %943 = vset.pattern.permute.xlu0 %v942
    %944 = vperm.xlu0 %943, %v782
    %v945 = vpop.permute.xlu0 %944
    %v946 = vlaneseq
    %v947 = vshrl.u32 %v946, 7
    %v948 = vadd.s32 %v947, 24
    %949 = vset.pattern.permute.xlu0 %v948
    %950 = vperm.xlu0 %949, %v782
    %v951 = vpop.permute.xlu0 %950
    %v952 = vlaneseq
    %v953 = vshrl.u32 %v952, 7
    %955 = vset.pattern.permute.xlu0 %v953
    %956 = vperm.xlu0 %955, %v783
    %v957 = vpop.permute.xlu0 %956
    %v958 = vlaneseq
    %v959 = vshrl.u32 %v958, 7
    %v960 = vadd.s32 %v959, 8
    %961 = vset.pattern.permute.xlu0 %v960
    %962 = vperm.xlu0 %961, %v783
    %v963 = vpop.permute.xlu0 %962
    %v964 = vlaneseq
    %v965 = vshrl.u32 %v964, 7
    %v966 = vadd.s32 %v965, 16
    %967 = vset.pattern.permute.xlu0 %v966
    %968 = vperm.xlu0 %967, %v783
    %v969 = vpop.permute.xlu0 %968
    %v970 = vlaneseq
    %v971 = vshrl.u32 %v970, 7
    %v972 = vadd.s32 %v971, 24
    %973 = vset.pattern.permute.xlu0 %v972
    %974 = vperm.xlu0 %973, %v783
    %v975 = vpop.permute.xlu0 %974
    %v1008 = vmul.f32 %v768, %v789
    %v1009 = vmul.f32 %v768, %v795
    %v1010 = vmul.f32 %v768, %v801
    %v1011 = vmul.f32 %v768, %v807
    %v1012 = vmul.f32 %v769, %v813
    %v1013 = vmul.f32 %v769, %v819
    %v1014 = vmul.f32 %v769, %v825
    %v1015 = vmul.f32 %v769, %v831
    %v1016 = vmul.f32 %v770, %v837
    %v1017 = vmul.f32 %v770, %v843
    %v1018 = vmul.f32 %v770, %v849
    %v1019 = vmul.f32 %v770, %v855
    %v1020 = vmul.f32 %v771, %v861
    %v1021 = vmul.f32 %v771, %v867
    %v1022 = vmul.f32 %v771, %v873
    %v1023 = vmul.f32 %v771, %v879
    %v1024 = vmul.f32 %v772, %v885
    %v1025 = vmul.f32 %v772, %v891
    %v1026 = vmul.f32 %v772, %v897
    %v1027 = vmul.f32 %v772, %v903
    %v1028 = vmul.f32 %v773, %v909
    %v1029 = vmul.f32 %v773, %v915
    %v1030 = vmul.f32 %v773, %v921
    %v1031 = vmul.f32 %v773, %v927
    %v1032 = vmul.f32 %v774, %v933
    %v1033 = vmul.f32 %v774, %v939
    %v1034 = vmul.f32 %v774, %v945
    %v1035 = vmul.f32 %v774, %v951
    %v1036 = vmul.f32 %v775, %v957
    %v1037 = vmul.f32 %v775, %v963
    %v1038 = vmul.f32 %v775, %v969
    %v1039 = vmul.f32 %v775, %v975
    %v1040 = vperm.slane %v756, 1
    %v1041 = vperm.slane %v757, 1
    %v1042 = vperm.slane %v758, 1
    %v1043 = vperm.slane %v759, 1
    %v1044 = vperm.slane %v760, 1
    %v1045 = vperm.slane %v761, 1
    %v1046 = vperm.slane %v762, 1
    %v1047 = vperm.slane %v763, 1
    %v1048 = vperm.slane %v211, 1
    %v1049 = vperm.slane %v764, 1
    %v1050 = vperm.slane %v214, 1
    %v1051 = vperm.slane %v765, 1
    %v1052 = vperm.slane %v217, 1
    %v1053 = vperm.slane %v766, 1
    %v1054 = vperm.slane %v220, 1
    %v1055 = vperm.slane %v767, 1
    %v1056 = vlaneseq
    %v1057 = vshrl.u32 %v1056, 7
    %1059 = vset.pattern.permute.xlu0 %v1057
    %1060 = vperm.xlu0 %1059, %v1048
    %v1061 = vpop.permute.xlu0 %1060
    %v1062 = vlaneseq
    %v1063 = vshrl.u32 %v1062, 7
    %v1064 = vadd.s32 %v1063, 8
    %1065 = vset.pattern.permute.xlu0 %v1064
    %1066 = vperm.xlu0 %1065, %v1048
    %v1067 = vpop.permute.xlu0 %1066
    %v1068 = vlaneseq
    %v1069 = vshrl.u32 %v1068, 7
    %v1070 = vadd.s32 %v1069, 16
    %1071 = vset.pattern.permute.xlu0 %v1070
    %1072 = vperm.xlu0 %1071, %v1048
    %v1073 = vpop.permute.xlu0 %1072
    %v1074 = vlaneseq
    %v1075 = vshrl.u32 %v1074, 7
    %v1076 = vadd.s32 %v1075, 24
    %1077 = vset.pattern.permute.xlu0 %v1076
    %1078 = vperm.xlu0 %1077, %v1048
    %v1079 = vpop.permute.xlu0 %1078
    %v1080 = vlaneseq
    %v1081 = vshrl.u32 %v1080, 7
    %1083 = vset.pattern.permute.xlu0 %v1081
    %1084 = vperm.xlu0 %1083, %v1049
    %v1085 = vpop.permute.xlu0 %1084
    %v1086 = vlaneseq
    %v1087 = vshrl.u32 %v1086, 7
    %v1088 = vadd.s32 %v1087, 8
    %1089 = vset.pattern.permute.xlu0 %v1088
    %1090 = vperm.xlu0 %1089, %v1049
    %v1091 = vpop.permute.xlu0 %1090
    %v1092 = vlaneseq
    %v1093 = vshrl.u32 %v1092, 7
    %v1094 = vadd.s32 %v1093, 16
    %1095 = vset.pattern.permute.xlu0 %v1094
    %1096 = vperm.xlu0 %1095, %v1049
    %v1097 = vpop.permute.xlu0 %1096
    %v1098 = vlaneseq
    %v1099 = vshrl.u32 %v1098, 7
    %v1100 = vadd.s32 %v1099, 24
    %1101 = vset.pattern.permute.xlu0 %v1100
    %1102 = vperm.xlu0 %1101, %v1049
    %v1103 = vpop.permute.xlu0 %1102
    %v1104 = vlaneseq
    %v1105 = vshrl.u32 %v1104, 7
    %1107 = vset.pattern.permute.xlu0 %v1105
    %1108 = vperm.xlu0 %1107, %v1050
    %v1109 = vpop.permute.xlu0 %1108
    %v1110 = vlaneseq
    %v1111 = vshrl.u32 %v1110, 7
    %v1112 = vadd.s32 %v1111, 8
    %1113 = vset.pattern.permute.xlu0 %v1112
    %1114 = vperm.xlu0 %1113, %v1050
    %v1115 = vpop.permute.xlu0 %1114
    %v1116 = vlaneseq
    %v1117 = vshrl.u32 %v1116, 7
    %v1118 = vadd.s32 %v1117, 16
    %1119 = vset.pattern.permute.xlu0 %v1118
    %1120 = vperm.xlu0 %1119, %v1050
    %v1121 = vpop.permute.xlu0 %1120
    %v1122 = vlaneseq
    %v1123 = vshrl.u32 %v1122, 7
    %v1124 = vadd.s32 %v1123, 24
    %1125 = vset.pattern.permute.xlu0 %v1124
    %1126 = vperm.xlu0 %1125, %v1050
    %v1127 = vpop.permute.xlu0 %1126
    %v1128 = vlaneseq
    %v1129 = vshrl.u32 %v1128, 7
    %1131 = vset.pattern.permute.xlu0 %v1129
    %1132 = vperm.xlu0 %1131, %v1051
    %v1133 = vpop.permute.xlu0 %1132
    %v1134 = vlaneseq
    %v1135 = vshrl.u32 %v1134, 7
    %v1136 = vadd.s32 %v1135, 8
    %1137 = vset.pattern.permute.xlu0 %v1136
    %1138 = vperm.xlu0 %1137, %v1051
    %v1139 = vpop.permute.xlu0 %1138
    %v1140 = vlaneseq
    %v1141 = vshrl.u32 %v1140, 7
    %v1142 = vadd.s32 %v1141, 16
    %1143 = vset.pattern.permute.xlu0 %v1142
    %1144 = vperm.xlu0 %1143, %v1051
    %v1145 = vpop.permute.xlu0 %1144
    %v1146 = vlaneseq
    %v1147 = vshrl.u32 %v1146, 7
    %v1148 = vadd.s32 %v1147, 24
    %1149 = vset.pattern.permute.xlu0 %v1148
    %1150 = vperm.xlu0 %1149, %v1051
    %v1151 = vpop.permute.xlu0 %1150
    %v1152 = vlaneseq
    %v1153 = vshrl.u32 %v1152, 7
    %1155 = vset.pattern.permute.xlu0 %v1153
    %1156 = vperm.xlu0 %1155, %v1052
    %v1157 = vpop.permute.xlu0 %1156
    %v1158 = vlaneseq
    %v1159 = vshrl.u32 %v1158, 7
    %v1160 = vadd.s32 %v1159, 8
    %1161 = vset.pattern.permute.xlu0 %v1160
    %1162 = vperm.xlu0 %1161, %v1052
    %v1163 = vpop.permute.xlu0 %1162
    %v1164 = vlaneseq
    %v1165 = vshrl.u32 %v1164, 7
    %v1166 = vadd.s32 %v1165, 16
    %1167 = vset.pattern.permute.xlu0 %v1166
    %1168 = vperm.xlu0 %1167, %v1052
    %v1169 = vpop.permute.xlu0 %1168
    %v1170 = vlaneseq
    %v1171 = vshrl.u32 %v1170, 7
    %v1172 = vadd.s32 %v1171, 24
    %1173 = vset.pattern.permute.xlu0 %v1172
    %1174 = vperm.xlu0 %1173, %v1052
    %v1175 = vpop.permute.xlu0 %1174
    %v1176 = vlaneseq
    %v1177 = vshrl.u32 %v1176, 7
    %1179 = vset.pattern.permute.xlu0 %v1177
    %1180 = vperm.xlu0 %1179, %v1053
    %v1181 = vpop.permute.xlu0 %1180
    %v1182 = vlaneseq
    %v1183 = vshrl.u32 %v1182, 7
    %v1184 = vadd.s32 %v1183, 8
    %1185 = vset.pattern.permute.xlu0 %v1184
    %1186 = vperm.xlu0 %1185, %v1053
    %v1187 = vpop.permute.xlu0 %1186
    %v1188 = vlaneseq
    %v1189 = vshrl.u32 %v1188, 7
    %v1190 = vadd.s32 %v1189, 16
    %1191 = vset.pattern.permute.xlu0 %v1190
    %1192 = vperm.xlu0 %1191, %v1053
    %v1193 = vpop.permute.xlu0 %1192
    %v1194 = vlaneseq
    %v1195 = vshrl.u32 %v1194, 7
    %v1196 = vadd.s32 %v1195, 24
    %1197 = vset.pattern.permute.xlu0 %v1196
    %1198 = vperm.xlu0 %1197, %v1053
    %v1199 = vpop.permute.xlu0 %1198
    %v1200 = vlaneseq
    %v1201 = vshrl.u32 %v1200, 7
    %1203 = vset.pattern.permute.xlu0 %v1201
    %1204 = vperm.xlu0 %1203, %v1054
    %v1205 = vpop.permute.xlu0 %1204
    %v1206 = vlaneseq
    %v1207 = vshrl.u32 %v1206, 7
    %v1208 = vadd.s32 %v1207, 8
    %1209 = vset.pattern.permute.xlu0 %v1208
    %1210 = vperm.xlu0 %1209, %v1054
    %v1211 = vpop.permute.xlu0 %1210
    %v1212 = vlaneseq
    %v1213 = vshrl.u32 %v1212, 7
    %v1214 = vadd.s32 %v1213, 16
    %1215 = vset.pattern.permute.xlu0 %v1214
    %1216 = vperm.xlu0 %1215, %v1054
    %v1217 = vpop.permute.xlu0 %1216
    %v1218 = vlaneseq
    %v1219 = vshrl.u32 %v1218, 7
    %v1220 = vadd.s32 %v1219, 24
    %1221 = vset.pattern.permute.xlu0 %v1220
    %1222 = vperm.xlu0 %1221, %v1054
    %v1223 = vpop.permute.xlu0 %1222
    %v1224 = vlaneseq
    %v1225 = vshrl.u32 %v1224, 7
    %1227 = vset.pattern.permute.xlu0 %v1225
    %1228 = vperm.xlu0 %1227, %v1055
    %v1229 = vpop.permute.xlu0 %1228
    %v1230 = vlaneseq
    %v1231 = vshrl.u32 %v1230, 7
    %v1232 = vadd.s32 %v1231, 8
    %1233 = vset.pattern.permute.xlu0 %v1232
    %1234 = vperm.xlu0 %1233, %v1055
    %v1235 = vpop.permute.xlu0 %1234
    %v1236 = vlaneseq
    %v1237 = vshrl.u32 %v1236, 7
    %v1238 = vadd.s32 %v1237, 16
    %1239 = vset.pattern.permute.xlu0 %v1238
    %1240 = vperm.xlu0 %1239, %v1055
    %v1241 = vpop.permute.xlu0 %1240
    %v1242 = vlaneseq
    %v1243 = vshrl.u32 %v1242, 7
    %v1244 = vadd.s32 %v1243, 24
    %1245 = vset.pattern.permute.xlu0 %v1244
    %1246 = vperm.xlu0 %1245, %v1055
    %v1247 = vpop.permute.xlu0 %1246
    %v1280 = vmul.f32 %v1040, %v1061
    %v1281 = vmul.f32 %v1040, %v1067
    %v1282 = vmul.f32 %v1040, %v1073
    %v1283 = vmul.f32 %v1040, %v1079
    %v1284 = vmul.f32 %v1041, %v1085
    %v1285 = vmul.f32 %v1041, %v1091
    %v1286 = vmul.f32 %v1041, %v1097
    %v1287 = vmul.f32 %v1041, %v1103
    %v1288 = vmul.f32 %v1042, %v1109
    %v1289 = vmul.f32 %v1042, %v1115
    %v1290 = vmul.f32 %v1042, %v1121
    %v1291 = vmul.f32 %v1042, %v1127
    %v1292 = vmul.f32 %v1043, %v1133
    %v1293 = vmul.f32 %v1043, %v1139
    %v1294 = vmul.f32 %v1043, %v1145
    %v1295 = vmul.f32 %v1043, %v1151
    %v1296 = vmul.f32 %v1044, %v1157
    %v1297 = vmul.f32 %v1044, %v1163
    %v1298 = vmul.f32 %v1044, %v1169
    %v1299 = vmul.f32 %v1044, %v1175
    %v1300 = vmul.f32 %v1045, %v1181
    %v1301 = vmul.f32 %v1045, %v1187
    %v1302 = vmul.f32 %v1045, %v1193
    %v1303 = vmul.f32 %v1045, %v1199
    %v1304 = vmul.f32 %v1046, %v1205
    %v1305 = vmul.f32 %v1046, %v1211
    %v1306 = vmul.f32 %v1046, %v1217
    %v1307 = vmul.f32 %v1046, %v1223
    %v1308 = vmul.f32 %v1047, %v1229
    %v1309 = vmul.f32 %v1047, %v1235
    %v1310 = vmul.f32 %v1047, %v1241
    %v1311 = vmul.f32 %v1047, %v1247
    %v1312 = vadd.f32 %v1008, %v1280
    %v1313 = vadd.f32 %v1009, %v1281
    %v1314 = vadd.f32 %v1010, %v1282
    %v1315 = vadd.f32 %v1011, %v1283
    %v1316 = vadd.f32 %v1012, %v1284
    %v1317 = vadd.f32 %v1013, %v1285
    %v1318 = vadd.f32 %v1014, %v1286
    %v1319 = vadd.f32 %v1015, %v1287
    %v1320 = vadd.f32 %v1016, %v1288
    %v1321 = vadd.f32 %v1017, %v1289
    %v1322 = vadd.f32 %v1018, %v1290
    %v1323 = vadd.f32 %v1019, %v1291
    %v1324 = vadd.f32 %v1020, %v1292
    %v1325 = vadd.f32 %v1021, %v1293
    %v1326 = vadd.f32 %v1022, %v1294
    %v1327 = vadd.f32 %v1023, %v1295
    %v1328 = vadd.f32 %v1024, %v1296
    %v1329 = vadd.f32 %v1025, %v1297
    %v1330 = vadd.f32 %v1026, %v1298
    %v1331 = vadd.f32 %v1027, %v1299
    %v1332 = vadd.f32 %v1028, %v1300
    %v1333 = vadd.f32 %v1029, %v1301
    %v1334 = vadd.f32 %v1030, %v1302
    %v1335 = vadd.f32 %v1031, %v1303
    %v1336 = vadd.f32 %v1032, %v1304
    %v1337 = vadd.f32 %v1033, %v1305
    %v1338 = vadd.f32 %v1034, %v1306
    %v1339 = vadd.f32 %v1035, %v1307
    %v1340 = vadd.f32 %v1036, %v1308
    %v1341 = vadd.f32 %v1037, %v1309
    %v1342 = vadd.f32 %v1038, %v1310
    %v1343 = vadd.f32 %v1039, %v1311
    %v1344 = vperm.slane %v756, 2
    %v1345 = vperm.slane %v757, 2
    %v1346 = vperm.slane %v758, 2
    %v1347 = vperm.slane %v759, 2
    %v1348 = vperm.slane %v760, 2
    %v1349 = vperm.slane %v761, 2
    %v1350 = vperm.slane %v762, 2
    %v1351 = vperm.slane %v763, 2
    %v1352 = vperm.slane %v211, 2
    %v1353 = vperm.slane %v764, 2
    %v1354 = vperm.slane %v214, 2
    %v1355 = vperm.slane %v765, 2
    %v1356 = vperm.slane %v217, 2
    %v1357 = vperm.slane %v766, 2
    %v1358 = vperm.slane %v220, 2
    %v1359 = vperm.slane %v767, 2
    %v1360 = vlaneseq
    %v1361 = vshrl.u32 %v1360, 7
    %1363 = vset.pattern.permute.xlu0 %v1361
    %1364 = vperm.xlu0 %1363, %v1352
    %v1365 = vpop.permute.xlu0 %1364
    %v1366 = vlaneseq
    %v1367 = vshrl.u32 %v1366, 7
    %v1368 = vadd.s32 %v1367, 8
    %1369 = vset.pattern.permute.xlu0 %v1368
    %1370 = vperm.xlu0 %1369, %v1352
    %v1371 = vpop.permute.xlu0 %1370
    %v1372 = vlaneseq
    %v1373 = vshrl.u32 %v1372, 7
    %v1374 = vadd.s32 %v1373, 16
    %1375 = vset.pattern.permute.xlu0 %v1374
    %1376 = vperm.xlu0 %1375, %v1352
    %v1377 = vpop.permute.xlu0 %1376
    %v1378 = vlaneseq
    %v1379 = vshrl.u32 %v1378, 7
    %v1380 = vadd.s32 %v1379, 24
    %1381 = vset.pattern.permute.xlu0 %v1380
    %1382 = vperm.xlu0 %1381, %v1352
    %v1383 = vpop.permute.xlu0 %1382
    %v1384 = vlaneseq
    %v1385 = vshrl.u32 %v1384, 7
    %1387 = vset.pattern.permute.xlu0 %v1385
    %1388 = vperm.xlu0 %1387, %v1353
    %v1389 = vpop.permute.xlu0 %1388
    %v1390 = vlaneseq
    %v1391 = vshrl.u32 %v1390, 7
    %v1392 = vadd.s32 %v1391, 8
    %1393 = vset.pattern.permute.xlu0 %v1392
    %1394 = vperm.xlu0 %1393, %v1353
    %v1395 = vpop.permute.xlu0 %1394
    %v1396 = vlaneseq
    %v1397 = vshrl.u32 %v1396, 7
    %v1398 = vadd.s32 %v1397, 16
    %1399 = vset.pattern.permute.xlu0 %v1398
    %1400 = vperm.xlu0 %1399, %v1353
    %v1401 = vpop.permute.xlu0 %1400
    %v1402 = vlaneseq
    %v1403 = vshrl.u32 %v1402, 7
    %v1404 = vadd.s32 %v1403, 24
    %1405 = vset.pattern.permute.xlu0 %v1404
    %1406 = vperm.xlu0 %1405, %v1353
    %v1407 = vpop.permute.xlu0 %1406
    %v1408 = vlaneseq
    %v1409 = vshrl.u32 %v1408, 7
    %1411 = vset.pattern.permute.xlu0 %v1409
    %1412 = vperm.xlu0 %1411, %v1354
    %v1413 = vpop.permute.xlu0 %1412
    %v1414 = vlaneseq
    %v1415 = vshrl.u32 %v1414, 7
    %v1416 = vadd.s32 %v1415, 8
    %1417 = vset.pattern.permute.xlu0 %v1416
    %1418 = vperm.xlu0 %1417, %v1354
    %v1419 = vpop.permute.xlu0 %1418
    %v1420 = vlaneseq
    %v1421 = vshrl.u32 %v1420, 7
    %v1422 = vadd.s32 %v1421, 16
    %1423 = vset.pattern.permute.xlu0 %v1422
    %1424 = vperm.xlu0 %1423, %v1354
    %v1425 = vpop.permute.xlu0 %1424
    %v1426 = vlaneseq
    %v1427 = vshrl.u32 %v1426, 7
    %v1428 = vadd.s32 %v1427, 24
    %1429 = vset.pattern.permute.xlu0 %v1428
    %1430 = vperm.xlu0 %1429, %v1354
    %v1431 = vpop.permute.xlu0 %1430
    %v1432 = vlaneseq
    %v1433 = vshrl.u32 %v1432, 7
    %1435 = vset.pattern.permute.xlu0 %v1433
    %1436 = vperm.xlu0 %1435, %v1355
    %v1437 = vpop.permute.xlu0 %1436
    %v1438 = vlaneseq
    %v1439 = vshrl.u32 %v1438, 7
    %v1440 = vadd.s32 %v1439, 8
    %1441 = vset.pattern.permute.xlu0 %v1440
    %1442 = vperm.xlu0 %1441, %v1355
    %v1443 = vpop.permute.xlu0 %1442
    %v1444 = vlaneseq
    %v1445 = vshrl.u32 %v1444, 7
    %v1446 = vadd.s32 %v1445, 16
    %1447 = vset.pattern.permute.xlu0 %v1446
    %1448 = vperm.xlu0 %1447, %v1355
    %v1449 = vpop.permute.xlu0 %1448
    %v1450 = vlaneseq
    %v1451 = vshrl.u32 %v1450, 7
    %v1452 = vadd.s32 %v1451, 24
    %1453 = vset.pattern.permute.xlu0 %v1452
    %1454 = vperm.xlu0 %1453, %v1355
    %v1455 = vpop.permute.xlu0 %1454
    %v1456 = vlaneseq
    %v1457 = vshrl.u32 %v1456, 7
    %1459 = vset.pattern.permute.xlu0 %v1457
    %1460 = vperm.xlu0 %1459, %v1356
    %v1461 = vpop.permute.xlu0 %1460
    %v1462 = vlaneseq
    %v1463 = vshrl.u32 %v1462, 7
    %v1464 = vadd.s32 %v1463, 8
    %1465 = vset.pattern.permute.xlu0 %v1464
    %1466 = vperm.xlu0 %1465, %v1356
    %v1467 = vpop.permute.xlu0 %1466
    %v1468 = vlaneseq
    %v1469 = vshrl.u32 %v1468, 7
    %v1470 = vadd.s32 %v1469, 16
    %1471 = vset.pattern.permute.xlu0 %v1470
    %1472 = vperm.xlu0 %1471, %v1356
    %v1473 = vpop.permute.xlu0 %1472
    %v1474 = vlaneseq
    %v1475 = vshrl.u32 %v1474, 7
    %v1476 = vadd.s32 %v1475, 24
    %1477 = vset.pattern.permute.xlu0 %v1476
    %1478 = vperm.xlu0 %1477, %v1356
    %v1479 = vpop.permute.xlu0 %1478
    %v1480 = vlaneseq
    %v1481 = vshrl.u32 %v1480, 7
    %1483 = vset.pattern.permute.xlu0 %v1481
    %1484 = vperm.xlu0 %1483, %v1357
    %v1485 = vpop.permute.xlu0 %1484
    %v1486 = vlaneseq
    %v1487 = vshrl.u32 %v1486, 7
    %v1488 = vadd.s32 %v1487, 8
    %1489 = vset.pattern.permute.xlu0 %v1488
    %1490 = vperm.xlu0 %1489, %v1357
    %v1491 = vpop.permute.xlu0 %1490
    %v1492 = vlaneseq
    %v1493 = vshrl.u32 %v1492, 7
    %v1494 = vadd.s32 %v1493, 16
    %1495 = vset.pattern.permute.xlu0 %v1494
    %1496 = vperm.xlu0 %1495, %v1357
    %v1497 = vpop.permute.xlu0 %1496
    %v1498 = vlaneseq
    %v1499 = vshrl.u32 %v1498, 7
    %v1500 = vadd.s32 %v1499, 24
    %1501 = vset.pattern.permute.xlu0 %v1500
    %1502 = vperm.xlu0 %1501, %v1357
    %v1503 = vpop.permute.xlu0 %1502
    %v1504 = vlaneseq
    %v1505 = vshrl.u32 %v1504, 7
    %1507 = vset.pattern.permute.xlu0 %v1505
    %1508 = vperm.xlu0 %1507, %v1358
    %v1509 = vpop.permute.xlu0 %1508
    %v1510 = vlaneseq
    %v1511 = vshrl.u32 %v1510, 7
    %v1512 = vadd.s32 %v1511, 8
    %1513 = vset.pattern.permute.xlu0 %v1512
    %1514 = vperm.xlu0 %1513, %v1358
    %v1515 = vpop.permute.xlu0 %1514
    %v1516 = vlaneseq
    %v1517 = vshrl.u32 %v1516, 7
    %v1518 = vadd.s32 %v1517, 16
    %1519 = vset.pattern.permute.xlu0 %v1518
    %1520 = vperm.xlu0 %1519, %v1358
    %v1521 = vpop.permute.xlu0 %1520
    %v1522 = vlaneseq
    %v1523 = vshrl.u32 %v1522, 7
    %v1524 = vadd.s32 %v1523, 24
    %1525 = vset.pattern.permute.xlu0 %v1524
    %1526 = vperm.xlu0 %1525, %v1358
    %v1527 = vpop.permute.xlu0 %1526
    %v1528 = vlaneseq
    %v1529 = vshrl.u32 %v1528, 7
    %1531 = vset.pattern.permute.xlu0 %v1529
    %1532 = vperm.xlu0 %1531, %v1359
    %v1533 = vpop.permute.xlu0 %1532
    %v1534 = vlaneseq
    %v1535 = vshrl.u32 %v1534, 7
    %v1536 = vadd.s32 %v1535, 8
    %1537 = vset.pattern.permute.xlu0 %v1536
    %1538 = vperm.xlu0 %1537, %v1359
    %v1539 = vpop.permute.xlu0 %1538
    %v1540 = vlaneseq
    %v1541 = vshrl.u32 %v1540, 7
    %v1542 = vadd.s32 %v1541, 16
    %1543 = vset.pattern.permute.xlu0 %v1542
    %1544 = vperm.xlu0 %1543, %v1359
    %v1545 = vpop.permute.xlu0 %1544
    %v1546 = vlaneseq
    %v1547 = vshrl.u32 %v1546, 7
    %v1548 = vadd.s32 %v1547, 24
    %1549 = vset.pattern.permute.xlu0 %v1548
    %1550 = vperm.xlu0 %1549, %v1359
    %v1551 = vpop.permute.xlu0 %1550
    %v1584 = vmul.f32 %v1344, %v1365
    %v1585 = vmul.f32 %v1344, %v1371
    %v1586 = vmul.f32 %v1344, %v1377
    %v1587 = vmul.f32 %v1344, %v1383
    %v1588 = vmul.f32 %v1345, %v1389
    %v1589 = vmul.f32 %v1345, %v1395
    %v1590 = vmul.f32 %v1345, %v1401
    %v1591 = vmul.f32 %v1345, %v1407
    %v1592 = vmul.f32 %v1346, %v1413
    %v1593 = vmul.f32 %v1346, %v1419
    %v1594 = vmul.f32 %v1346, %v1425
    %v1595 = vmul.f32 %v1346, %v1431
    %v1596 = vmul.f32 %v1347, %v1437
    %v1597 = vmul.f32 %v1347, %v1443
    %v1598 = vmul.f32 %v1347, %v1449
    %v1599 = vmul.f32 %v1347, %v1455
    %v1600 = vmul.f32 %v1348, %v1461
    %v1601 = vmul.f32 %v1348, %v1467
    %v1602 = vmul.f32 %v1348, %v1473
    %v1603 = vmul.f32 %v1348, %v1479
    %v1604 = vmul.f32 %v1349, %v1485
    %v1605 = vmul.f32 %v1349, %v1491
    %v1606 = vmul.f32 %v1349, %v1497
    %v1607 = vmul.f32 %v1349, %v1503
    %v1608 = vmul.f32 %v1350, %v1509
    %v1609 = vmul.f32 %v1350, %v1515
    %v1610 = vmul.f32 %v1350, %v1521
    %v1611 = vmul.f32 %v1350, %v1527
    %v1612 = vmul.f32 %v1351, %v1533
    %v1613 = vmul.f32 %v1351, %v1539
    %v1614 = vmul.f32 %v1351, %v1545
    %v1615 = vmul.f32 %v1351, %v1551
    %v1616 = vadd.f32 %v1312, %v1584
    %v1617 = vadd.f32 %v1313, %v1585
    %v1618 = vadd.f32 %v1314, %v1586
    %v1619 = vadd.f32 %v1315, %v1587
    %v1620 = vadd.f32 %v1316, %v1588
    %v1621 = vadd.f32 %v1317, %v1589
    %v1622 = vadd.f32 %v1318, %v1590
    %v1623 = vadd.f32 %v1319, %v1591
    %v1624 = vadd.f32 %v1320, %v1592
    %v1625 = vadd.f32 %v1321, %v1593
    %v1626 = vadd.f32 %v1322, %v1594
    %v1627 = vadd.f32 %v1323, %v1595
    %v1628 = vadd.f32 %v1324, %v1596
    %v1629 = vadd.f32 %v1325, %v1597
    %v1630 = vadd.f32 %v1326, %v1598
    %v1631 = vadd.f32 %v1327, %v1599
    %v1632 = vadd.f32 %v1328, %v1600
    %v1633 = vadd.f32 %v1329, %v1601
    %v1634 = vadd.f32 %v1330, %v1602
    %v1635 = vadd.f32 %v1331, %v1603
    %v1636 = vadd.f32 %v1332, %v1604
    %v1637 = vadd.f32 %v1333, %v1605
    %v1638 = vadd.f32 %v1334, %v1606
    %v1639 = vadd.f32 %v1335, %v1607
    %v1640 = vadd.f32 %v1336, %v1608
    %v1641 = vadd.f32 %v1337, %v1609
    %v1642 = vadd.f32 %v1338, %v1610
    %v1643 = vadd.f32 %v1339, %v1611
    %v1644 = vadd.f32 %v1340, %v1612
    %v1645 = vadd.f32 %v1341, %v1613
    %v1646 = vadd.f32 %v1342, %v1614
    %v1647 = vadd.f32 %v1343, %v1615
    %v1648 = vperm.slane %v756, 3
    %v1649 = vperm.slane %v757, 3
    %v1650 = vperm.slane %v758, 3
    %v1651 = vperm.slane %v759, 3
    %v1652 = vperm.slane %v760, 3
    %v1653 = vperm.slane %v761, 3
    %v1654 = vperm.slane %v762, 3
    %v1655 = vperm.slane %v763, 3
    %v1656 = vperm.slane %v211, 3
    %v1657 = vperm.slane %v764, 3
    %v1658 = vperm.slane %v214, 3
    %v1659 = vperm.slane %v765, 3
    %v1660 = vperm.slane %v217, 3
    %v1661 = vperm.slane %v766, 3
    %v1662 = vperm.slane %v220, 3
    %v1663 = vperm.slane %v767, 3
    %v1664 = vlaneseq
    %v1665 = vshrl.u32 %v1664, 7
    %1667 = vset.pattern.permute.xlu0 %v1665
    %1668 = vperm.xlu0 %1667, %v1656
    %v1669 = vpop.permute.xlu0 %1668
    %v1670 = vlaneseq
    %v1671 = vshrl.u32 %v1670, 7
    %v1672 = vadd.s32 %v1671, 8
    %1673 = vset.pattern.permute.xlu0 %v1672
    %1674 = vperm.xlu0 %1673, %v1656
    %v1675 = vpop.permute.xlu0 %1674
    %v1676 = vlaneseq
    %v1677 = vshrl.u32 %v1676, 7
    %v1678 = vadd.s32 %v1677, 16
    %1679 = vset.pattern.permute.xlu0 %v1678
    %1680 = vperm.xlu0 %1679, %v1656
    %v1681 = vpop.permute.xlu0 %1680
    %v1682 = vlaneseq
    %v1683 = vshrl.u32 %v1682, 7
    %v1684 = vadd.s32 %v1683, 24
    %1685 = vset.pattern.permute.xlu0 %v1684
    %1686 = vperm.xlu0 %1685, %v1656
    %v1687 = vpop.permute.xlu0 %1686
    %v1688 = vlaneseq
    %v1689 = vshrl.u32 %v1688, 7
    %1691 = vset.pattern.permute.xlu0 %v1689
    %1692 = vperm.xlu0 %1691, %v1657
    %v1693 = vpop.permute.xlu0 %1692
    %v1694 = vlaneseq
    %v1695 = vshrl.u32 %v1694, 7
    %v1696 = vadd.s32 %v1695, 8
    %1697 = vset.pattern.permute.xlu0 %v1696
    %1698 = vperm.xlu0 %1697, %v1657
    %v1699 = vpop.permute.xlu0 %1698
    %v1700 = vlaneseq
    %v1701 = vshrl.u32 %v1700, 7
    %v1702 = vadd.s32 %v1701, 16
    %1703 = vset.pattern.permute.xlu0 %v1702
    %1704 = vperm.xlu0 %1703, %v1657
    %v1705 = vpop.permute.xlu0 %1704
    %v1706 = vlaneseq
    %v1707 = vshrl.u32 %v1706, 7
    %v1708 = vadd.s32 %v1707, 24
    %1709 = vset.pattern.permute.xlu0 %v1708
    %1710 = vperm.xlu0 %1709, %v1657
    %v1711 = vpop.permute.xlu0 %1710
    %v1712 = vlaneseq
    %v1713 = vshrl.u32 %v1712, 7
    %1715 = vset.pattern.permute.xlu0 %v1713
    %1716 = vperm.xlu0 %1715, %v1658
    %v1717 = vpop.permute.xlu0 %1716
    %v1718 = vlaneseq
    %v1719 = vshrl.u32 %v1718, 7
    %v1720 = vadd.s32 %v1719, 8
    %1721 = vset.pattern.permute.xlu0 %v1720
    %1722 = vperm.xlu0 %1721, %v1658
    %v1723 = vpop.permute.xlu0 %1722
    %v1724 = vlaneseq
    %v1725 = vshrl.u32 %v1724, 7
    %v1726 = vadd.s32 %v1725, 16
    %1727 = vset.pattern.permute.xlu0 %v1726
    %1728 = vperm.xlu0 %1727, %v1658
    %v1729 = vpop.permute.xlu0 %1728
    %v1730 = vlaneseq
    %v1731 = vshrl.u32 %v1730, 7
    %v1732 = vadd.s32 %v1731, 24
    %1733 = vset.pattern.permute.xlu0 %v1732
    %1734 = vperm.xlu0 %1733, %v1658
    %v1735 = vpop.permute.xlu0 %1734
    %v1736 = vlaneseq
    %v1737 = vshrl.u32 %v1736, 7
    %1739 = vset.pattern.permute.xlu0 %v1737
    %1740 = vperm.xlu0 %1739, %v1659
    %v1741 = vpop.permute.xlu0 %1740
    %v1742 = vlaneseq
    %v1743 = vshrl.u32 %v1742, 7
    %v1744 = vadd.s32 %v1743, 8
    %1745 = vset.pattern.permute.xlu0 %v1744
    %1746 = vperm.xlu0 %1745, %v1659
    %v1747 = vpop.permute.xlu0 %1746
    %v1748 = vlaneseq
    %v1749 = vshrl.u32 %v1748, 7
    %v1750 = vadd.s32 %v1749, 16
    %1751 = vset.pattern.permute.xlu0 %v1750
    %1752 = vperm.xlu0 %1751, %v1659
    %v1753 = vpop.permute.xlu0 %1752
    %v1754 = vlaneseq
    %v1755 = vshrl.u32 %v1754, 7
    %v1756 = vadd.s32 %v1755, 24
    %1757 = vset.pattern.permute.xlu0 %v1756
    %1758 = vperm.xlu0 %1757, %v1659
    %v1759 = vpop.permute.xlu0 %1758
    %v1760 = vlaneseq
    %v1761 = vshrl.u32 %v1760, 7
    %1763 = vset.pattern.permute.xlu0 %v1761
    %1764 = vperm.xlu0 %1763, %v1660
    %v1765 = vpop.permute.xlu0 %1764
    %v1766 = vlaneseq
    %v1767 = vshrl.u32 %v1766, 7
    %v1768 = vadd.s32 %v1767, 8
    %1769 = vset.pattern.permute.xlu0 %v1768
    %1770 = vperm.xlu0 %1769, %v1660
    %v1771 = vpop.permute.xlu0 %1770
    %v1772 = vlaneseq
    %v1773 = vshrl.u32 %v1772, 7
    %v1774 = vadd.s32 %v1773, 16
    %1775 = vset.pattern.permute.xlu0 %v1774
    %1776 = vperm.xlu0 %1775, %v1660
    %v1777 = vpop.permute.xlu0 %1776
    %v1778 = vlaneseq
    %v1779 = vshrl.u32 %v1778, 7
    %v1780 = vadd.s32 %v1779, 24
    %1781 = vset.pattern.permute.xlu0 %v1780
    %1782 = vperm.xlu0 %1781, %v1660
    %v1783 = vpop.permute.xlu0 %1782
    %v1784 = vlaneseq
    %v1785 = vshrl.u32 %v1784, 7
    %1787 = vset.pattern.permute.xlu0 %v1785
    %1788 = vperm.xlu0 %1787, %v1661
    %v1789 = vpop.permute.xlu0 %1788
    %v1790 = vlaneseq
    %v1791 = vshrl.u32 %v1790, 7
    %v1792 = vadd.s32 %v1791, 8
    %1793 = vset.pattern.permute.xlu0 %v1792
    %1794 = vperm.xlu0 %1793, %v1661
    %v1795 = vpop.permute.xlu0 %1794
    %v1796 = vlaneseq
    %v1797 = vshrl.u32 %v1796, 7
    %v1798 = vadd.s32 %v1797, 16
    %1799 = vset.pattern.permute.xlu0 %v1798
    %1800 = vperm.xlu0 %1799, %v1661
    %v1801 = vpop.permute.xlu0 %1800
    %v1802 = vlaneseq
    %v1803 = vshrl.u32 %v1802, 7
    %v1804 = vadd.s32 %v1803, 24
    %1805 = vset.pattern.permute.xlu0 %v1804
    %1806 = vperm.xlu0 %1805, %v1661
    %v1807 = vpop.permute.xlu0 %1806
    %v1808 = vlaneseq
    %v1809 = vshrl.u32 %v1808, 7
    %1811 = vset.pattern.permute.xlu0 %v1809
    %1812 = vperm.xlu0 %1811, %v1662
    %v1813 = vpop.permute.xlu0 %1812
    %v1814 = vlaneseq
    %v1815 = vshrl.u32 %v1814, 7
    %v1816 = vadd.s32 %v1815, 8
    %1817 = vset.pattern.permute.xlu0 %v1816
    %1818 = vperm.xlu0 %1817, %v1662
    %v1819 = vpop.permute.xlu0 %1818
    %v1820 = vlaneseq
    %v1821 = vshrl.u32 %v1820, 7
    %v1822 = vadd.s32 %v1821, 16
    %1823 = vset.pattern.permute.xlu0 %v1822
    %1824 = vperm.xlu0 %1823, %v1662
    %v1825 = vpop.permute.xlu0 %1824
    %v1826 = vlaneseq
    %v1827 = vshrl.u32 %v1826, 7
    %v1828 = vadd.s32 %v1827, 24
    %1829 = vset.pattern.permute.xlu0 %v1828
    %1830 = vperm.xlu0 %1829, %v1662
    %v1831 = vpop.permute.xlu0 %1830
    %v1832 = vlaneseq
    %v1833 = vshrl.u32 %v1832, 7
    %1835 = vset.pattern.permute.xlu0 %v1833
    %1836 = vperm.xlu0 %1835, %v1663
    %v1837 = vpop.permute.xlu0 %1836
    %v1838 = vlaneseq
    %v1839 = vshrl.u32 %v1838, 7
    %v1840 = vadd.s32 %v1839, 8
    %1841 = vset.pattern.permute.xlu0 %v1840
    %1842 = vperm.xlu0 %1841, %v1663
    %v1843 = vpop.permute.xlu0 %1842
    %v1844 = vlaneseq
    %v1845 = vshrl.u32 %v1844, 7
    %v1846 = vadd.s32 %v1845, 16
    %1847 = vset.pattern.permute.xlu0 %v1846
    %1848 = vperm.xlu0 %1847, %v1663
    %v1849 = vpop.permute.xlu0 %1848
    %v1850 = vlaneseq
    %v1851 = vshrl.u32 %v1850, 7
    %v1852 = vadd.s32 %v1851, 24
    %1853 = vset.pattern.permute.xlu0 %v1852
    %1854 = vperm.xlu0 %1853, %v1663
    %v1855 = vpop.permute.xlu0 %1854
    %v1888 = vmul.f32 %v1648, %v1669
    %v1889 = vmul.f32 %v1648, %v1675
    %v1890 = vmul.f32 %v1648, %v1681
    %v1891 = vmul.f32 %v1648, %v1687
    %v1892 = vmul.f32 %v1649, %v1693
    %v1893 = vmul.f32 %v1649, %v1699
    %v1894 = vmul.f32 %v1649, %v1705
    %v1895 = vmul.f32 %v1649, %v1711
    %v1896 = vmul.f32 %v1650, %v1717
    %v1897 = vmul.f32 %v1650, %v1723
    %v1898 = vmul.f32 %v1650, %v1729
    %v1899 = vmul.f32 %v1650, %v1735
    %v1900 = vmul.f32 %v1651, %v1741
    %v1901 = vmul.f32 %v1651, %v1747
    %v1902 = vmul.f32 %v1651, %v1753
    %v1903 = vmul.f32 %v1651, %v1759
    %v1904 = vmul.f32 %v1652, %v1765
    %v1905 = vmul.f32 %v1652, %v1771
    %v1906 = vmul.f32 %v1652, %v1777
    %v1907 = vmul.f32 %v1652, %v1783
    %v1908 = vmul.f32 %v1653, %v1789
    %v1909 = vmul.f32 %v1653, %v1795
    %v1910 = vmul.f32 %v1653, %v1801
    %v1911 = vmul.f32 %v1653, %v1807
    %v1912 = vmul.f32 %v1654, %v1813
    %v1913 = vmul.f32 %v1654, %v1819
    %v1914 = vmul.f32 %v1654, %v1825
    %v1915 = vmul.f32 %v1654, %v1831
    %v1916 = vmul.f32 %v1655, %v1837
    %v1917 = vmul.f32 %v1655, %v1843
    %v1918 = vmul.f32 %v1655, %v1849
    %v1919 = vmul.f32 %v1655, %v1855
    %v1920 = vadd.f32 %v1616, %v1888
    %v1921 = vadd.f32 %v1617, %v1889
    %v1922 = vadd.f32 %v1618, %v1890
    %v1923 = vadd.f32 %v1619, %v1891
    %v1924 = vadd.f32 %v1620, %v1892
    %v1925 = vadd.f32 %v1621, %v1893
    %v1926 = vadd.f32 %v1622, %v1894
    %v1927 = vadd.f32 %v1623, %v1895
    %v1928 = vadd.f32 %v1624, %v1896
    %v1929 = vadd.f32 %v1625, %v1897
    %v1930 = vadd.f32 %v1626, %v1898
    %v1931 = vadd.f32 %v1627, %v1899
    %v1932 = vadd.f32 %v1628, %v1900
    %v1933 = vadd.f32 %v1629, %v1901
    %v1934 = vadd.f32 %v1630, %v1902
    %v1935 = vadd.f32 %v1631, %v1903
    %v1936 = vadd.f32 %v1632, %v1904
    %v1937 = vadd.f32 %v1633, %v1905
    %v1938 = vadd.f32 %v1634, %v1906
    %v1939 = vadd.f32 %v1635, %v1907
    %v1940 = vadd.f32 %v1636, %v1908
    %v1941 = vadd.f32 %v1637, %v1909
    %v1942 = vadd.f32 %v1638, %v1910
    %v1943 = vadd.f32 %v1639, %v1911
    %v1944 = vadd.f32 %v1640, %v1912
    %v1945 = vadd.f32 %v1641, %v1913
    %v1946 = vadd.f32 %v1642, %v1914
    %v1947 = vadd.f32 %v1643, %v1915
    %v1948 = vadd.f32 %v1644, %v1916
    %v1949 = vadd.f32 %v1645, %v1917
    %v1950 = vadd.f32 %v1646, %v1918
    %v1951 = vadd.f32 %v1647, %v1919
    %vm1952 = vcmp.lt.s32.totalorder %v114, 4
    %v1953 = vsel %vm1952, %v114, 4
    %vm1954 = vcmp.eq.s32.totalorder %v1953, 0
    %v1955 = vsel %vm1954, 1, 0
    %1956 = vset.pattern.permute.xlu0 0
    %1957 = vperm.xlu0 %1956, %v1955
    %v1958 = vpop.permute.xlu0 %1957
    %vm1959 = vcmp.eq.s32.totalorder %v1958, 1
    %v1960 = vperm.slane %v109, 0
    %v1961 = vsel %vm1959, %v1960, 0.0
    %v1962 = vadd.f32 %v1961, 0.0
    %vm1963 = vcmp.eq.s32.totalorder %v1953, 1
    %v1964 = vsel %vm1963, 1, 0
    %1965 = vset.pattern.permute.xlu0 0
    %1966 = vperm.xlu0 %1965, %v1964
    %v1967 = vpop.permute.xlu0 %1966
    %vm1968 = vcmp.eq.s32.totalorder %v1967, 1
    %v1969 = vperm.slane %v109, 1
    %v1970 = vsel %vm1968, %v1969, 0.0
    %v1971 = vadd.f32 %v1962, %v1970
    %vm1972 = vcmp.eq.s32.totalorder %v1953, 2
    %v1973 = vsel %vm1972, 1, 0
    %1974 = vset.pattern.permute.xlu0 0
    %1975 = vperm.xlu0 %1974, %v1973
    %v1976 = vpop.permute.xlu0 %1975
    %vm1977 = vcmp.eq.s32.totalorder %v1976, 1
    %v1978 = vperm.slane %v109, 2
    %v1979 = vsel %vm1977, %v1978, 0.0
    %v1980 = vadd.f32 %v1971, %v1979
    %vm1981 = vcmp.eq.s32.totalorder %v1953, 3
    %v1982 = vsel %vm1981, 1, 0
    %1983 = vset.pattern.permute.xlu0 0
    %1984 = vperm.xlu0 %1983, %v1982
    %v1985 = vpop.permute.xlu0 %1984
    %vm1986 = vcmp.eq.s32.totalorder %v1985, 1
    %v1987 = vperm.slane %v109, 3
    %v1988 = vsel %vm1986, %v1987, 0.0
    %v1989 = vadd.f32 %v1980, %v1988
    %vm1990 = vcmp.eq.s32.totalorder %v1953, 4
    %v1991 = vsel %vm1990, 1, 0
    %1992 = vset.pattern.permute.xlu0 0
    %1993 = vperm.xlu0 %1992, %v1991
    %v1994 = vpop.permute.xlu0 %1993
    %vm1995 = vcmp.eq.s32.totalorder %v1994, 1
    %v1996 = vperm.slane %v109, 4
    %v1997 = vsel %vm1995, %v1996, 0.0
    %v1998 = vadd.f32 %v1989, %v1997
    %1999 = vst.msk [vmem:[#allocation12] sm:$0xff] %vm225, %v205
    %2001 = vrot.lane.b32.xlu0 %v208, 32
    %v2002 = vpop.permute.xlu0 %2001
    %vm2004 = vcmask 523520
    %2005 = vst.msk [vmem:[#allocation12] sm:$0xff] %vm2004, %v2002
    %2038 = vset.pattern.permute.xlu0 0
    %2039 = vperm.xlu0 %2038, %v1920
    %v2040 = vpop.permute.xlu0 %2039
    %2041 = vset.pattern.permute.xlu0 0
    %2042 = vperm.xlu0 %2041, %v1921
    %v2043 = vpop.permute.xlu0 %2042
    %2044 = vset.pattern.permute.xlu0 0
    %2045 = vperm.xlu0 %2044, %v1922
    %v2046 = vpop.permute.xlu0 %2045
    %2047 = vset.pattern.permute.xlu0 0
    %2048 = vperm.xlu0 %2047, %v1923
    %v2049 = vpop.permute.xlu0 %2048
    %2050 = vset.pattern.permute.xlu0 0
    %2051 = vperm.xlu0 %2050, %v1924
    %v2052 = vpop.permute.xlu0 %2051
    %2053 = vset.pattern.permute.xlu0 0
    %2054 = vperm.xlu0 %2053, %v1925
    %v2055 = vpop.permute.xlu0 %2054
    %2056 = vset.pattern.permute.xlu0 0
    %2057 = vperm.xlu0 %2056, %v1926
    %v2058 = vpop.permute.xlu0 %2057
    %2059 = vset.pattern.permute.xlu0 0
    %2060 = vperm.xlu0 %2059, %v1927
    %v2061 = vpop.permute.xlu0 %2060
    %2062 = vset.pattern.permute.xlu0 0
    %2063 = vperm.xlu0 %2062, %v1928
    %v2064 = vpop.permute.xlu0 %2063
    %2065 = vset.pattern.permute.xlu0 0
    %2066 = vperm.xlu0 %2065, %v1929
    %v2067 = vpop.permute.xlu0 %2066
    %2068 = vset.pattern.permute.xlu0 0
    %2069 = vperm.xlu0 %2068, %v1930
    %v2070 = vpop.permute.xlu0 %2069
    %2071 = vset.pattern.permute.xlu0 0
    %2072 = vperm.xlu0 %2071, %v1931
    %v2073 = vpop.permute.xlu0 %2072
    %2074 = vset.pattern.permute.xlu0 0
    %2075 = vperm.xlu0 %2074, %v1932
    %v2076 = vpop.permute.xlu0 %2075
    %2077 = vset.pattern.permute.xlu0 0
    %2078 = vperm.xlu0 %2077, %v1933
    %v2079 = vpop.permute.xlu0 %2078
    %2080 = vset.pattern.permute.xlu0 0
    %2081 = vperm.xlu0 %2080, %v1934
    %v2082 = vpop.permute.xlu0 %2081
    %2083 = vset.pattern.permute.xlu0 0
    %2084 = vperm.xlu0 %2083, %v1935
    %v2085 = vpop.permute.xlu0 %2084
    %2086 = vset.pattern.permute.xlu0 0
    %2087 = vperm.xlu0 %2086, %v1936
    %v2088 = vpop.permute.xlu0 %2087
    %2089 = vset.pattern.permute.xlu0 0
    %2090 = vperm.xlu0 %2089, %v1937
    %v2091 = vpop.permute.xlu0 %2090
    %2092 = vset.pattern.permute.xlu0 0
    %2093 = vperm.xlu0 %2092, %v1938
    %v2094 = vpop.permute.xlu0 %2093
    %2095 = vset.pattern.permute.xlu0 0
    %2096 = vperm.xlu0 %2095, %v1939
    %v2097 = vpop.permute.xlu0 %2096
    %2098 = vset.pattern.permute.xlu0 0
    %2099 = vperm.xlu0 %2098, %v1940
    %v2100 = vpop.permute.xlu0 %2099
    %2101 = vset.pattern.permute.xlu0 0
    %2102 = vperm.xlu0 %2101, %v1941
    %v2103 = vpop.permute.xlu0 %2102
    %2104 = vset.pattern.permute.xlu0 0
    %2105 = vperm.xlu0 %2104, %v1942
    %v2106 = vpop.permute.xlu0 %2105
    %2107 = vset.pattern.permute.xlu0 0
    %2108 = vperm.xlu0 %2107, %v1943
    %v2109 = vpop.permute.xlu0 %2108
    %2110 = vset.pattern.permute.xlu0 0
    %2111 = vperm.xlu0 %2110, %v1944
    %v2112 = vpop.permute.xlu0 %2111
    %2113 = vset.pattern.permute.xlu0 0
    %2114 = vperm.xlu0 %2113, %v1945
    %v2115 = vpop.permute.xlu0 %2114
    %2116 = vset.pattern.permute.xlu0 0
    %2117 = vperm.xlu0 %2116, %v1946
    %v2118 = vpop.permute.xlu0 %2117
    %2119 = vset.pattern.permute.xlu0 0
    %2120 = vperm.xlu0 %2119, %v1947
    %v2121 = vpop.permute.xlu0 %2120
    %2122 = vset.pattern.permute.xlu0 0
    %2123 = vperm.xlu0 %2122, %v1948
    %v2124 = vpop.permute.xlu0 %2123
    %2125 = vset.pattern.permute.xlu0 0
    %2126 = vperm.xlu0 %2125, %v1949
    %v2127 = vpop.permute.xlu0 %2126
    %2128 = vset.pattern.permute.xlu0 0
    %2129 = vperm.xlu0 %2128, %v1950
    %v2130 = vpop.permute.xlu0 %2129
    %2131 = vset.pattern.permute.xlu0 0
    %2132 = vperm.xlu0 %2131, %v1951
    %v2133 = vpop.permute.xlu0 %2132
    %v2134 = vadd.s32 %v111, 4294967232
    %v2135 = vperm.slane %v2040, %v2134
    %v2136 = vadd.s32 %v111, 4294967224
    %v2137 = vperm.slane %v2043, %v2136
    %vm2138 = vcmask 654912
    %v2139 = vsel %vm2138, %v2137, %v2135
    %v2140 = vadd.s32 %v111, 4294967216
    %v2141 = vperm.slane %v2046, %v2140
    %vm2142 = vcmask 720512
    %v2143 = vsel %vm2142, %v2141, %v2139
    %v2144 = vadd.s32 %v111, 4294967208
    %v2145 = vperm.slane %v2049, %v2144
    %vm2146 = vcmask 786112
    %v2147 = vsel %vm2146, %v2145, %v2143
    %v2148 = vperm.slane %v2052, %v2134
    %v2149 = vperm.slane %v2055, %v2136
    %v2150 = vsel %vm2138, %v2149, %v2148
    %v2151 = vperm.slane %v2058, %v2140
    %v2152 = vsel %vm2142, %v2151, %v2150
    %v2153 = vperm.slane %v2061, %v2144
    %v2154 = vsel %vm2146, %v2153, %v2152
    %v2155 = vperm.slane %v2064, %v2134
    %v2156 = vperm.slane %v2067, %v2136
    %v2157 = vsel %vm2138, %v2156, %v2155
    %v2158 = vperm.slane %v2070, %v2140
    %v2159 = vsel %vm2142, %v2158, %v2157
    %v2160 = vperm.slane %v2073, %v2144
    %v2161 = vsel %vm2146, %v2160, %v2159
    %v2162 = vperm.slane %v2076, %v2134
    %v2163 = vperm.slane %v2079, %v2136
    %v2164 = vsel %vm2138, %v2163, %v2162
    %v2165 = vperm.slane %v2082, %v2140
    %v2166 = vsel %vm2142, %v2165, %v2164
    %v2167 = vperm.slane %v2085, %v2144
    %v2168 = vsel %vm2146, %v2167, %v2166
    %v2169 = vperm.slane %v2088, %v2134
    %v2170 = vperm.slane %v2091, %v2136
    %v2171 = vsel %vm2138, %v2170, %v2169
    %v2172 = vperm.slane %v2094, %v2140
    %v2173 = vsel %vm2142, %v2172, %v2171
    %v2174 = vperm.slane %v2097, %v2144
    %v2175 = vsel %vm2146, %v2174, %v2173
    %v2176 = vperm.slane %v2100, %v2134
    %v2177 = vperm.slane %v2103, %v2136
    %v2178 = vsel %vm2138, %v2177, %v2176
    %v2179 = vperm.slane %v2106, %v2140
    %v2180 = vsel %vm2142, %v2179, %v2178
    %v2181 = vperm.slane %v2109, %v2144
    %v2182 = vsel %vm2146, %v2181, %v2180
    %v2183 = vperm.slane %v2112, %v2134
    %v2184 = vperm.slane %v2115, %v2136
    %v2185 = vsel %vm2138, %v2184, %v2183
    %v2186 = vperm.slane %v2118, %v2140
    %v2187 = vsel %vm2142, %v2186, %v2185
    %v2188 = vperm.slane %v2121, %v2144
    %v2189 = vsel %vm2146, %v2188, %v2187
    %v2190 = vperm.slane %v2124, %v2134
    %v2191 = vperm.slane %v2127, %v2136
    %v2192 = vsel %vm2138, %v2191, %v2190
    %v2193 = vperm.slane %v2130, %v2140
    %v2194 = vsel %vm2142, %v2193, %v2192
    %v2195 = vperm.slane %v2133, %v2144
    %v2196 = vsel %vm2146, %v2195, %v2194
    %v2197 = vsel %vm488, %v2154, %v2147
    %v2198 = vsel %vm490, %v2161, %v2197
    %v2199 = vsel %vm492, %v2168, %v2198
    %v2200 = vsel %vm494, %v2175, %v2199
    %v2201 = vsel %vm496, %v2182, %v2200
    %v2202 = vsel %vm498, %v2189, %v2201
    %v2203 = vsel %vm500, %v2196, %v2202
    %vm2205 = vcmask 785920
    %2206 = vst.msk [vmem:[#allocation12] sm:$0xff] %vm2205, %v2203
    %2208 = vrot.lane.b32.xlu0 %v1998, 96
    %v2209 = vpop.permute.xlu0 %2208
    %vm2211 = vcmask 917248
    %2212 = vst.msk [vmem:[#allocation12] sm:$0xff] %vm2211, %v2209
    %s2213 = scalar_lea.vmem %s0, 16
    %v2214 = vld [vmem:[%s2213] sm:$0xff]
    %v2215 = vld [vmem:[%s2213 + $0x8] sm:$0xff]
    %s2216 = scalar_lea.vmem %s4, 8
    %v2217 = vld [vmem:[%s2216] sm:$0xff]
    %s2218 = scalar_lea.vmem %s1, 8
    %v2219 = vld [vmem:[%s2218] sm:$0xff]
    %2220 = vst.msk [vmem:[#allocation2] sm:$0xff] %vm116, %v2219
    %s2221 = scalar_lea.vmem [#allocation4], 8
    %v2222 = vld [vmem:[%s2221] sm:$0xff]
    %2223 = vst.msk [vmem:[#allocation2 + $0x8] sm:$0xff] %vm116, %v2222
    %s2224 = scalar_lea.vmem [#allocation7], 32
    %v2225 = vld [vmem:[%s2224] sm:$0xf]
    %v2226 = vld [vmem:[%s2224 + $0x4] sm:$0xf]
    %v2227 = vld [vmem:[%s2224 + $0x8] sm:$0xf]
    %v2228 = vld [vmem:[%s2224 + $0xc] sm:$0xf]
    %v2229 = vld [vmem:[%s2224 + $0x10] sm:$0xf]
    %v2230 = vld [vmem:[%s2224 + $0x14] sm:$0xf]
    %v2231 = vld [vmem:[%s2224 + $0x18] sm:$0xf]
    %v2232 = vld [vmem:[%s2224 + $0x1c] sm:$0xf]
    %2241 = vst [vmem:[#allocation1] ss:$2 sm:$0xff] %v2225
    %s2242 = scalar_lea.vmem [#allocation1], 1
    %2243 = vst [vmem:[%s2242] ss:$2 sm:$0xff] %v2226
    %s2244 = scalar_lea.vmem [#allocation1], 16
    %2245 = vst [vmem:[%s2244] ss:$2 sm:$0xff] %v2227
    %s2246 = scalar_lea.vmem [#allocation1], 17
    %2247 = vst [vmem:[%s2246] ss:$2 sm:$0xff] %v2228
    %s2248 = scalar_lea.vmem [#allocation1], 32
    %2249 = vst [vmem:[%s2248] ss:$2 sm:$0xff] %v2229
    %s2250 = scalar_lea.vmem [#allocation1], 33
    %2251 = vst [vmem:[%s2250] ss:$2 sm:$0xff] %v2230
    %s2252 = scalar_lea.vmem [#allocation1], 48
    %2253 = vst [vmem:[%s2252] ss:$2 sm:$0xff] %v2231
    %s2254 = scalar_lea.vmem [#allocation1], 49
    %2255 = vst [vmem:[%s2254] ss:$2 sm:$0xff] %v2232
    %v2256 = vld.sshfl [vmem:[#allocation1] sm:$0xff pattern:$0x75316420]
    %v2257 = vld.sshfl [vmem:[#allocation1 + $0x10] sm:$0xff pattern:$0x75316420]
    %v2258 = vld.sshfl [vmem:[#allocation1 + $0x20] sm:$0xff pattern:$0x75316420]
    %v2259 = vld.sshfl [vmem:[#allocation1 + $0x30] sm:$0xff pattern:$0x75316420]
    %2264 = vst.msk [vmem:[#allocation2 + $0x10] sm:$0xff] %vm116, %v2256
    %2265 = vst.msk [vmem:[#allocation2 + $0x18] sm:$0xff] %vm116, %v2257
    %2266 = vst.msk [vmem:[#allocation2 + $0x20] sm:$0xff] %vm116, %v2258
    %2267 = vst.msk [vmem:[#allocation2 + $0x28] sm:$0xff] %vm116, %v2259
    %v2268 = vld [vmem:[#allocation2] sm:$0xff]
    %v2269 = vld [vmem:[#allocation2 + $0x8] sm:$0xff]
    %v2270 = vld [vmem:[#allocation2 + $0x10] sm:$0xff]
    %v2271 = vld [vmem:[#allocation2 + $0x18] sm:$0xff]
    %v2272 = vld [vmem:[#allocation2 + $0x20] sm:$0xff]
    %v2273 = vld [vmem:[#allocation2 + $0x28] sm:$0xff]
    %v2275 = vsel %vm116, %v2268, 0
    %v2278 = vsel %vm116, %v2269, 0
    %v2281 = vsel %vm116, %v2270, 0
    %v2284 = vsel %vm116, %v2271, 0
    %v2287 = vsel %vm116, %v2272, 0
    %v2290 = vsel %vm116, %v2273, 0
    %2292 = vmatpush.msra.mxu0 0.0
    %2293 = vmatpush.msra.mxu0 0.0
    %2294 = vmatpush.msra.mxu0 0.0
    %2295 = vmatpush.msra.mxu0 0.0
    %2296 = vmatpush.msra.mxu0 0.0
    %2297 = vmatpush.msra.mxu0 0.0
    %2298 = vmatpush.msra.mxu0 0.0
    %2299 = vmatpush.msra.mxu0 0.0
    %2300 = vmatpush.msra.mxu0 0.0
    %2301 = vmatpush.msra.mxu0 0.0
    %2302 = vmatpush.msra.mxu0 0.0
    %2303 = vmatpush.msra.mxu0 0.0
    %2304 = vmatpush.msra.mxu0 0.0
    %2305 = vmatpush.msra.mxu0 0.0
    %2306 = vmatpush.msra.mxu0 %v2215
    %2307 = vmatpush.msra.mxu0 %v2214
    %2308 = vmatmul.f32.gmra.mxu0 %v2275
    %v2309 = vpop.f32.mrf.mxu0
    %v2310 = vadd.f32 0.0, %v2309
    %2311 = vmatmul.f32.gmra.mxu0 %v2278
    %v2312 = vpop.f32.mrf.mxu0
    %v2313 = vadd.f32 0.0, %v2312
    %2314 = vmatmul.f32.gmra.mxu0 %v2281
    %v2315 = vpop.f32.mrf.mxu0
    %v2316 = vadd.f32 0.0, %v2315
    %2317 = vmatmul.f32.gmra.mxu0 %v2284
    %v2318 = vpop.f32.mrf.mxu0
    %v2319 = vadd.f32 0.0, %v2318
    %2320 = vmatmul.f32.gmra.mxu0 %v2287
    %v2321 = vpop.f32.mrf.mxu0
    %v2322 = vadd.f32 0.0, %v2321
    %2323 = vmatmul.f32.gmra.mxu0 %v2290
    %v2324 = vpop.f32.mrf.mxu0
    %v2325 = vadd.f32 0.0, %v2324
    %2326 = vdwg.mxu0
    %v2328 = vsel %vm225, %v2316, 0
    %v2331 = vsel %vm225, %v2319, 0
    %v2334 = vsel %vm225, %v2322, 0
    %v2337 = vsel %vm225, %v2325, 0
    %2339 = vmatpush.msra.mxu0 0.0
    %2340 = vmatpush.msra.mxu0 0.0
    %2341 = vmatpush.msra.mxu0 0.0
    %2342 = vmatpush.msra.mxu0 0.0
    %2343 = vmatpush.msra.mxu0 0.0
    %2344 = vmatpush.msra.mxu0 0.0
    %2345 = vmatpush.msra.mxu0 0.0
    %2346 = vmatpush.msra.mxu0 0.0
    %2347 = vmatpush.msra.mxu0 0.0
    %2348 = vmatpush.msra.mxu0 0.0
    %2349 = vmatpush.msra.mxu0 0.0
    %2350 = vmatpush.msra.mxu0 0.0
    %2351 = vmatpush.msra.mxu0 %v102
    %2352 = vmatpush.msra.mxu0 %v101
    %2353 = vmatpush.msra.mxu0 %v100
    %2354 = vmatpush.msra.mxu0 %v99
    %2355 = vmatmul.f32.gmra.mxu0 %v2328
    %v2356 = vpop.f32.mrf.mxu0
    %v2357 = vadd.f32 %v223, %v2356
    %2358 = vmatmul.f32.gmra.mxu0 %v2331
    %v2359 = vpop.f32.mrf.mxu0
    %v2360 = vadd.f32 %v223, %v2359
    %2361 = vmatmul.f32.gmra.mxu0 %v2334
    %v2362 = vpop.f32.mrf.mxu0
    %v2363 = vadd.f32 %v223, %v2362
    %2364 = vmatmul.f32.gmra.mxu0 %v2337
    %v2365 = vpop.f32.mrf.mxu0
    %v2366 = vadd.f32 %v223, %v2365
    %2367 = vdwg.mxu0
    %v2368 = vmax.f32 %v2357, 0.0
    %v2369 = vmax.f32 %v2360, 0.0
    %v2370 = vmax.f32 %v2363, 0.0
    %v2371 = vmax.f32 %v2366, 0.0
    %v2373 = vsel %vm225, %v2368, 0
    %v2376 = vsel %vm225, %v2369, 0
    %v2379 = vsel %vm225, %v2370, 0
    %v2382 = vsel %vm225, %v2371, 0
    %2384 = vmatpush.msra.mxu0 0.0
    %2385 = vmatpush.msra.mxu0 0.0
    %2386 = vmatpush.msra.mxu0 0.0
    %2387 = vmatpush.msra.mxu0 0.0
    %2388 = vmatpush.msra.mxu0 0.0
    %2389 = vmatpush.msra.mxu0 0.0
    %2390 = vmatpush.msra.mxu0 0.0
    %2391 = vmatpush.msra.mxu0 0.0
    %2392 = vmatpush.msra.mxu0 0.0
    %2393 = vmatpush.msra.mxu0 0.0
    %2394 = vmatpush.msra.mxu0 0.0
    %2395 = vmatpush.msra.mxu0 0.0
    %2396 = vmatpush.msra.mxu0 %v107
    %2397 = vmatpush.msra.mxu0 %v106
    %2398 = vmatpush.msra.mxu0 %v105
    %2399 = vmatpush.msra.mxu0 %v104
    %2400 = vmatmul.f32.gmra.mxu0 %v2373
    %v2401 = vpop.f32.mrf.mxu0
    %v2402 = vadd.f32 %v272, %v2401
    %2403 = vmatmul.f32.gmra.mxu0 %v2376
    %v2404 = vpop.f32.mrf.mxu0
    %v2405 = vadd.f32 %v272, %v2404
    %2406 = vmatmul.f32.gmra.mxu0 %v2379
    %v2407 = vpop.f32.mrf.mxu0
    %v2408 = vadd.f32 %v272, %v2407
    %2409 = vmatmul.f32.gmra.mxu0 %v2382
    %v2410 = vpop.f32.mrf.mxu0
    %v2411 = vadd.f32 %v272, %v2410
    %2412 = vdwg.mxu0
    %v2417 = vrot.slane %v2402, 4
    %v2418 = vrot.slane %v2405, 4
    %v2419 = vrot.slane %v2408, 4
    %v2420 = vrot.slane %v2411, 4
    %vm2425 = vcmp.gt.s32.totalorder %v2217, 1
    %v2426 = vsel %vm2425, %v2217, 1
    %2427 = vset.pattern.permute.xlu0 0
    %2428 = vperm.xlu0 %2427, %v2426
    %v2429 = vpop.permute.xlu0 %2428
    %vm2430 = vcmp.lt.s32.totalorder %v111, %v2429
    %v2431 = vsel %vm2430, 1, 0
    %v2432 = vcvt.s32.f32 %v2431
    %v2434 = vrot.slane %v2432, 4
    %2435 = vst [vmem:[#allocation1] ss:$2 sm:$0xff] %v2432
    %s2436 = scalar_lea.vmem [#allocation1], 1
    %2437 = vst [vmem:[%s2436] ss:$2 sm:$0xff] %v2434
    %v2438 = vld.sshfl [vmem:[#allocation1] sm:$0xff pattern:$0x75316420]
    %v2439 = vperm.slane %v2438, 0
    %v2440 = vlaneseq
    %v2441 = vshrl.u32 %v2440, 7
    %2443 = vset.pattern.permute.xlu0 %v2441
    %2444 = vperm.xlu0 %2443, %v2439
    %v2445 = vpop.permute.xlu0 %2444
    %v2446 = vperm.slane %v2438, 1
    %v2447 = vlaneseq
    %v2448 = vshrl.u32 %v2447, 7
    %2450 = vset.pattern.permute.xlu0 %v2448
    %2451 = vperm.xlu0 %2450, %v2446
    %v2452 = vpop.permute.xlu0 %2451
    %v2453 = vperm.slane %v2438, 2
    %v2454 = vlaneseq
    %v2455 = vshrl.u32 %v2454, 7
    %2457 = vset.pattern.permute.xlu0 %v2455
    %2458 = vperm.xlu0 %2457, %v2453
    %v2459 = vpop.permute.xlu0 %2458
    %v2460 = vperm.slane %v2438, 3
    %v2461 = vlaneseq
    %v2462 = vshrl.u32 %v2461, 7
    %2464 = vset.pattern.permute.xlu0 %v2462
    %2465 = vperm.xlu0 %2464, %v2460
    %v2466 = vpop.permute.xlu0 %2465
    %v2467 = vperm.slane %v2438, 4
    %v2468 = vlaneseq
    %v2469 = vshrl.u32 %v2468, 7
    %2471 = vset.pattern.permute.xlu0 %v2469
    %2472 = vperm.xlu0 %2471, %v2467
    %v2473 = vpop.permute.xlu0 %2472
    %v2474 = vperm.slane %v2438, 5
    %v2475 = vlaneseq
    %v2476 = vshrl.u32 %v2475, 7
    %2478 = vset.pattern.permute.xlu0 %v2476
    %2479 = vperm.xlu0 %2478, %v2474
    %v2480 = vpop.permute.xlu0 %2479
    %v2481 = vperm.slane %v2438, 6
    %v2482 = vlaneseq
    %v2483 = vshrl.u32 %v2482, 7
    %2485 = vset.pattern.permute.xlu0 %v2483
    %2486 = vperm.xlu0 %2485, %v2481
    %v2487 = vpop.permute.xlu0 %2486
    %v2488 = vperm.slane %v2438, 7
    %v2489 = vlaneseq
    %v2490 = vshrl.u32 %v2489, 7
    %2492 = vset.pattern.permute.xlu0 %v2490
    %2493 = vperm.xlu0 %2492, %v2488
    %v2494 = vpop.permute.xlu0 %2493
    %v2503 = vmul.f32 %v2402, %v2445
    %v2504 = vmul.f32 %v2417, %v2452
    %v2505 = vmul.f32 %v2405, %v2459
    %v2506 = vmul.f32 %v2418, %v2466
    %v2507 = vmul.f32 %v2408, %v2473
    %v2508 = vmul.f32 %v2419, %v2480
    %v2509 = vmul.f32 %v2411, %v2487
    %v2510 = vmul.f32 %v2420, %v2494
    %vm2511 = vcmp.ne.f32.partialorder %v2503, 0.0
    %vm2512 = vcmp.ne.f32.partialorder %v2504, 0.0
    %vm2513 = vcmp.ne.f32.partialorder %v2505, 0.0
    %vm2514 = vcmp.ne.f32.partialorder %v2506, 0.0
    %vm2515 = vcmp.ne.f32.partialorder %v2507, 0.0
    %vm2516 = vcmp.ne.f32.partialorder %v2508, 0.0
    %vm2517 = vcmp.ne.f32.partialorder %v2509, 0.0
    %vm2518 = vcmp.ne.f32.partialorder %v2510, 0.0
    %v2519 = vsel %vm2511, %v2503, -8.999999e+09
    %v2520 = vsel %vm2512, %v2504, -8.999999e+09
    %v2521 = vsel %vm2513, %v2505, -8.999999e+09
    %v2522 = vsel %vm2514, %v2506, -8.999999e+09
    %v2523 = vsel %vm2515, %v2507, -8.999999e+09
    %v2524 = vsel %vm2516, %v2508, -8.999999e+09
    %v2525 = vsel %vm2517, %v2509, -8.999999e+09
    %v2526 = vsel %vm2518, %v2510, -8.999999e+09
    %2535 = vst [vmem:[#allocation1] ss:$2 sm:$0xff] %v2519
    %v2536 = vld.sshfl [vmem:[#allocation1] sm:$0xff pattern:$0x75316420]
    %s2537 = scalar_lea.vmem [#allocation1], 16
    %2538 = vst [vmem:[%s2537] ss:$2 sm:$0xff] %v2520
    %v2539 = vld.sshfl [vmem:[#allocation1 + $0x10] sm:$0xff pattern:$0x75316420]
    %s2540 = scalar_lea.vmem [#allocation1], 32
    %2541 = vst [vmem:[%s2540] ss:$2 sm:$0xff] %v2521
    %v2542 = vld.sshfl [vmem:[#allocation1 + $0x20] sm:$0xff pattern:$0x75316420]
    %s2543 = scalar_lea.vmem [#allocation1], 48
    %2544 = vst [vmem:[%s2543] ss:$2 sm:$0xff] %v2522
    %v2545 = vld.sshfl [vmem:[#allocation1 + $0x30] sm:$0xff pattern:$0x75316420]
    %2546 = vst [vmem:[#allocation1] ss:$2 sm:$0xff] %v2523
    %v2547 = vld.sshfl [vmem:[#allocation1] sm:$0xff pattern:$0x75316420]
    %2548 = vst [vmem:[%s2537] ss:$2 sm:$0xff] %v2524
    %v2549 = vld.sshfl [vmem:[#allocation1 + $0x10] sm:$0xff pattern:$0x75316420]
    %2550 = vst [vmem:[%s2540] ss:$2 sm:$0xff] %v2525
    %v2551 = vld.sshfl [vmem:[#allocation1 + $0x20] sm:$0xff pattern:$0x75316420]
    %2552 = vst [vmem:[%s2543] ss:$2 sm:$0xff] %v2526
    %v2553 = vld.sshfl [vmem:[#allocation1 + $0x30] sm:$0xff pattern:$0x75316420]
    %2554 = vset.pattern.permute.xlu0 0
    %2555 = vperm.xlu0 %2554, %v2536
    %v2556 = vpop.permute.xlu0 %2555
    %2557 = vset.pattern.permute.xlu0 0
    %2558 = vperm.xlu0 %2557, %v2539
    %v2559 = vpop.permute.xlu0 %2558
    %2560 = vset.pattern.permute.xlu0 0
    %2561 = vperm.xlu0 %2560, %v2542
    %v2562 = vpop.permute.xlu0 %2561
    %2563 = vset.pattern.permute.xlu0 0
    %2564 = vperm.xlu0 %2563, %v2545
    %v2565 = vpop.permute.xlu0 %2564
    %2566 = vset.pattern.permute.xlu0 0
    %2567 = vperm.xlu0 %2566, %v2547
    %v2568 = vpop.permute.xlu0 %2567
    %2569 = vset.pattern.permute.xlu0 0
    %2570 = vperm.xlu0 %2569, %v2549
    %v2571 = vpop.permute.xlu0 %2570
    %2572 = vset.pattern.permute.xlu0 0
    %2573 = vperm.xlu0 %2572, %v2551
    %v2574 = vpop.permute.xlu0 %2573
    %2575 = vset.pattern.permute.xlu0 0
    %2576 = vperm.xlu0 %2575, %v2553
    %v2577 = vpop.permute.xlu0 %2576
    %v2578 = vperm.slane %v2556, %v111
    %v2579 = vperm.slane %v2559, %v111
    %v2580 = vperm.slane %v2562, %v111
    %v2581 = vperm.slane %v2565, %v111
    %v2582 = vperm.slane %v2568, %v111
    %v2583 = vperm.slane %v2571, %v111
    %v2584 = vperm.slane %v2574, %v111
    %v2585 = vperm.slane %v2577, %v111
    %v2586 = vsel %vm488, %v2579, %v2578
    %v2587 = vsel %vm490, %v2580, %v2586
    %v2588 = vsel %vm492, %v2581, %v2587
    %v2589 = vsel %vm494, %v2582, %v2588
    %v2590 = vsel %vm496, %v2583, %v2589
    %v2591 = vsel %vm498, %v2584, %v2590
    %v2592 = vsel %vm500, %v2585, %v2591
    %v2594 = vsel %vm503, %v2592, -inf
    %2595 = vmax.xlane.f32.xlu0 %v2594
    %v2596 = vpop.xlane.xlu0 %2595
    %v2599 = vunpack.c.l.s4 839922192
    %v2600 = vunpack.c.0.s8 %v2599
    %v2601 = vperm.slane %v2596, %v2600
    %v2603 = vunpack.c.l.s4 1985246804
    %v2604 = vunpack.c.0.s8 %v2603
    %v2605 = vperm.slane %v2596, %v2604
    %2606 = vst [vmem:[#allocation1] ss:$2 sm:$0xff] %v2601
    %s2607 = scalar_lea.vmem [#allocation1], 1
    %2608 = vst [vmem:[%s2607] ss:$2 sm:$0xff] %v2605
    %v2609 = vld.sshfl [vmem:[#allocation1] sm:$0xff pattern:$0x75316420]
    %v2610 = vperm.slane %v2609, 0
    %v2611 = vlaneseq
    %v2612 = vshrl.u32 %v2611, 7
    %2614 = vset.pattern.permute.xlu0 %v2612
    %2615 = vperm.xlu0 %2614, %v2610
    %v2616 = vpop.permute.xlu0 %2615
    %v2617 = vperm.slane %v2609, 1
    %v2618 = vlaneseq
    %v2619 = vshrl.u32 %v2618, 7
    %2621 = vset.pattern.permute.xlu0 %v2619
    %2622 = vperm.xlu0 %2621, %v2617
    %v2623 = vpop.permute.xlu0 %2622
    %v2624 = vperm.slane %v2609, 2
    %v2625 = vlaneseq
    %v2626 = vshrl.u32 %v2625, 7
    %2628 = vset.pattern.permute.xlu0 %v2626
    %2629 = vperm.xlu0 %2628, %v2624
    %v2630 = vpop.permute.xlu0 %2629
    %v2631 = vperm.slane %v2609, 3
    %v2632 = vlaneseq
    %v2633 = vshrl.u32 %v2632, 7
    %2635 = vset.pattern.permute.xlu0 %v2633
    %2636 = vperm.xlu0 %2635, %v2631
    %v2637 = vpop.permute.xlu0 %2636
    %v2638 = vperm.slane %v2609, 4
    %v2639 = vlaneseq
    %v2640 = vshrl.u32 %v2639, 7
    %2642 = vset.pattern.permute.xlu0 %v2640
    %2643 = vperm.xlu0 %2642, %v2638
    %v2644 = vpop.permute.xlu0 %2643
    %v2645 = vperm.slane %v2609, 5
    %v2646 = vlaneseq
    %v2647 = vshrl.u32 %v2646, 7
    %2649 = vset.pattern.permute.xlu0 %v2647
    %2650 = vperm.xlu0 %2649, %v2645
    %v2651 = vpop.permute.xlu0 %2650
    %v2652 = vperm.slane %v2609, 6
    %v2653 = vlaneseq
    %v2654 = vshrl.u32 %v2653, 7
    %2656 = vset.pattern.permute.xlu0 %v2654
    %2657 = vperm.xlu0 %2656, %v2652
    %v2658 = vpop.permute.xlu0 %2657
    %v2659 = vperm.slane %v2609, 7
    %v2660 = vlaneseq
    %v2661 = vshrl.u32 %v2660, 7
    %2663 = vset.pattern.permute.xlu0 %v2661
    %2664 = vperm.xlu0 %2663, %v2659
    %v2665 = vpop.permute.xlu0 %2664
    %v2674 = vsub.f32 %v2519, %v2616
    %v2675 = vsub.f32 %v2520, %v2623
    %v2676 = vsub.f32 %v2521, %v2630
    %v2677 = vsub.f32 %v2522, %v2637
    %v2678 = vsub.f32 %v2523, %v2644
    %v2679 = vsub.f32 %v2524, %v2651
    %v2680 = vsub.f32 %v2525, %v2658
    %v2681 = vsub.f32 %v2526, %v2665
    %v2682 = vmul.f32 %v2674, 1.442695
    %v2683 = vpow.pop %v2682
    %v2684 = vmul.f32 %v2675, 1.442695
    %v2685 = vpow.pop %v2684
    %v2686 = vmul.f32 %v2676, 1.442695
    %v2687 = vpow.pop %v2686
    %v2688 = vmul.f32 %v2677, 1.442695
    %v2689 = vpow.pop %v2688
    %v2690 = vmul.f32 %v2678, 1.442695
    %v2691 = vpow.pop %v2690
    %v2692 = vmul.f32 %v2679, 1.442695
    %v2693 = vpow.pop %v2692
    %v2694 = vmul.f32 %v2680, 1.442695
    %v2695 = vpow.pop %v2694
    %v2696 = vmul.f32 %v2681, 1.442695
    %v2697 = vpow.pop %v2696
    %2706 = vst [vmem:[#allocation1] ss:$2 sm:$0xff] %v2683
    %v2707 = vld.sshfl [vmem:[#allocation1] sm:$0xff pattern:$0x75316420]
    %s2708 = scalar_lea.vmem [#allocation1], 16
    %2709 = vst [vmem:[%s2708] ss:$2 sm:$0xff] %v2685
    %v2710 = vld.sshfl [vmem:[#allocation1 + $0x10] sm:$0xff pattern:$0x75316420]
    %s2711 = scalar_lea.vmem [#allocation1], 32
    %2712 = vst [vmem:[%s2711] ss:$2 sm:$0xff] %v2687
    %v2713 = vld.sshfl [vmem:[#allocation1 + $0x20] sm:$0xff pattern:$0x75316420]
    %s2714 = scalar_lea.vmem [#allocation1], 48
    %2715 = vst [vmem:[%s2714] ss:$2 sm:$0xff] %v2689
    %v2716 = vld.sshfl [vmem:[#allocation1 + $0x30] sm:$0xff pattern:$0x75316420]
    %2717 = vst [vmem:[#allocation1] ss:$2 sm:$0xff] %v2691
    %v2718 = vld.sshfl [vmem:[#allocation1] sm:$0xff pattern:$0x75316420]
    %2719 = vst [vmem:[%s2708] ss:$2 sm:$0xff] %v2693
    %v2720 = vld.sshfl [vmem:[#allocation1 + $0x10] sm:$0xff pattern:$0x75316420]
    %2721 = vst [vmem:[%s2711] ss:$2 sm:$0xff] %v2695
    %v2722 = vld.sshfl [vmem:[#allocation1 + $0x20] sm:$0xff pattern:$0x75316420]
    %2723 = vst [vmem:[%s2714] ss:$2 sm:$0xff] %v2697
    %v2724 = vld.sshfl [vmem:[#allocation1 + $0x30] sm:$0xff pattern:$0x75316420]
    %2725 = vset.pattern.permute.xlu0 0
    %2726 = vperm.xlu0 %2725, %v2707
    %v2727 = vpop.permute.xlu0 %2726
    %2728 = vset.pattern.permute.xlu0 0
    %2729 = vperm.xlu0 %2728, %v2710
    %v2730 = vpop.permute.xlu0 %2729
    %2731 = vset.pattern.permute.xlu0 0
    %2732 = vperm.xlu0 %2731, %v2713
    %v2733 = vpop.permute.xlu0 %2732
    %2734 = vset.pattern.permute.xlu0 0
    %2735 = vperm.xlu0 %2734, %v2716
    %v2736 = vpop.permute.xlu0 %2735
    %2737 = vset.pattern.permute.xlu0 0
    %2738 = vperm.xlu0 %2737, %v2718
    %v2739 = vpop.permute.xlu0 %2738
    %2740 = vset.pattern.permute.xlu0 0
    %2741 = vperm.xlu0 %2740, %v2720
    %v2742 = vpop.permute.xlu0 %2741
    %2743 = vset.pattern.permute.xlu0 0
    %2744 = vperm.xlu0 %2743, %v2722
    %v2745 = vpop.permute.xlu0 %2744
    %2746 = vset.pattern.permute.xlu0 0
    %2747 = vperm.xlu0 %2746, %v2724
    %v2748 = vpop.permute.xlu0 %2747
    %v2749 = vperm.slane %v2727, %v111
    %v2750 = vperm.slane %v2730, %v111
    %v2751 = vperm.slane %v2733, %v111
    %v2752 = vperm.slane %v2736, %v111
    %v2753 = vperm.slane %v2739, %v111
    %v2754 = vperm.slane %v2742, %v111
    %v2755 = vperm.slane %v2745, %v111
    %v2756 = vperm.slane %v2748, %v111
    %v2757 = vsel %vm488, %v2750, %v2749
    %v2758 = vsel %vm490, %v2751, %v2757
    %v2759 = vsel %vm492, %v2752, %v2758
    %v2760 = vsel %vm494, %v2753, %v2759
    %v2761 = vsel %vm496, %v2754, %v2760
    %v2762 = vsel %vm498, %v2755, %v2761
    %v2763 = vsel %vm500, %v2756, %v2762
    %v2765 = vsel %vm503, %v2763, 0.0
    %2766 = vadd.xlane.f32.xlu0 %v2765
    %v2767 = vpop.xlane.xlu0 %2766
    %v2768 = vrcp.pop %v2767
    %v2771 = vunpack.c.l.s4 839922192
    %v2772 = vunpack.c.0.s8 %v2771
    %v2773 = vperm.slane %v2768, %v2772
    %v2775 = vunpack.c.l.s4 1985246804
    %v2776 = vunpack.c.0.s8 %v2775
    %v2777 = vperm.slane %v2768, %v2776
    %2778 = vst [vmem:[#allocation1] ss:$2 sm:$0xff] %v2773
    %s2779 = scalar_lea.vmem [#allocation1], 1
    %2780 = vst [vmem:[%s2779] ss:$2 sm:$0xff] %v2777
    %v2781 = vld.sshfl [vmem:[#allocation1] sm:$0xff pattern:$0x75316420]
    %v2782 = vperm.slane %v2781, 0
    %v2783 = vlaneseq
    %v2784 = vshrl.u32 %v2783, 7
    %2786 = vset.pattern.permute.xlu0 %v2784
    %2787 = vperm.xlu0 %2786, %v2782
    %v2788 = vpop.permute.xlu0 %2787
    %v2789 = vperm.slane %v2781, 1
    %v2790 = vlaneseq
    %v2791 = vshrl.u32 %v2790, 7
    %2793 = vset.pattern.permute.xlu0 %v2791
    %2794 = vperm.xlu0 %2793, %v2789
    %v2795 = vpop.permute.xlu0 %2794
    %v2796 = vperm.slane %v2781, 2
    %v2797 = vlaneseq
    %v2798 = vshrl.u32 %v2797, 7
    %2800 = vset.pattern.permute.xlu0 %v2798
    %2801 = vperm.xlu0 %2800, %v2796
    %v2802 = vpop.permute.xlu0 %2801
    %v2803 = vperm.slane %v2781, 3
    %v2804 = vlaneseq
    %v2805 = vshrl.u32 %v2804, 7
    %2807 = vset.pattern.permute.xlu0 %v2805
    %2808 = vperm.xlu0 %2807, %v2803
    %v2809 = vpop.permute.xlu0 %2808
    %v2810 = vperm.slane %v2781, 4
    %v2811 = vlaneseq
    %v2812 = vshrl.u32 %v2811, 7
    %2814 = vset.pattern.permute.xlu0 %v2812
    %2815 = vperm.xlu0 %2814, %v2810
    %v2816 = vpop.permute.xlu0 %2815
    %v2817 = vperm.slane %v2781, 5
    %v2818 = vlaneseq
    %v2819 = vshrl.u32 %v2818, 7
    %2821 = vset.pattern.permute.xlu0 %v2819
    %2822 = vperm.xlu0 %2821, %v2817
    %v2823 = vpop.permute.xlu0 %2822
    %v2824 = vperm.slane %v2781, 6
    %v2825 = vlaneseq
    %v2826 = vshrl.u32 %v2825, 7
    %2828 = vset.pattern.permute.xlu0 %v2826
    %2829 = vperm.xlu0 %2828, %v2824
    %v2830 = vpop.permute.xlu0 %2829
    %v2831 = vperm.slane %v2781, 7
    %v2832 = vlaneseq
    %v2833 = vshrl.u32 %v2832, 7
    %2835 = vset.pattern.permute.xlu0 %v2833
    %2836 = vperm.xlu0 %2835, %v2831
    %v2837 = vpop.permute.xlu0 %2836
    %v2846 = vmul.f32 %v2683, %v2788
    %v2847 = vmul.f32 %v2685, %v2795
    %v2848 = vmul.f32 %v2687, %v2802
    %v2849 = vmul.f32 %v2689, %v2809
    %v2850 = vmul.f32 %v2691, %v2816
    %v2851 = vmul.f32 %v2693, %v2823
    %v2852 = vmul.f32 %v2695, %v2830
    %v2853 = vmul.f32 %v2697, %v2837
    %v2854 = vrot.slane %v2316, 4
    %v2855 = vrot.slane %v2319, 4
    %v2856 = vrot.slane %v2322, 4
    %v2857 = vrot.slane %v2325, 4
    %v2858 = vperm.slane %v2846, 0
    %v2859 = vperm.slane %v2847, 0
    %v2860 = vperm.slane %v2848, 0
    %v2861 = vperm.slane %v2849, 0
    %v2862 = vperm.slane %v2850, 0
    %v2863 = vperm.slane %v2851, 0
    %v2864 = vperm.slane %v2852, 0
    %v2865 = vperm.slane %v2853, 0
    %v2866 = vperm.slane %v2316, 0
    %v2867 = vperm.slane %v2854, 0
    %v2868 = vperm.slane %v2319, 0
    %v2869 = vperm.slane %v2855, 0
    %v2870 = vperm.slane %v2322, 0
    %v2871 = vperm.slane %v2856, 0
    %v2872 = vperm.slane %v2325, 0
    %v2873 = vperm.slane %v2857, 0
    %v2874 = vlaneseq
    %v2875 = vshrl.u32 %v2874, 7
    %2877 = vset.pattern.permute.xlu0 %v2875
    %2878 = vperm.xlu0 %2877, %v2866
    %v2879 = vpop.permute.xlu0 %2878
    %v2880 = vlaneseq
    %v2881 = vshrl.u32 %v2880, 7
    %v2882 = vadd.s32 %v2881, 8
    %2883 = vset.pattern.permute.xlu0 %v2882
    %2884 = vperm.xlu0 %2883, %v2866
    %v2885 = vpop.permute.xlu0 %2884
    %v2886 = vlaneseq
    %v2887 = vshrl.u32 %v2886, 7
    %v2888 = vadd.s32 %v2887, 16
    %2889 = vset.pattern.permute.xlu0 %v2888
    %2890 = vperm.xlu0 %2889, %v2866
    %v2891 = vpop.permute.xlu0 %2890
    %v2892 = vlaneseq
    %v2893 = vshrl.u32 %v2892, 7
    %v2894 = vadd.s32 %v2893, 24
    %2895 = vset.pattern.permute.xlu0 %v2894
    %2896 = vperm.xlu0 %2895, %v2866
    %v2897 = vpop.permute.xlu0 %2896
    %v2898 = vlaneseq
    %v2899 = vshrl.u32 %v2898, 7
    %2901 = vset.pattern.permute.xlu0 %v2899
    %2902 = vperm.xlu0 %2901, %v2867
    %v2903 = vpop.permute.xlu0 %2902
    %v2904 = vlaneseq
    %v2905 = vshrl.u32 %v2904, 7
    %v2906 = vadd.s32 %v2905, 8
    %2907 = vset.pattern.permute.xlu0 %v2906
    %2908 = vperm.xlu0 %2907, %v2867
    %v2909 = vpop.permute.xlu0 %2908
    %v2910 = vlaneseq
    %v2911 = vshrl.u32 %v2910, 7
    %v2912 = vadd.s32 %v2911, 16
    %2913 = vset.pattern.permute.xlu0 %v2912
    %2914 = vperm.xlu0 %2913, %v2867
    %v2915 = vpop.permute.xlu0 %2914
    %v2916 = vlaneseq
    %v2917 = vshrl.u32 %v2916, 7
    %v2918 = vadd.s32 %v2917, 24
    %2919 = vset.pattern.permute.xlu0 %v2918
    %2920 = vperm.xlu0 %2919, %v2867
    %v2921 = vpop.permute.xlu0 %2920
    %v2922 = vlaneseq
    %v2923 = vshrl.u32 %v2922, 7
    %2925 = vset.pattern.permute.xlu0 %v2923
    %2926 = vperm.xlu0 %2925, %v2868
    %v2927 = vpop.permute.xlu0 %2926
    %v2928 = vlaneseq
    %v2929 = vshrl.u32 %v2928, 7
    %v2930 = vadd.s32 %v2929, 8
    %2931 = vset.pattern.permute.xlu0 %v2930
    %2932 = vperm.xlu0 %2931, %v2868
    %v2933 = vpop.permute.xlu0 %2932
    %v2934 = vlaneseq
    %v2935 = vshrl.u32 %v2934, 7
    %v2936 = vadd.s32 %v2935, 16
    %2937 = vset.pattern.permute.xlu0 %v2936
    %2938 = vperm.xlu0 %2937, %v2868
    %v2939 = vpop.permute.xlu0 %2938
    %v2940 = vlaneseq
    %v2941 = vshrl.u32 %v2940, 7
    %v2942 = vadd.s32 %v2941, 24
    %2943 = vset.pattern.permute.xlu0 %v2942
    %2944 = vperm.xlu0 %2943, %v2868
    %v2945 = vpop.permute.xlu0 %2944
    %v2946 = vlaneseq
    %v2947 = vshrl.u32 %v2946, 7
    %2949 = vset.pattern.permute.xlu0 %v2947
    %2950 = vperm.xlu0 %2949, %v2869
    %v2951 = vpop.permute.xlu0 %2950
    %v2952 = vlaneseq
    %v2953 = vshrl.u32 %v2952, 7
    %v2954 = vadd.s32 %v2953, 8
    %2955 = vset.pattern.permute.xlu0 %v2954
    %2956 = vperm.xlu0 %2955, %v2869
    %v2957 = vpop.permute.xlu0 %2956
    %v2958 = vlaneseq
    %v2959 = vshrl.u32 %v2958, 7
    %v2960 = vadd.s32 %v2959, 16
    %2961 = vset.pattern.permute.xlu0 %v2960
    %2962 = vperm.xlu0 %2961, %v2869
    %v2963 = vpop.permute.xlu0 %2962
    %v2964 = vlaneseq
    %v2965 = vshrl.u32 %v2964, 7
    %v2966 = vadd.s32 %v2965, 24
    %2967 = vset.pattern.permute.xlu0 %v2966
    %2968 = vperm.xlu0 %2967, %v2869
    %v2969 = vpop.permute.xlu0 %2968
    %v2970 = vlaneseq
    %v2971 = vshrl.u32 %v2970, 7
    %2973 = vset.pattern.permute.xlu0 %v2971
    %2974 = vperm.xlu0 %2973, %v2870
    %v2975 = vpop.permute.xlu0 %2974
    %v2976 = vlaneseq
    %v2977 = vshrl.u32 %v2976, 7
    %v2978 = vadd.s32 %v2977, 8
    %2979 = vset.pattern.permute.xlu0 %v2978
    %2980 = vperm.xlu0 %2979, %v2870
    %v2981 = vpop.permute.xlu0 %2980
    %v2982 = vlaneseq
    %v2983 = vshrl.u32 %v2982, 7
    %v2984 = vadd.s32 %v2983, 16
    %2985 = vset.pattern.permute.xlu0 %v2984
    %2986 = vperm.xlu0 %2985, %v2870
    %v2987 = vpop.permute.xlu0 %2986
    %v2988 = vlaneseq
    %v2989 = vshrl.u32 %v2988, 7
    %v2990 = vadd.s32 %v2989, 24
    %2991 = vset.pattern.permute.xlu0 %v2990
    %2992 = vperm.xlu0 %2991, %v2870
    %v2993 = vpop.permute.xlu0 %2992
    %v2994 = vlaneseq
    %v2995 = vshrl.u32 %v2994, 7
    %2997 = vset.pattern.permute.xlu0 %v2995
    %2998 = vperm.xlu0 %2997, %v2871
    %v2999 = vpop.permute.xlu0 %2998
    %v3000 = vlaneseq
    %v3001 = vshrl.u32 %v3000, 7
    %v3002 = vadd.s32 %v3001, 8
    %3003 = vset.pattern.permute.xlu0 %v3002
    %3004 = vperm.xlu0 %3003, %v2871
    %v3005 = vpop.permute.xlu0 %3004
    %v3006 = vlaneseq
    %v3007 = vshrl.u32 %v3006, 7
    %v3008 = vadd.s32 %v3007, 16
    %3009 = vset.pattern.permute.xlu0 %v3008
    %3010 = vperm.xlu0 %3009, %v2871
    %v3011 = vpop.permute.xlu0 %3010
    %v3012 = vlaneseq
    %v3013 = vshrl.u32 %v3012, 7
    %v3014 = vadd.s32 %v3013, 24
    %3015 = vset.pattern.permute.xlu0 %v3014
    %3016 = vperm.xlu0 %3015, %v2871
    %v3017 = vpop.permute.xlu0 %3016
    %v3018 = vlaneseq
    %v3019 = vshrl.u32 %v3018, 7
    %3021 = vset.pattern.permute.xlu0 %v3019
    %3022 = vperm.xlu0 %3021, %v2872
    %v3023 = vpop.permute.xlu0 %3022
    %v3024 = vlaneseq
    %v3025 = vshrl.u32 %v3024, 7
    %v3026 = vadd.s32 %v3025, 8
    %3027 = vset.pattern.permute.xlu0 %v3026
    %3028 = vperm.xlu0 %3027, %v2872
    %v3029 = vpop.permute.xlu0 %3028
    %v3030 = vlaneseq
    %v3031 = vshrl.u32 %v3030, 7
    %v3032 = vadd.s32 %v3031, 16
    %3033 = vset.pattern.permute.xlu0 %v3032
    %3034 = vperm.xlu0 %3033, %v2872
    %v3035 = vpop.permute.xlu0 %3034
    %v3036 = vlaneseq
    %v3037 = vshrl.u32 %v3036, 7
    %v3038 = vadd.s32 %v3037, 24
    %3039 = vset.pattern.permute.xlu0 %v3038
    %3040 = vperm.xlu0 %3039, %v2872
    %v3041 = vpop.permute.xlu0 %3040
    %v3042 = vlaneseq
    %v3043 = vshrl.u32 %v3042, 7
    %3045 = vset.pattern.permute.xlu0 %v3043
    %3046 = vperm.xlu0 %3045, %v2873
    %v3047 = vpop.permute.xlu0 %3046
    %v3048 = vlaneseq
    %v3049 = vshrl.u32 %v3048, 7
    %v3050 = vadd.s32 %v3049, 8
    %3051 = vset.pattern.permute.xlu0 %v3050
    %3052 = vperm.xlu0 %3051, %v2873
    %v3053 = vpop.permute.xlu0 %3052
    %v3054 = vlaneseq
    %v3055 = vshrl.u32 %v3054, 7
    %v3056 = vadd.s32 %v3055, 16
    %3057 = vset.pattern.permute.xlu0 %v3056
    %3058 = vperm.xlu0 %3057, %v2873
    %v3059 = vpop.permute.xlu0 %3058
    %v3060 = vlaneseq
    %v3061 = vshrl.u32 %v3060, 7
    %v3062 = vadd.s32 %v3061, 24
    %3063 = vset.pattern.permute.xlu0 %v3062
    %3064 = vperm.xlu0 %3063, %v2873
    %v3065 = vpop.permute.xlu0 %3064
    %v3098 = vmul.f32 %v2858, %v2879
    %v3099 = vmul.f32 %v2858, %v2885
    %v3100 = vmul.f32 %v2858, %v2891
    %v3101 = vmul.f32 %v2858, %v2897
    %v3102 = vmul.f32 %v2859, %v2903
    %v3103 = vmul.f32 %v2859, %v2909
    %v3104 = vmul.f32 %v2859, %v2915
    %v3105 = vmul.f32 %v2859, %v2921
    %v3106 = vmul.f32 %v2860, %v2927
    %v3107 = vmul.f32 %v2860, %v2933
    %v3108 = vmul.f32 %v2860, %v2939
    %v3109 = vmul.f32 %v2860, %v2945
    %v3110 = vmul.f32 %v2861, %v2951
    %v3111 = vmul.f32 %v2861, %v2957
    %v3112 = vmul.f32 %v2861, %v2963
    %v3113 = vmul.f32 %v2861, %v2969
    %v3114 = vmul.f32 %v2862, %v2975
    %v3115 = vmul.f32 %v2862, %v2981
    %v3116 = vmul.f32 %v2862, %v2987
    %v3117 = vmul.f32 %v2862, %v2993
    %v3118 = vmul.f32 %v2863, %v2999
    %v3119 = vmul.f32 %v2863, %v3005
    %v3120 = vmul.f32 %v2863, %v3011
    %v3121 = vmul.f32 %v2863, %v3017
    %v3122 = vmul.f32 %v2864, %v3023
    %v3123 = vmul.f32 %v2864, %v3029
    %v3124 = vmul.f32 %v2864, %v3035
    %v3125 = vmul.f32 %v2864, %v3041
    %v3126 = vmul.f32 %v2865, %v3047
    %v3127 = vmul.f32 %v2865, %v3053
    %v3128 = vmul.f32 %v2865, %v3059
    %v3129 = vmul.f32 %v2865, %v3065
    %v3130 = vperm.slane %v2846, 1
    %v3131 = vperm.slane %v2847, 1
    %v3132 = vperm.slane %v2848, 1
    %v3133 = vperm.slane %v2849, 1
    %v3134 = vperm.slane %v2850, 1
    %v3135 = vperm.slane %v2851, 1
    %v3136 = vperm.slane %v2852, 1
    %v3137 = vperm.slane %v2853, 1
    %v3138 = vperm.slane %v2316, 1
    %v3139 = vperm.slane %v2854, 1
    %v3140 = vperm.slane %v2319, 1
    %v3141 = vperm.slane %v2855, 1
    %v3142 = vperm.slane %v2322, 1
    %v3143 = vperm.slane %v2856, 1
    %v3144 = vperm.slane %v2325, 1
    %v3145 = vperm.slane %v2857, 1
    %v3146 = vlaneseq
    %v3147 = vshrl.u32 %v3146, 7
    %3149 = vset.pattern.permute.xlu0 %v3147
    %3150 = vperm.xlu0 %3149, %v3138
    %v3151 = vpop.permute.xlu0 %3150
    %v3152 = vlaneseq
    %v3153 = vshrl.u32 %v3152, 7
    %v3154 = vadd.s32 %v3153, 8
    %3155 = vset.pattern.permute.xlu0 %v3154
    %3156 = vperm.xlu0 %3155, %v3138
    %v3157 = vpop.permute.xlu0 %3156
    %v3158 = vlaneseq
    %v3159 = vshrl.u32 %v3158, 7
    %v3160 = vadd.s32 %v3159, 16
    %3161 = vset.pattern.permute.xlu0 %v3160
    %3162 = vperm.xlu0 %3161, %v3138
    %v3163 = vpop.permute.xlu0 %3162
    %v3164 = vlaneseq
    %v3165 = vshrl.u32 %v3164, 7
    %v3166 = vadd.s32 %v3165, 24
    %3167 = vset.pattern.permute.xlu0 %v3166
    %3168 = vperm.xlu0 %3167, %v3138
    %v3169 = vpop.permute.xlu0 %3168
    %v3170 = vlaneseq
    %v3171 = vshrl.u32 %v3170, 7
    %3173 = vset.pattern.permute.xlu0 %v3171
    %3174 = vperm.xlu0 %3173, %v3139
    %v3175 = vpop.permute.xlu0 %3174
    %v3176 = vlaneseq
    %v3177 = vshrl.u32 %v3176, 7
    %v3178 = vadd.s32 %v3177, 8
    %3179 = vset.pattern.permute.xlu0 %v3178
    %3180 = vperm.xlu0 %3179, %v3139
    %v3181 = vpop.permute.xlu0 %3180
    %v3182 = vlaneseq
    %v3183 = vshrl.u32 %v3182, 7
    %v3184 = vadd.s32 %v3183, 16
    %3185 = vset.pattern.permute.xlu0 %v3184
    %3186 = vperm.xlu0 %3185, %v3139
    %v3187 = vpop.permute.xlu0 %3186
    %v3188 = vlaneseq
    %v3189 = vshrl.u32 %v3188, 7
    %v3190 = vadd.s32 %v3189, 24
    %3191 = vset.pattern.permute.xlu0 %v3190
    %3192 = vperm.xlu0 %3191, %v3139
    %v3193 = vpop.permute.xlu0 %3192
    %v3194 = vlaneseq
    %v3195 = vshrl.u32 %v3194, 7
    %3197 = vset.pattern.permute.xlu0 %v3195
    %3198 = vperm.xlu0 %3197, %v3140
    %v3199 = vpop.permute.xlu0 %3198
    %v3200 = vlaneseq
    %v3201 = vshrl.u32 %v3200, 7
    %v3202 = vadd.s32 %v3201, 8
    %3203 = vset.pattern.permute.xlu0 %v3202
    %3204 = vperm.xlu0 %3203, %v3140
    %v3205 = vpop.permute.xlu0 %3204
    %v3206 = vlaneseq
    %v3207 = vshrl.u32 %v3206, 7
    %v3208 = vadd.s32 %v3207, 16
    %3209 = vset.pattern.permute.xlu0 %v3208
    %3210 = vperm.xlu0 %3209, %v3140
    %v3211 = vpop.permute.xlu0 %3210
    %v3212 = vlaneseq
    %v3213 = vshrl.u32 %v3212, 7
    %v3214 = vadd.s32 %v3213, 24
    %3215 = vset.pattern.permute.xlu0 %v3214
    %3216 = vperm.xlu0 %3215, %v3140
    %v3217 = vpop.permute.xlu0 %3216
    %v3218 = vlaneseq
    %v3219 = vshrl.u32 %v3218, 7
    %3221 = vset.pattern.permute.xlu0 %v3219
    %3222 = vperm.xlu0 %3221, %v3141
    %v3223 = vpop.permute.xlu0 %3222
    %v3224 = vlaneseq
    %v3225 = vshrl.u32 %v3224, 7
    %v3226 = vadd.s32 %v3225, 8
    %3227 = vset.pattern.permute.xlu0 %v3226
    %3228 = vperm.xlu0 %3227, %v3141
    %v3229 = vpop.permute.xlu0 %3228
    %v3230 = vlaneseq
    %v3231 = vshrl.u32 %v3230, 7
    %v3232 = vadd.s32 %v3231, 16
    %3233 = vset.pattern.permute.xlu0 %v3232
    %3234 = vperm.xlu0 %3233, %v3141
    %v3235 = vpop.permute.xlu0 %3234
    %v3236 = vlaneseq
    %v3237 = vshrl.u32 %v3236, 7
    %v3238 = vadd.s32 %v3237, 24
    %3239 = vset.pattern.permute.xlu0 %v3238
    %3240 = vperm.xlu0 %3239, %v3141
    %v3241 = vpop.permute.xlu0 %3240
    %v3242 = vlaneseq
    %v3243 = vshrl.u32 %v3242, 7
    %3245 = vset.pattern.permute.xlu0 %v3243
    %3246 = vperm.xlu0 %3245, %v3142
    %v3247 = vpop.permute.xlu0 %3246
    %v3248 = vlaneseq
    %v3249 = vshrl.u32 %v3248, 7
    %v3250 = vadd.s32 %v3249, 8
    %3251 = vset.pattern.permute.xlu0 %v3250
    %3252 = vperm.xlu0 %3251, %v3142
    %v3253 = vpop.permute.xlu0 %3252
    %v3254 = vlaneseq
    %v3255 = vshrl.u32 %v3254, 7
    %v3256 = vadd.s32 %v3255, 16
    %3257 = vset.pattern.permute.xlu0 %v3256
    %3258 = vperm.xlu0 %3257, %v3142
    %v3259 = vpop.permute.xlu0 %3258
    %v3260 = vlaneseq
    %v3261 = vshrl.u32 %v3260, 7
    %v3262 = vadd.s32 %v3261, 24
    %3263 = vset.pattern.permute.xlu0 %v3262
    %3264 = vperm.xlu0 %3263, %v3142
    %v3265 = vpop.permute.xlu0 %3264
    %v3266 = vlaneseq
    %v3267 = vshrl.u32 %v3266, 7
    %3269 = vset.pattern.permute.xlu0 %v3267
    %3270 = vperm.xlu0 %3269, %v3143
    %v3271 = vpop.permute.xlu0 %3270
    %v3272 = vlaneseq
    %v3273 = vshrl.u32 %v3272, 7
    %v3274 = vadd.s32 %v3273, 8
    %3275 = vset.pattern.permute.xlu0 %v3274
    %3276 = vperm.xlu0 %3275, %v3143
    %v3277 = vpop.permute.xlu0 %3276
    %v3278 = vlaneseq
    %v3279 = vshrl.u32 %v3278, 7
    %v3280 = vadd.s32 %v3279, 16
    %3281 = vset.pattern.permute.xlu0 %v3280
    %3282 = vperm.xlu0 %3281, %v3143
    %v3283 = vpop.permute.xlu0 %3282
    %v3284 = vlaneseq
    %v3285 = vshrl.u32 %v3284, 7
    %v3286 = vadd.s32 %v3285, 24
    %3287 = vset.pattern.permute.xlu0 %v3286
    %3288 = vperm.xlu0 %3287, %v3143
    %v3289 = vpop.permute.xlu0 %3288
    %v3290 = vlaneseq
    %v3291 = vshrl.u32 %v3290, 7
    %3293 = vset.pattern.permute.xlu0 %v3291
    %3294 = vperm.xlu0 %3293, %v3144
    %v3295 = vpop.permute.xlu0 %3294
    %v3296 = vlaneseq
    %v3297 = vshrl.u32 %v3296, 7
    %v3298 = vadd.s32 %v3297, 8
    %3299 = vset.pattern.permute.xlu0 %v3298
    %3300 = vperm.xlu0 %3299, %v3144
    %v3301 = vpop.permute.xlu0 %3300
    %v3302 = vlaneseq
    %v3303 = vshrl.u32 %v3302, 7
    %v3304 = vadd.s32 %v3303, 16
    %3305 = vset.pattern.permute.xlu0 %v3304
    %3306 = vperm.xlu0 %3305, %v3144
    %v3307 = vpop.permute.xlu0 %3306
    %v3308 = vlaneseq
    %v3309 = vshrl.u32 %v3308, 7
    %v3310 = vadd.s32 %v3309, 24
    %3311 = vset.pattern.permute.xlu0 %v3310
    %3312 = vperm.xlu0 %3311, %v3144
    %v3313 = vpop.permute.xlu0 %3312
    %v3314 = vlaneseq
    %v3315 = vshrl.u32 %v3314, 7
    %3317 = vset.pattern.permute.xlu0 %v3315
    %3318 = vperm.xlu0 %3317, %v3145
    %v3319 = vpop.permute.xlu0 %3318
    %v3320 = vlaneseq
    %v3321 = vshrl.u32 %v3320, 7
    %v3322 = vadd.s32 %v3321, 8
    %3323 = vset.pattern.permute.xlu0 %v3322
    %3324 = vperm.xlu0 %3323, %v3145
    %v3325 = vpop.permute.xlu0 %3324
    %v3326 = vlaneseq
    %v3327 = vshrl.u32 %v3326, 7
    %v3328 = vadd.s32 %v3327, 16
    %3329 = vset.pattern.permute.xlu0 %v3328
    %3330 = vperm.xlu0 %3329, %v3145
    %v3331 = vpop.permute.xlu0 %3330
    %v3332 = vlaneseq
    %v3333 = vshrl.u32 %v3332, 7
    %v3334 = vadd.s32 %v3333, 24
    %3335 = vset.pattern.permute.xlu0 %v3334
    %3336 = vperm.xlu0 %3335, %v3145
    %v3337 = vpop.permute.xlu0 %3336
    %v3370 = vmul.f32 %v3130, %v3151
    %v3371 = vmul.f32 %v3130, %v3157
    %v3372 = vmul.f32 %v3130, %v3163
    %v3373 = vmul.f32 %v3130, %v3169
    %v3374 = vmul.f32 %v3131, %v3175
    %v3375 = vmul.f32 %v3131, %v3181
    %v3376 = vmul.f32 %v3131, %v3187
    %v3377 = vmul.f32 %v3131, %v3193
    %v3378 = vmul.f32 %v3132, %v3199
    %v3379 = vmul.f32 %v3132, %v3205
    %v3380 = vmul.f32 %v3132, %v3211
    %v3381 = vmul.f32 %v3132, %v3217
    %v3382 = vmul.f32 %v3133, %v3223
    %v3383 = vmul.f32 %v3133, %v3229
    %v3384 = vmul.f32 %v3133, %v3235
    %v3385 = vmul.f32 %v3133, %v3241
    %v3386 = vmul.f32 %v3134, %v3247
    %v3387 = vmul.f32 %v3134, %v3253
    %v3388 = vmul.f32 %v3134, %v3259
    %v3389 = vmul.f32 %v3134, %v3265
    %v3390 = vmul.f32 %v3135, %v3271
    %v3391 = vmul.f32 %v3135, %v3277
    %v3392 = vmul.f32 %v3135, %v3283
    %v3393 = vmul.f32 %v3135, %v3289
    %v3394 = vmul.f32 %v3136, %v3295
    %v3395 = vmul.f32 %v3136, %v3301
    %v3396 = vmul.f32 %v3136, %v3307
    %v3397 = vmul.f32 %v3136, %v3313
    %v3398 = vmul.f32 %v3137, %v3319
    %v3399 = vmul.f32 %v3137, %v3325
    %v3400 = vmul.f32 %v3137, %v3331
    %v3401 = vmul.f32 %v3137, %v3337
    %v3402 = vadd.f32 %v3098, %v3370
    %v3403 = vadd.f32 %v3099, %v3371
    %v3404 = vadd.f32 %v3100, %v3372
    %v3405 = vadd.f32 %v3101, %v3373
    %v3406 = vadd.f32 %v3102, %v3374
    %v3407 = vadd.f32 %v3103, %v3375
    %v3408 = vadd.f32 %v3104, %v3376
    %v3409 = vadd.f32 %v3105, %v3377
    %v3410 = vadd.f32 %v3106, %v3378
    %v3411 = vadd.f32 %v3107, %v3379
    %v3412 = vadd.f32 %v3108, %v3380
    %v3413 = vadd.f32 %v3109, %v3381
    %v3414 = vadd.f32 %v3110, %v3382
    %v3415 = vadd.f32 %v3111, %v3383
    %v3416 = vadd.f32 %v3112, %v3384
    %v3417 = vadd.f32 %v3113, %v3385
    %v3418 = vadd.f32 %v3114, %v3386
    %v3419 = vadd.f32 %v3115, %v3387
    %v3420 = vadd.f32 %v3116, %v3388
    %v3421 = vadd.f32 %v3117, %v3389
    %v3422 = vadd.f32 %v3118, %v3390
    %v3423 = vadd.f32 %v3119, %v3391
    %v3424 = vadd.f32 %v3120, %v3392
    %v3425 = vadd.f32 %v3121, %v3393
    %v3426 = vadd.f32 %v3122, %v3394
    %v3427 = vadd.f32 %v3123, %v3395
    %v3428 = vadd.f32 %v3124, %v3396
    %v3429 = vadd.f32 %v3125, %v3397
    %v3430 = vadd.f32 %v3126, %v3398
    %v3431 = vadd.f32 %v3127, %v3399
    %v3432 = vadd.f32 %v3128, %v3400
    %v3433 = vadd.f32 %v3129, %v3401
    %v3434 = vperm.slane %v2846, 2
    %v3435 = vperm.slane %v2847, 2
    %v3436 = vperm.slane %v2848, 2
    %v3437 = vperm.slane %v2849, 2
    %v3438 = vperm.slane %v2850, 2
    %v3439 = vperm.slane %v2851, 2
    %v3440 = vperm.slane %v2852, 2
    %v3441 = vperm.slane %v2853, 2
    %v3442 = vperm.slane %v2316, 2
    %v3443 = vperm.slane %v2854, 2
    %v3444 = vperm.slane %v2319, 2
    %v3445 = vperm.slane %v2855, 2
    %v3446 = vperm.slane %v2322, 2
    %v3447 = vperm.slane %v2856, 2
    %v3448 = vperm.slane %v2325, 2
    %v3449 = vperm.slane %v2857, 2
    %v3450 = vlaneseq
    %v3451 = vshrl.u32 %v3450, 7
    %3453 = vset.pattern.permute.xlu0 %v3451
    %3454 = vperm.xlu0 %3453, %v3442
    %v3455 = vpop.permute.xlu0 %3454
    %v3456 = vlaneseq
    %v3457 = vshrl.u32 %v3456, 7
    %v3458 = vadd.s32 %v3457, 8
    %3459 = vset.pattern.permute.xlu0 %v3458
    %3460 = vperm.xlu0 %3459, %v3442
    %v3461 = vpop.permute.xlu0 %3460
    %v3462 = vlaneseq
    %v3463 = vshrl.u32 %v3462, 7
    %v3464 = vadd.s32 %v3463, 16
    %3465 = vset.pattern.permute.xlu0 %v3464
    %3466 = vperm.xlu0 %3465, %v3442
    %v3467 = vpop.permute.xlu0 %3466
    %v3468 = vlaneseq
    %v3469 = vshrl.u32 %v3468, 7
    %v3470 = vadd.s32 %v3469, 24
    %3471 = vset.pattern.permute.xlu0 %v3470
    %3472 = vperm.xlu0 %3471, %v3442
    %v3473 = vpop.permute.xlu0 %3472
    %v3474 = vlaneseq
    %v3475 = vshrl.u32 %v3474, 7
    %3477 = vset.pattern.permute.xlu0 %v3475
    %3478 = vperm.xlu0 %3477, %v3443
    %v3479 = vpop.permute.xlu0 %3478
    %v3480 = vlaneseq
    %v3481 = vshrl.u32 %v3480, 7
    %v3482 = vadd.s32 %v3481, 8
    %3483 = vset.pattern.permute.xlu0 %v3482
    %3484 = vperm.xlu0 %3483, %v3443
    %v3485 = vpop.permute.xlu0 %3484
    %v3486 = vlaneseq
    %v3487 = vshrl.u32 %v3486, 7
    %v3488 = vadd.s32 %v3487, 16
    %3489 = vset.pattern.permute.xlu0 %v3488
    %3490 = vperm.xlu0 %3489, %v3443
    %v3491 = vpop.permute.xlu0 %3490
    %v3492 = vlaneseq
    %v3493 = vshrl.u32 %v3492, 7
    %v3494 = vadd.s32 %v3493, 24
    %3495 = vset.pattern.permute.xlu0 %v3494
    %3496 = vperm.xlu0 %3495, %v3443
    %v3497 = vpop.permute.xlu0 %3496
    %v3498 = vlaneseq
    %v3499 = vshrl.u32 %v3498, 7
    %3501 = vset.pattern.permute.xlu0 %v3499
    %3502 = vperm.xlu0 %3501, %v3444
    %v3503 = vpop.permute.xlu0 %3502
    %v3504 = vlaneseq
    %v3505 = vshrl.u32 %v3504, 7
    %v3506 = vadd.s32 %v3505, 8
    %3507 = vset.pattern.permute.xlu0 %v3506
    %3508 = vperm.xlu0 %3507, %v3444
    %v3509 = vpop.permute.xlu0 %3508
    %v3510 = vlaneseq
    %v3511 = vshrl.u32 %v3510, 7
    %v3512 = vadd.s32 %v3511, 16
    %3513 = vset.pattern.permute.xlu0 %v3512
    %3514 = vperm.xlu0 %3513, %v3444
    %v3515 = vpop.permute.xlu0 %3514
    %v3516 = vlaneseq
    %v3517 = vshrl.u32 %v3516, 7
    %v3518 = vadd.s32 %v3517, 24
    %3519 = vset.pattern.permute.xlu0 %v3518
    %3520 = vperm.xlu0 %3519, %v3444
    %v3521 = vpop.permute.xlu0 %3520
    %v3522 = vlaneseq
    %v3523 = vshrl.u32 %v3522, 7
    %3525 = vset.pattern.permute.xlu0 %v3523
    %3526 = vperm.xlu0 %3525, %v3445
    %v3527 = vpop.permute.xlu0 %3526
    %v3528 = vlaneseq
    %v3529 = vshrl.u32 %v3528, 7
    %v3530 = vadd.s32 %v3529, 8
    %3531 = vset.pattern.permute.xlu0 %v3530
    %3532 = vperm.xlu0 %3531, %v3445
    %v3533 = vpop.permute.xlu0 %3532
    %v3534 = vlaneseq
    %v3535 = vshrl.u32 %v3534, 7
    %v3536 = vadd.s32 %v3535, 16
    %3537 = vset.pattern.permute.xlu0 %v3536
    %3538 = vperm.xlu0 %3537, %v3445
    %v3539 = vpop.permute.xlu0 %3538
    %v3540 = vlaneseq
    %v3541 = vshrl.u32 %v3540, 7
    %v3542 = vadd.s32 %v3541, 24
    %3543 = vset.pattern.permute.xlu0 %v3542
    %3544 = vperm.xlu0 %3543, %v3445
    %v3545 = vpop.permute.xlu0 %3544
    %v3546 = vlaneseq
    %v3547 = vshrl.u32 %v3546, 7
    %3549 = vset.pattern.permute.xlu0 %v3547
    %3550 = vperm.xlu0 %3549, %v3446
    %v3551 = vpop.permute.xlu0 %3550
    %v3552 = vlaneseq
    %v3553 = vshrl.u32 %v3552, 7
    %v3554 = vadd.s32 %v3553, 8
    %3555 = vset.pattern.permute.xlu0 %v3554
    %3556 = vperm.xlu0 %3555, %v3446
    %v3557 = vpop.permute.xlu0 %3556
    %v3558 = vlaneseq
    %v3559 = vshrl.u32 %v3558, 7
    %v3560 = vadd.s32 %v3559, 16
    %3561 = vset.pattern.permute.xlu0 %v3560
    %3562 = vperm.xlu0 %3561, %v3446
    %v3563 = vpop.permute.xlu0 %3562
    %v3564 = vlaneseq
    %v3565 = vshrl.u32 %v3564, 7
    %v3566 = vadd.s32 %v3565, 24
    %3567 = vset.pattern.permute.xlu0 %v3566
    %3568 = vperm.xlu0 %3567, %v3446
    %v3569 = vpop.permute.xlu0 %3568
    %v3570 = vlaneseq
    %v3571 = vshrl.u32 %v3570, 7
    %3573 = vset.pattern.permute.xlu0 %v3571
    %3574 = vperm.xlu0 %3573, %v3447
    %v3575 = vpop.permute.xlu0 %3574
    %v3576 = vlaneseq
    %v3577 = vshrl.u32 %v3576, 7
    %v3578 = vadd.s32 %v3577, 8
    %3579 = vset.pattern.permute.xlu0 %v3578
    %3580 = vperm.xlu0 %3579, %v3447
    %v3581 = vpop.permute.xlu0 %3580
    %v3582 = vlaneseq
    %v3583 = vshrl.u32 %v3582, 7
    %v3584 = vadd.s32 %v3583, 16
    %3585 = vset.pattern.permute.xlu0 %v3584
    %3586 = vperm.xlu0 %3585, %v3447
    %v3587 = vpop.permute.xlu0 %3586
    %v3588 = vlaneseq
    %v3589 = vshrl.u32 %v3588, 7
    %v3590 = vadd.s32 %v3589, 24
    %3591 = vset.pattern.permute.xlu0 %v3590
    %3592 = vperm.xlu0 %3591, %v3447
    %v3593 = vpop.permute.xlu0 %3592
    %v3594 = vlaneseq
    %v3595 = vshrl.u32 %v3594, 7
    %3597 = vset.pattern.permute.xlu0 %v3595
    %3598 = vperm.xlu0 %3597, %v3448
    %v3599 = vpop.permute.xlu0 %3598
    %v3600 = vlaneseq
    %v3601 = vshrl.u32 %v3600, 7
    %v3602 = vadd.s32 %v3601, 8
    %3603 = vset.pattern.permute.xlu0 %v3602
    %3604 = vperm.xlu0 %3603, %v3448
    %v3605 = vpop.permute.xlu0 %3604
    %v3606 = vlaneseq
    %v3607 = vshrl.u32 %v3606, 7
    %v3608 = vadd.s32 %v3607, 16
    %3609 = vset.pattern.permute.xlu0 %v3608
    %3610 = vperm.xlu0 %3609, %v3448
    %v3611 = vpop.permute.xlu0 %3610
    %v3612 = vlaneseq
    %v3613 = vshrl.u32 %v3612, 7
    %v3614 = vadd.s32 %v3613, 24
    %3615 = vset.pattern.permute.xlu0 %v3614
    %3616 = vperm.xlu0 %3615, %v3448
    %v3617 = vpop.permute.xlu0 %3616
    %v3618 = vlaneseq
    %v3619 = vshrl.u32 %v3618, 7
    %3621 = vset.pattern.permute.xlu0 %v3619
    %3622 = vperm.xlu0 %3621, %v3449
    %v3623 = vpop.permute.xlu0 %3622
    %v3624 = vlaneseq
    %v3625 = vshrl.u32 %v3624, 7
    %v3626 = vadd.s32 %v3625, 8
    %3627 = vset.pattern.permute.xlu0 %v3626
    %3628 = vperm.xlu0 %3627, %v3449
    %v3629 = vpop.permute.xlu0 %3628
    %v3630 = vlaneseq
    %v3631 = vshrl.u32 %v3630, 7
    %v3632 = vadd.s32 %v3631, 16
    %3633 = vset.pattern.permute.xlu0 %v3632
    %3634 = vperm.xlu0 %3633, %v3449
    %v3635 = vpop.permute.xlu0 %3634
    %v3636 = vlaneseq
    %v3637 = vshrl.u32 %v3636, 7
    %v3638 = vadd.s32 %v3637, 24
    %3639 = vset.pattern.permute.xlu0 %v3638
    %3640 = vperm.xlu0 %3639, %v3449
    %v3641 = vpop.permute.xlu0 %3640
    %v3674 = vmul.f32 %v3434, %v3455
    %v3675 = vmul.f32 %v3434, %v3461
    %v3676 = vmul.f32 %v3434, %v3467
    %v3677 = vmul.f32 %v3434, %v3473
    %v3678 = vmul.f32 %v3435, %v3479
    %v3679 = vmul.f32 %v3435, %v3485
    %v3680 = vmul.f32 %v3435, %v3491
    %v3681 = vmul.f32 %v3435, %v3497
    %v3682 = vmul.f32 %v3436, %v3503
    %v3683 = vmul.f32 %v3436, %v3509
    %v3684 = vmul.f32 %v3436, %v3515
    %v3685 = vmul.f32 %v3436, %v3521
    %v3686 = vmul.f32 %v3437, %v3527
    %v3687 = vmul.f32 %v3437, %v3533
    %v3688 = vmul.f32 %v3437, %v3539
    %v3689 = vmul.f32 %v3437, %v3545
    %v3690 = vmul.f32 %v3438, %v3551
    %v3691 = vmul.f32 %v3438, %v3557
    %v3692 = vmul.f32 %v3438, %v3563
    %v3693 = vmul.f32 %v3438, %v3569
    %v3694 = vmul.f32 %v3439, %v3575
    %v3695 = vmul.f32 %v3439, %v3581
    %v3696 = vmul.f32 %v3439, %v3587
    %v3697 = vmul.f32 %v3439, %v3593
    %v3698 = vmul.f32 %v3440, %v3599
    %v3699 = vmul.f32 %v3440, %v3605
    %v3700 = vmul.f32 %v3440, %v3611
    %v3701 = vmul.f32 %v3440, %v3617
    %v3702 = vmul.f32 %v3441, %v3623
    %v3703 = vmul.f32 %v3441, %v3629
    %v3704 = vmul.f32 %v3441, %v3635
    %v3705 = vmul.f32 %v3441, %v3641
    %v3706 = vadd.f32 %v3402, %v3674
    %v3707 = vadd.f32 %v3403, %v3675
    %v3708 = vadd.f32 %v3404, %v3676
    %v3709 = vadd.f32 %v3405, %v3677
    %v3710 = vadd.f32 %v3406, %v3678
    %v3711 = vadd.f32 %v3407, %v3679
    %v3712 = vadd.f32 %v3408, %v3680
    %v3713 = vadd.f32 %v3409, %v3681
    %v3714 = vadd.f32 %v3410, %v3682
    %v3715 = vadd.f32 %v3411, %v3683
    %v3716 = vadd.f32 %v3412, %v3684
    %v3717 = vadd.f32 %v3413, %v3685
    %v3718 = vadd.f32 %v3414, %v3686
    %v3719 = vadd.f32 %v3415, %v3687
    %v3720 = vadd.f32 %v3416, %v3688
    %v3721 = vadd.f32 %v3417, %v3689
    %v3722 = vadd.f32 %v3418, %v3690
    %v3723 = vadd.f32 %v3419, %v3691
    %v3724 = vadd.f32 %v3420, %v3692
    %v3725 = vadd.f32 %v3421, %v3693
    %v3726 = vadd.f32 %v3422, %v3694
    %v3727 = vadd.f32 %v3423, %v3695
    %v3728 = vadd.f32 %v3424, %v3696
    %v3729 = vadd.f32 %v3425, %v3697
    %v3730 = vadd.f32 %v3426, %v3698
    %v3731 = vadd.f32 %v3427, %v3699
    %v3732 = vadd.f32 %v3428, %v3700
    %v3733 = vadd.f32 %v3429, %v3701
    %v3734 = vadd.f32 %v3430, %v3702
    %v3735 = vadd.f32 %v3431, %v3703
    %v3736 = vadd.f32 %v3432, %v3704
    %v3737 = vadd.f32 %v3433, %v3705
    %v3738 = vperm.slane %v2846, 3
    %v3739 = vperm.slane %v2847, 3
    %v3740 = vperm.slane %v2848, 3
    %v3741 = vperm.slane %v2849, 3
    %v3742 = vperm.slane %v2850, 3
    %v3743 = vperm.slane %v2851, 3
    %v3744 = vperm.slane %v2852, 3
    %v3745 = vperm.slane %v2853, 3
    %v3746 = vperm.slane %v2316, 3
    %v3747 = vperm.slane %v2854, 3
    %v3748 = vperm.slane %v2319, 3
    %v3749 = vperm.slane %v2855, 3
    %v3750 = vperm.slane %v2322, 3
    %v3751 = vperm.slane %v2856, 3
    %v3752 = vperm.slane %v2325, 3
    %v3753 = vperm.slane %v2857, 3
    %v3754 = vlaneseq
    %v3755 = vshrl.u32 %v3754, 7
    %3757 = vset.pattern.permute.xlu0 %v3755
    %3758 = vperm.xlu0 %3757, %v3746
    %v3759 = vpop.permute.xlu0 %3758
    %v3760 = vlaneseq
    %v3761 = vshrl.u32 %v3760, 7
    %v3762 = vadd.s32 %v3761, 8
    %3763 = vset.pattern.permute.xlu0 %v3762
    %3764 = vperm.xlu0 %3763, %v3746
    %v3765 = vpop.permute.xlu0 %3764
    %v3766 = vlaneseq
    %v3767 = vshrl.u32 %v3766, 7
    %v3768 = vadd.s32 %v3767, 16
    %3769 = vset.pattern.permute.xlu0 %v3768
    %3770 = vperm.xlu0 %3769, %v3746
    %v3771 = vpop.permute.xlu0 %3770
    %v3772 = vlaneseq
    %v3773 = vshrl.u32 %v3772, 7
    %v3774 = vadd.s32 %v3773, 24
    %3775 = vset.pattern.permute.xlu0 %v3774
    %3776 = vperm.xlu0 %3775, %v3746
    %v3777 = vpop.permute.xlu0 %3776
    %v3778 = vlaneseq
    %v3779 = vshrl.u32 %v3778, 7
    %3781 = vset.pattern.permute.xlu0 %v3779
    %3782 = vperm.xlu0 %3781, %v3747
    %v3783 = vpop.permute.xlu0 %3782
    %v3784 = vlaneseq
    %v3785 = vshrl.u32 %v3784, 7
    %v3786 = vadd.s32 %v3785, 8
    %3787 = vset.pattern.permute.xlu0 %v3786
    %3788 = vperm.xlu0 %3787, %v3747
    %v3789 = vpop.permute.xlu0 %3788
    %v3790 = vlaneseq
    %v3791 = vshrl.u32 %v3790, 7
    %v3792 = vadd.s32 %v3791, 16
    %3793 = vset.pattern.permute.xlu0 %v3792
    %3794 = vperm.xlu0 %3793, %v3747
    %v3795 = vpop.permute.xlu0 %3794
    %v3796 = vlaneseq
    %v3797 = vshrl.u32 %v3796, 7
    %v3798 = vadd.s32 %v3797, 24
    %3799 = vset.pattern.permute.xlu0 %v3798
    %3800 = vperm.xlu0 %3799, %v3747
    %v3801 = vpop.permute.xlu0 %3800
    %v3802 = vlaneseq
    %v3803 = vshrl.u32 %v3802, 7
    %3805 = vset.pattern.permute.xlu0 %v3803
    %3806 = vperm.xlu0 %3805, %v3748
    %v3807 = vpop.permute.xlu0 %3806
    %v3808 = vlaneseq
    %v3809 = vshrl.u32 %v3808, 7
    %v3810 = vadd.s32 %v3809, 8
    %3811 = vset.pattern.permute.xlu0 %v3810
    %3812 = vperm.xlu0 %3811, %v3748
    %v3813 = vpop.permute.xlu0 %3812
    %v3814 = vlaneseq
    %v3815 = vshrl.u32 %v3814, 7
    %v3816 = vadd.s32 %v3815, 16
    %3817 = vset.pattern.permute.xlu0 %v3816
    %3818 = vperm.xlu0 %3817, %v3748
    %v3819 = vpop.permute.xlu0 %3818
    %v3820 = vlaneseq
    %v3821 = vshrl.u32 %v3820, 7
    %v3822 = vadd.s32 %v3821, 24
    %3823 = vset.pattern.permute.xlu0 %v3822
    %3824 = vperm.xlu0 %3823, %v3748
    %v3825 = vpop.permute.xlu0 %3824
    %v3826 = vlaneseq
    %v3827 = vshrl.u32 %v3826, 7
    %3829 = vset.pattern.permute.xlu0 %v3827
    %3830 = vperm.xlu0 %3829, %v3749
    %v3831 = vpop.permute.xlu0 %3830
    %v3832 = vlaneseq
    %v3833 = vshrl.u32 %v3832, 7
    %v3834 = vadd.s32 %v3833, 8
    %3835 = vset.pattern.permute.xlu0 %v3834
    %3836 = vperm.xlu0 %3835, %v3749
    %v3837 = vpop.permute.xlu0 %3836
    %v3838 = vlaneseq
    %v3839 = vshrl.u32 %v3838, 7
    %v3840 = vadd.s32 %v3839, 16
    %3841 = vset.pattern.permute.xlu0 %v3840
    %3842 = vperm.xlu0 %3841, %v3749
    %v3843 = vpop.permute.xlu0 %3842
    %v3844 = vlaneseq
    %v3845 = vshrl.u32 %v3844, 7
    %v3846 = vadd.s32 %v3845, 24
    %3847 = vset.pattern.permute.xlu0 %v3846
    %3848 = vperm.xlu0 %3847, %v3749
    %v3849 = vpop.permute.xlu0 %3848
    %v3850 = vlaneseq
    %v3851 = vshrl.u32 %v3850, 7
    %3853 = vset.pattern.permute.xlu0 %v3851
    %3854 = vperm.xlu0 %3853, %v3750
    %v3855 = vpop.permute.xlu0 %3854
    %v3856 = vlaneseq
    %v3857 = vshrl.u32 %v3856, 7
    %v3858 = vadd.s32 %v3857, 8
    %3859 = vset.pattern.permute.xlu0 %v3858
    %3860 = vperm.xlu0 %3859, %v3750
    %v3861 = vpop.permute.xlu0 %3860
    %v3862 = vlaneseq
    %v3863 = vshrl.u32 %v3862, 7
    %v3864 = vadd.s32 %v3863, 16
    %3865 = vset.pattern.permute.xlu0 %v3864
    %3866 = vperm.xlu0 %3865, %v3750
    %v3867 = vpop.permute.xlu0 %3866
    %v3868 = vlaneseq
    %v3869 = vshrl.u32 %v3868, 7
    %v3870 = vadd.s32 %v3869, 24
    %3871 = vset.pattern.permute.xlu0 %v3870
    %3872 = vperm.xlu0 %3871, %v3750
    %v3873 = vpop.permute.xlu0 %3872
    %v3874 = vlaneseq
    %v3875 = vshrl.u32 %v3874, 7
    %3877 = vset.pattern.permute.xlu0 %v3875
    %3878 = vperm.xlu0 %3877, %v3751
    %v3879 = vpop.permute.xlu0 %3878
    %v3880 = vlaneseq
    %v3881 = vshrl.u32 %v3880, 7
    %v3882 = vadd.s32 %v3881, 8
    %3883 = vset.pattern.permute.xlu0 %v3882
    %3884 = vperm.xlu0 %3883, %v3751
    %v3885 = vpop.permute.xlu0 %3884
    %v3886 = vlaneseq
    %v3887 = vshrl.u32 %v3886, 7
    %v3888 = vadd.s32 %v3887, 16
    %3889 = vset.pattern.permute.xlu0 %v3888
    %3890 = vperm.xlu0 %3889, %v3751
    %v3891 = vpop.permute.xlu0 %3890
    %v3892 = vlaneseq
    %v3893 = vshrl.u32 %v3892, 7
    %v3894 = vadd.s32 %v3893, 24
    %3895 = vset.pattern.permute.xlu0 %v3894
    %3896 = vperm.xlu0 %3895, %v3751
    %v3897 = vpop.permute.xlu0 %3896
    %v3898 = vlaneseq
    %v3899 = vshrl.u32 %v3898, 7
    %3901 = vset.pattern.permute.xlu0 %v3899
    %3902 = vperm.xlu0 %3901, %v3752
    %v3903 = vpop.permute.xlu0 %3902
    %v3904 = vlaneseq
    %v3905 = vshrl.u32 %v3904, 7
    %v3906 = vadd.s32 %v3905, 8
    %3907 = vset.pattern.permute.xlu0 %v3906
    %3908 = vperm.xlu0 %3907, %v3752
    %v3909 = vpop.permute.xlu0 %3908
    %v3910 = vlaneseq
    %v3911 = vshrl.u32 %v3910, 7
    %v3912 = vadd.s32 %v3911, 16
    %3913 = vset.pattern.permute.xlu0 %v3912
    %3914 = vperm.xlu0 %3913, %v3752
    %v3915 = vpop.permute.xlu0 %3914
    %v3916 = vlaneseq
    %v3917 = vshrl.u32 %v3916, 7
    %v3918 = vadd.s32 %v3917, 24
    %3919 = vset.pattern.permute.xlu0 %v3918
    %3920 = vperm.xlu0 %3919, %v3752
    %v3921 = vpop.permute.xlu0 %3920
    %v3922 = vlaneseq
    %v3923 = vshrl.u32 %v3922, 7
    %3925 = vset.pattern.permute.xlu0 %v3923
    %3926 = vperm.xlu0 %3925, %v3753
    %v3927 = vpop.permute.xlu0 %3926
    %v3928 = vlaneseq
    %v3929 = vshrl.u32 %v3928, 7
    %v3930 = vadd.s32 %v3929, 8
    %3931 = vset.pattern.permute.xlu0 %v3930
    %3932 = vperm.xlu0 %3931, %v3753
    %v3933 = vpop.permute.xlu0 %3932
    %v3934 = vlaneseq
    %v3935 = vshrl.u32 %v3934, 7
    %v3936 = vadd.s32 %v3935, 16
    %3937 = vset.pattern.permute.xlu0 %v3936
    %3938 = vperm.xlu0 %3937, %v3753
    %v3939 = vpop.permute.xlu0 %3938
    %v3940 = vlaneseq
    %v3941 = vshrl.u32 %v3940, 7
    %v3942 = vadd.s32 %v3941, 24
    %3943 = vset.pattern.permute.xlu0 %v3942
    %3944 = vperm.xlu0 %3943, %v3753
    %v3945 = vpop.permute.xlu0 %3944
    %v3978 = vmul.f32 %v3738, %v3759
    %v3979 = vmul.f32 %v3738, %v3765
    %v3980 = vmul.f32 %v3738, %v3771
    %v3981 = vmul.f32 %v3738, %v3777
    %v3982 = vmul.f32 %v3739, %v3783
    %v3983 = vmul.f32 %v3739, %v3789
    %v3984 = vmul.f32 %v3739, %v3795
    %v3985 = vmul.f32 %v3739, %v3801
    %v3986 = vmul.f32 %v3740, %v3807
    %v3987 = vmul.f32 %v3740, %v3813
    %v3988 = vmul.f32 %v3740, %v3819
    %v3989 = vmul.f32 %v3740, %v3825
    %v3990 = vmul.f32 %v3741, %v3831
    %v3991 = vmul.f32 %v3741, %v3837
    %v3992 = vmul.f32 %v3741, %v3843
    %v3993 = vmul.f32 %v3741, %v3849
    %v3994 = vmul.f32 %v3742, %v3855
    %v3995 = vmul.f32 %v3742, %v3861
    %v3996 = vmul.f32 %v3742, %v3867
    %v3997 = vmul.f32 %v3742, %v3873
    %v3998 = vmul.f32 %v3743, %v3879
    %v3999 = vmul.f32 %v3743, %v3885
    %v4000 = vmul.f32 %v3743, %v3891
    %v4001 = vmul.f32 %v3743, %v3897
    %v4002 = vmul.f32 %v3744, %v3903
    %v4003 = vmul.f32 %v3744, %v3909
    %v4004 = vmul.f32 %v3744, %v3915
    %v4005 = vmul.f32 %v3744, %v3921
    %v4006 = vmul.f32 %v3745, %v3927
    %v4007 = vmul.f32 %v3745, %v3933
    %v4008 = vmul.f32 %v3745, %v3939
    %v4009 = vmul.f32 %v3745, %v3945
    %v4010 = vadd.f32 %v3706, %v3978
    %v4011 = vadd.f32 %v3707, %v3979
    %v4012 = vadd.f32 %v3708, %v3980
    %v4013 = vadd.f32 %v3709, %v3981
    %v4014 = vadd.f32 %v3710, %v3982
    %v4015 = vadd.f32 %v3711, %v3983
    %v4016 = vadd.f32 %v3712, %v3984
    %v4017 = vadd.f32 %v3713, %v3985
    %v4018 = vadd.f32 %v3714, %v3986
    %v4019 = vadd.f32 %v3715, %v3987
    %v4020 = vadd.f32 %v3716, %v3988
    %v4021 = vadd.f32 %v3717, %v3989
    %v4022 = vadd.f32 %v3718, %v3990
    %v4023 = vadd.f32 %v3719, %v3991
    %v4024 = vadd.f32 %v3720, %v3992
    %v4025 = vadd.f32 %v3721, %v3993
    %v4026 = vadd.f32 %v3722, %v3994
    %v4027 = vadd.f32 %v3723, %v3995
    %v4028 = vadd.f32 %v3724, %v3996
    %v4029 = vadd.f32 %v3725, %v3997
    %v4030 = vadd.f32 %v3726, %v3998
    %v4031 = vadd.f32 %v3727, %v3999
    %v4032 = vadd.f32 %v3728, %v4000
    %v4033 = vadd.f32 %v3729, %v4001
    %v4034 = vadd.f32 %v3730, %v4002
    %v4035 = vadd.f32 %v3731, %v4003
    %v4036 = vadd.f32 %v3732, %v4004
    %v4037 = vadd.f32 %v3733, %v4005
    %v4038 = vadd.f32 %v3734, %v4006
    %v4039 = vadd.f32 %v3735, %v4007
    %v4040 = vadd.f32 %v3736, %v4008
    %v4041 = vadd.f32 %v3737, %v4009
    %vm4042 = vcmp.lt.s32.totalorder %v2217, 4
    %v4043 = vsel %vm4042, %v2217, 4
    %vm4044 = vcmp.eq.s32.totalorder %v4043, 0
    %v4045 = vsel %vm4044, 1, 0
    %4046 = vset.pattern.permute.xlu0 0
    %4047 = vperm.xlu0 %4046, %v4045
    %v4048 = vpop.permute.xlu0 %4047
    %vm4049 = vcmp.eq.s32.totalorder %v4048, 1
    %v4050 = vsel %vm4049, %v1960, 0.0
    %v4051 = vadd.f32 %v4050, 0.0
    %vm4052 = vcmp.eq.s32.totalorder %v4043, 1
    %v4053 = vsel %vm4052, 1, 0
    %4054 = vset.pattern.permute.xlu0 0
    %4055 = vperm.xlu0 %4054, %v4053
    %v4056 = vpop.permute.xlu0 %4055
    %vm4057 = vcmp.eq.s32.totalorder %v4056, 1
    %v4058 = vsel %vm4057, %v1969, 0.0
    %v4059 = vadd.f32 %v4051, %v4058
    %vm4060 = vcmp.eq.s32.totalorder %v4043, 2
    %v4061 = vsel %vm4060, 1, 0
    %4062 = vset.pattern.permute.xlu0 0
    %4063 = vperm.xlu0 %4062, %v4061
    %v4064 = vpop.permute.xlu0 %4063
    %vm4065 = vcmp.eq.s32.totalorder %v4064, 1
    %v4066 = vsel %vm4065, %v1978, 0.0
    %v4067 = vadd.f32 %v4059, %v4066
    %vm4068 = vcmp.eq.s32.totalorder %v4043, 3
    %v4069 = vsel %vm4068, 1, 0
    %4070 = vset.pattern.permute.xlu0 0
    %4071 = vperm.xlu0 %4070, %v4069
    %v4072 = vpop.permute.xlu0 %4071
    %vm4073 = vcmp.eq.s32.totalorder %v4072, 1
    %v4074 = vsel %vm4073, %v1987, 0.0
    %v4075 = vadd.f32 %v4067, %v4074
    %vm4076 = vcmp.eq.s32.totalorder %v4043, 4
    %v4077 = vsel %vm4076, 1, 0
    %4078 = vset.pattern.permute.xlu0 0
    %4079 = vperm.xlu0 %4078, %v4077
    %v4080 = vpop.permute.xlu0 %4079
    %vm4081 = vcmp.eq.s32.totalorder %v4080, 1
    %v4082 = vsel %vm4081, %v1996, 0.0
    %v4083 = vadd.f32 %v4075, %v4082
    %s4084 = scalar_lea.vmem [#allocation12], 8
    %4085 = vst.msk [vmem:[%s4084] sm:$0xff] %vm225, %v2310
    %4087 = vrot.lane.b32.xlu0 %v2313, 32
    %v4088 = vpop.permute.xlu0 %4087
    %4090 = vst.msk [vmem:[%s4084] sm:$0xff] %vm2004, %v4088
    %4123 = vset.pattern.permute.xlu0 0
    %4124 = vperm.xlu0 %4123, %v4010
    %v4125 = vpop.permute.xlu0 %4124
    %4126 = vset.pattern.permute.xlu0 0
    %4127 = vperm.xlu0 %4126, %v4011
    %v4128 = vpop.permute.xlu0 %4127
    %4129 = vset.pattern.permute.xlu0 0
    %4130 = vperm.xlu0 %4129, %v4012
    %v4131 = vpop.permute.xlu0 %4130
    %4132 = vset.pattern.permute.xlu0 0
    %4133 = vperm.xlu0 %4132, %v4013
    %v4134 = vpop.permute.xlu0 %4133
    %4135 = vset.pattern.permute.xlu0 0
    %4136 = vperm.xlu0 %4135, %v4014
    %v4137 = vpop.permute.xlu0 %4136
    %4138 = vset.pattern.permute.xlu0 0
    %4139 = vperm.xlu0 %4138, %v4015
    %v4140 = vpop.permute.xlu0 %4139
    %4141 = vset.pattern.permute.xlu0 0
    %4142 = vperm.xlu0 %4141, %v4016
    %v4143 = vpop.permute.xlu0 %4142
    %4144 = vset.pattern.permute.xlu0 0
    %4145 = vperm.xlu0 %4144, %v4017
    %v4146 = vpop.permute.xlu0 %4145
    %4147 = vset.pattern.permute.xlu0 0
    %4148 = vperm.xlu0 %4147, %v4018
    %v4149 = vpop.permute.xlu0 %4148
    %4150 = vset.pattern.permute.xlu0 0
    %4151 = vperm.xlu0 %4150, %v4019
    %v4152 = vpop.permute.xlu0 %4151
    %4153 = vset.pattern.permute.xlu0 0
    %4154 = vperm.xlu0 %4153, %v4020
    %v4155 = vpop.permute.xlu0 %4154
    %4156 = vset.pattern.permute.xlu0 0
    %4157 = vperm.xlu0 %4156, %v4021
    %v4158 = vpop.permute.xlu0 %4157
    %4159 = vset.pattern.permute.xlu0 0
    %4160 = vperm.xlu0 %4159, %v4022
    %v4161 = vpop.permute.xlu0 %4160
    %4162 = vset.pattern.permute.xlu0 0
    %4163 = vperm.xlu0 %4162, %v4023
    %v4164 = vpop.permute.xlu0 %4163
    %4165 = vset.pattern.permute.xlu0 0
    %4166 = vperm.xlu0 %4165, %v4024
    %v4167 = vpop.permute.xlu0 %4166
    %4168 = vset.pattern.permute.xlu0 0
    %4169 = vperm.xlu0 %4168, %v4025
    %v4170 = vpop.permute.xlu0 %4169
    %4171 = vset.pattern.permute.xlu0 0
    %4172 = vperm.xlu0 %4171, %v4026
    %v4173 = vpop.permute.xlu0 %4172
    %4174 = vset.pattern.permute.xlu0 0
    %4175 = vperm.xlu0 %4174, %v4027
    %v4176 = vpop.permute.xlu0 %4175
    %4177 = vset.pattern.permute.xlu0 0
    %4178 = vperm.xlu0 %4177, %v4028
    %v4179 = vpop.permute.xlu0 %4178
    %4180 = vset.pattern.permute.xlu0 0
    %4181 = vperm.xlu0 %4180, %v4029
    %v4182 = vpop.permute.xlu0 %4181
    %4183 = vset.pattern.permute.xlu0 0
    %4184 = vperm.xlu0 %4183, %v4030
    %v4185 = vpop.permute.xlu0 %4184
    %4186 = vset.pattern.permute.xlu0 0
    %4187 = vperm.xlu0 %4186, %v4031
    %v4188 = vpop.permute.xlu0 %4187
    %4189 = vset.pattern.permute.xlu0 0
    %4190 = vperm.xlu0 %4189, %v4032
    %v4191 = vpop.permute.xlu0 %4190
    %4192 = vset.pattern.permute.xlu0 0
    %4193 = vperm.xlu0 %4192, %v4033
    %v4194 = vpop.permute.xlu0 %4193
    %4195 = vset.pattern.permute.xlu0 0
    %4196 = vperm.xlu0 %4195, %v4034
    %v4197 = vpop.permute.xlu0 %4196
    %4198 = vset.pattern.permute.xlu0 0
    %4199 = vperm.xlu0 %4198, %v4035
    %v4200 = vpop.permute.xlu0 %4199
    %4201 = vset.pattern.permute.xlu0 0
    %4202 = vperm.xlu0 %4201, %v4036
    %v4203 = vpop.permute.xlu0 %4202
    %4204 = vset.pattern.permute.xlu0 0
    %4205 = vperm.xlu0 %4204, %v4037
    %v4206 = vpop.permute.xlu0 %4205
    %4207 = vset.pattern.permute.xlu0 0
    %4208 = vperm.xlu0 %4207, %v4038
    %v4209 = vpop.permute.xlu0 %4208
    %4210 = vset.pattern.permute.xlu0 0
    %4211 = vperm.xlu0 %4210, %v4039
    %v4212 = vpop.permute.xlu0 %4211
    %4213 = vset.pattern.permute.xlu0 0
    %4214 = vperm.xlu0 %4213, %v4040
    %v4215 = vpop.permute.xlu0 %4214
    %4216 = vset.pattern.permute.xlu0 0
    %4217 = vperm.xlu0 %4216, %v4041
    %v4218 = vpop.permute.xlu0 %4217
    %v4219 = vperm.slane %v4125, %v2134
    %v4220 = vperm.slane %v4128, %v2136
    %v4221 = vsel %vm2138, %v4220, %v4219
    %v4222 = vperm.slane %v4131, %v2140
    %v4223 = vsel %vm2142, %v4222, %v4221
    %v4224 = vperm.slane %v4134, %v2144
    %v4225 = vsel %vm2146, %v4224, %v4223
    %v4226 = vperm.slane %v4137, %v2134
    %v4227 = vperm.slane %v4140, %v2136
    %v4228 = vsel %vm2138, %v4227, %v4226
    %v4229 = vperm.slane %v4143, %v2140
    %v4230 = vsel %vm2142, %v4229, %v4228
    %v4231 = vperm.slane %v4146, %v2144
    %v4232 = vsel %vm2146, %v4231, %v4230
    %v4233 = vperm.slane %v4149, %v2134
    %v4234 = vperm.slane %v4152, %v2136
    %v4235 = vsel %vm2138, %v4234, %v4233
    %v4236 = vperm.slane %v4155, %v2140
    %v4237 = vsel %vm2142, %v4236, %v4235
    %v4238 = vperm.slane %v4158, %v2144
    %v4239 = vsel %vm2146, %v4238, %v4237
    %v4240 = vperm.slane %v4161, %v2134
    %v4241 = vperm.slane %v4164, %v2136
    %v4242 = vsel %vm2138, %v4241, %v4240
    %v4243 = vperm.slane %v4167, %v2140
    %v4244 = vsel %vm2142, %v4243, %v4242
    %v4245 = vperm.slane %v4170, %v2144
    %v4246 = vsel %vm2146, %v4245, %v4244
    %v4247 = vperm.slane %v4173, %v2134
    %v4248 = vperm.slane %v4176, %v2136
    %v4249 = vsel %vm2138, %v4248, %v4247
    %v4250 = vperm.slane %v4179, %v2140
    %v4251 = vsel %vm2142, %v4250, %v4249
    %v4252 = vperm.slane %v4182, %v2144
    %v4253 = vsel %vm2146, %v4252, %v4251
    %v4254 = vperm.slane %v4185, %v2134
    %v4255 = vperm.slane %v4188, %v2136
    %v4256 = vsel %vm2138, %v4255, %v4254
    %v4257 = vperm.slane %v4191, %v2140
    %v4258 = vsel %vm2142, %v4257, %v4256
    %v4259 = vperm.slane %v4194, %v2144
    %v4260 = vsel %vm2146, %v4259, %v4258
    %v4261 = vperm.slane %v4197, %v2134
    %v4262 = vperm.slane %v4200, %v2136
    %v4263 = vsel %vm2138, %v4262, %v4261
    %v4264 = vperm.slane %v4203, %v2140
    %v4265 = vsel %vm2142, %v4264, %v4263
    %v4266 = vperm.slane %v4206, %v2144
    %v4267 = vsel %vm2146, %v4266, %v4265
    %v4268 = vperm.slane %v4209, %v2134
    %v4269 = vperm.slane %v4212, %v2136
    %v4270 = vsel %vm2138, %v4269, %v4268
    %v4271 = vperm.slane %v4215, %v2140
    %v4272 = vsel %vm2142, %v4271, %v4270
    %v4273 = vperm.slane %v4218, %v2144
    %v4274 = vsel %vm2146, %v4273, %v4272
    %v4275 = vsel %vm488, %v4232, %v4225
    %v4276 = vsel %vm490, %v4239, %v4275
    %v4277 = vsel %vm492, %v4246, %v4276
    %v4278 = vsel %vm494, %v4253, %v4277
    %v4279 = vsel %vm496, %v4260, %v4278
    %v4280 = vsel %vm498, %v4267, %v4279
    %v4281 = vsel %vm500, %v4274, %v4280
    %4283 = vst.msk [vmem:[%s4084] sm:$0xff] %vm2205, %v4281
    %4285 = vrot.lane.b32.xlu0 %v4083, 96
    %v4286 = vpop.permute.xlu0 %4285
    %4288 = vst.msk [vmem:[%s4084] sm:$0xff] %vm2211, %v4286
    // Predicated region
    $region58: #{tpu_custom_call.1} parent=1 // pred_check
      _
    $region59: #{tpu_custom_call.1} parent=1 // pred_check_branch
      %4290 = sbr.rel (0) target = $region61
    $region60: #{tpu_custom_call.1} parent=1 // pred_region
      %4292 = vsyncadd [#allocation6], 0
      %s4293 = sshll.u32 [#allocation12], 4
      %s4294 = int_to_ptr.vmem [resolvable:$true] %s4293
      %s4295 = sshll.u32 %s10, 4
      %s4296 = int_to_ptr.hbm [resolvable:$true] %s4295
      %4301 = dma.vmem_to_hbm [thread:$0]  %s4294, 256, %s4296, [#allocation6], 128, 128, 8
    $region61: #{tpu_custom_call.1} parent=1 // pred_fallthru
      _
    // Predicated region
    $region62: #{tpu_custom_call.1} parent=1 // pred_check
      _
    $region63: #{tpu_custom_call.1} parent=1 // pred_check_branch
      %4303 = sbr.rel (0) target = $region65
    $region64: #{tpu_custom_call.1} parent=1 // pred_region
      %4305 = dma.done [#allocation6], 256
    $region65: #{tpu_custom_call.1} parent=1 // pred_fallthru
      _
    %4306 = vsyncpa [#allocation5], 1
    %4307 = vsyncpa [#allocation8], 1
    %4308 = vsyncpa [#allocation11], 1
    %4309 = vsyncpa [#allocation6], 1

</llo_original>
